<compile_context>
chip_gen: v7x
topology: tpu7x:2x2x1
jax: 0.10.0
libtpu: 0.0.40
codegen_flags: <defaults>
</compile_context>

<pallas_src>
import functools

import jax
import jax.numpy as jnp
from jax import lax
from jax.experimental import pallas as pl
from jax.experimental.pallas import tpu as pltpu


def _pam_kernel(gamma_ref,            # SMEM (1,) f32
                x_nc_ref,             # VMEM (1, N_pad, C) f32   spatial-major x
                mask_ref,             # VMEM (1, N_pad) f32      0 / -1e30 pad mask
                wqt_ref, bq_ref,      # (C, Cq) bf16, (1, Cq) f32
                wkt_ref, bk_ref,      # (C, Cq) bf16, (1, Cq) f32
                wvt_ref, bv_ref,      # (C, C)  bf16, (1, C)  f32
                out_ref,              # VMEM (1, C, TQ) f32      channel-major out
                k_scr,                # VMEM (N_pad, Cq) bf16    (persists over qi)
                v_scr,                # VMEM (N_pad, C)  bf16    (persists over qi)
                *, n_valid, tq, kv_slab):
    qi = pl.program_id(1)
    n_pad = k_scr.shape[0]

    # ---- key / value projections: once per batch element, slab by slab -----
    # Chunking over N_pad avoids any (N_pad, C) f32 temporary before the bf16
    # cast (a ~8 MiB peak-VMEM saving at realistic DANet sizes).
    @pl.when(qi == 0)
    def _():
        def project_slab(i, carry):
            r0 = pl.multiple_of(i * kv_slab, kv_slab)
            xs = x_nc_ref[0, pl.ds(r0, kv_slab), :].astype(jnp.bfloat16)
            k = jnp.dot(xs, wkt_ref[...],
                        preferred_element_type=jnp.float32) + bk_ref[...]
            k_scr[pl.ds(r0, kv_slab), :] = k.astype(k_scr.dtype)
            v = jnp.dot(xs, wvt_ref[...],
                        preferred_element_type=jnp.float32) + bv_ref[...]
            v_scr[pl.ds(r0, kv_slab), :] = v.astype(v_scr.dtype)
            return carry
        lax.fori_loop(0, n_pad // kv_slab, project_slab, 0)

    # ---- per query-row-tile attention ---------------------------------------
    row0 = pl.multiple_of(qi * tq, tq)
    x_tile = x_nc_ref[0, pl.ds(row0, tq), :]                        # (TQ, C) f32

    # q = x_tile @ Wq^T -> (TQ, Cq); bias added in f32.
    q = jnp.dot(x_tile.astype(jnp.bfloat16), wqt_ref[...],
                preferred_element_type=jnp.float32) + bq_ref[...]

    # energy = q . k^T (contraction over Cq): flash-attention pattern, no
    # materialized transpose of k anywhere.
    energy = lax.dot_general(
        q.astype(jnp.bfloat16), k_scr[...],
        dimension_numbers=(((1,), (1,)), ((), ())),
        preferred_element_type=jnp.float32)                         # (TQ, N_pad)

    if n_valid != n_pad:      # static branch: additive -1e30 on padded key cols
        energy = energy + mask_ref[...]

    # Softmax over keys + torch.gt(0.5, att) drop.  e and the row sum stay f32
    # so the drop decision (e < 0.5*s  <=>  att < 0.5) is exact; normalization
    # by 1/s is deferred until after the att@v matmul (TQxC elems, not TQxN).
    m = jnp.max(energy, axis=-1, keepdims=True)
    e = jnp.exp(energy - m)
    s = jnp.sum(e, axis=-1, keepdims=True)
    att = jnp.where(e < 0.5 * s, e, 0.0).astype(jnp.bfloat16)       # unnormalized

    # out = att @ v -> (TQ, C), then scale rows by 1/s (EUP approx reciprocal).
    out_t = jnp.dot(att, v_scr[...], preferred_element_type=jnp.float32)
    inv_s = pl.reciprocal(s, approx=True)                           # (TQ, 1)

    y = gamma_ref[0] * (out_t * inv_s) + x_tile                     # (TQ, C) f32
    out_ref[0] = y.T                                                # (C, TQ) store


def _const_spec(shape):
    """Grid-invariant whole-array operand: its block index never changes, so a
    single VMEM buffer suffices (VMEM headroom on v7x).  Falls back to the
    default (double-buffered) spec if this Pallas build lacks pipeline_mode."""
    index_map = lambda b, qi: (0,) * len(shape)
    try:
        return pl.BlockSpec(shape, index_map, pipeline_mode=pl.Buffered(1))
    except Exception:  # pragma: no cover - older Pallas without pipeline_mode
        return pl.BlockSpec(shape, index_map)


def pam_module_forward(x, params, *, tq=None, vmem_limit_bytes=None):
    """x: (B, C, H, W) float32 (NCHW, like PyTorch). Returns (B, C, H, W)."""
    B, C, H, W = x.shape
    assert C % 8 == 0, "PAM_Module needs in_dim divisible by 8"
    N = H * W
    Cq = C // 8

    # Pad the flattened spatial axis up to a multiple of 128 lanes.
    N_pad = ((N + 127) // 128) * 128
    if tq is None:
        # TQ=256 keeps the working set inside v7x's 64 MiB VMEM at realistic
        # DANet sizes; sweep up to 512 on v5e/v6e (128 MiB VMEM, MXU-bound).
        tq = 256 if N_pad % 256 == 0 else 128
    assert N_pad % tq == 0
    # Slab size for the chunked k/v projection (always divides N_pad).
    kv_slab = next(s for s in (1024, 512, 256, 128) if N_pad % s == 0)

    wq, bq, wk, bk, wv, bv, gamma = (
        params["wq"], params["bq"], params["wk"], params["bk"],
        params["wv"], params["bv"], params["gamma"],
    )

    # Single spatial-major input layout (q/k/v projections + residual).
    x_nc = jnp.transpose(x.reshape(B, C, N), (0, 2, 1)).astype(jnp.float32)
    if N_pad != N:
        x_nc = jnp.pad(x_nc, ((0, 0), (0, N_pad - N), (0, 0)))

    # Additive key-padding mask row (0 valid / -1e30 pad), computed once.
    pad_mask = jnp.where(jnp.arange(N_pad) < N, 0.0, -1e30)
    pad_mask = pad_mask.astype(jnp.float32).reshape(1, N_pad)

    # MXU operands in bf16 (transposed so every in-kernel matmul is plain
    # (M,K)x(K,N) or the q.k^T contraction); biases / residual stay f32.
    wqt = wq.T.astype(jnp.bfloat16)                # (C, Cq)
    wkt = wk.T.astype(jnp.bfloat16)                # (C, Cq)
    wvt = wv.T.astype(jnp.bfloat16)                # (C, C)
    bq2 = bq.reshape(1, Cq).astype(jnp.float32)
    bk2 = bk.reshape(1, Cq).astype(jnp.float32)
    bv2 = bv.reshape(1, C).astype(jnp.float32)
    gamma1 = gamma.reshape(1).astype(jnp.float32)

    # Real VMEM footprint (+margin), capped so it is always safe on v7x.
    est_bytes = (
        2 * N_pad * C * 4            # x block (double-buffered, f32)
        + 2 * C * tq * 4             # output block (double-buffered, f32)
        + N_pad * Cq * 2             # k scratch (bf16)
        + N_pad * C * 2              # v scratch (bf16)
        + (2 * C * Cq + C * C) * 2   # weights (bf16, single-buffered)
        + (2 * Cq + C + N_pad) * 4   # biases + pad mask (f32)
        + 3 * tq * N_pad * 4         # energy / e / select temporaries (f32)
        + tq * N_pad * 2             # att (bf16)
    )
    if vmem_limit_bytes is None:
        vmem_limit_bytes = min(56 << 20, max(32 << 20, int(est_bytes * 1.25)))

    kernel = functools.partial(_pam_kernel, n_valid=N, tq=tq, kv_slab=kv_slab)

    out_cn = pl.pallas_call(
        kernel,
        out_shape=jax.ShapeDtypeStruct((B, C, N_pad), jnp.float32),
        grid=(B, N_pad // tq),
        in_specs=[
            pl.BlockSpec(memory_space=pltpu.SMEM),                   # gamma
            pl.BlockSpec((1, N_pad, C), lambda b, qi: (b, 0, 0)),    # x (N,C)-major
            _const_spec((1, N_pad)),                                 # pad mask
            _const_spec((C, Cq)), _const_spec((1, Cq)),              # query conv
            _const_spec((C, Cq)), _const_spec((1, Cq)),              # key conv
            _const_spec((C, C)), _const_spec((1, C)),                # value conv
        ],
        out_specs=pl.BlockSpec((1, C, tq), lambda b, qi: (b, 0, qi)),
        scratch_shapes=[
            pltpu.VMEM((N_pad, Cq), jnp.bfloat16),   # k  (spatial-major)
            pltpu.VMEM((N_pad, C), jnp.bfloat16),    # v  (spatial-major)
        ],
        compiler_params=pltpu.CompilerParams(
            dimension_semantics=("parallel", "arbitrary"),
            vmem_limit_bytes=vmem_limit_bytes,
        ),
    )(gamma1, x_nc, pad_mask, wqt, bq2, wkt, bk2, wvt, bv2)

    # Output is already channel-major; just drop padded columns and reshape.
    out = out_cn if N_pad == N else out_cn[:, :, :N]
    return out.reshape(B, C, H, W)


def pam_module_reference(x, params):
    """Pure-JAX fp32 reference mirroring the PyTorch forward."""
    B, C, H, W = x.shape
    N = H * W
    wq, bq, wk, bk, wv, bv, gamma = (
        params["wq"], params["bq"], params["wk"], params["bk"],
        params["wv"], params["bv"], params["gamma"],
    )
    xf = x.reshape(B, C, N)
    q = jnp.einsum("oc,bcn->bon", wq, xf) + bq[None, :, None]
    k = jnp.einsum("oc,bcn->bon", wk, xf) + bk[None, :, None]
    v = jnp.einsum("oc,bcn->bon", wv, xf) + bv[None, :, None]
    energy = jnp.einsum("bci,bcj->bij", q, k)
    att = jax.nn.softmax(energy, axis=-1)
    att = jnp.where(att < 0.5, att, 0.0)          # torch.gt(0.5, att) * att
    out = jnp.einsum("bcj,bij->bci", v, att).reshape(B, C, H, W)
    return gamma.reshape(()) * out + x


def make_params(key, C):
    """Deterministic init following PAM_Module.__init__ (gamma nonzero so the
    attention path contributes; small weight scale keeps every attention
    weight far from the 0.5 drop threshold, so bf16 rounding cannot flip the
    mask relative to the fp32 reference in this synthetic test)."""
    Cq = C // 8
    ks = jax.random.split(key, 6)
    scale = 0.03
    return {
        "wq": scale * jax.random.normal(ks[0], (Cq, C), jnp.float32),
        "bq": scale * jax.random.normal(ks[1], (Cq,), jnp.float32),
        "wk": scale * jax.random.normal(ks[2], (Cq, C), jnp.float32),
        "bk": scale * jax.random.normal(ks[3], (Cq,), jnp.float32),
        "wv": scale * jax.random.normal(ks[4], (C, C), jnp.float32),
        "bv": scale * jax.random.normal(ks[5], (C,), jnp.float32),
        "gamma": jnp.array([1.0], dtype=jnp.float32),
    }


if __name__ == "__main__":
    key = jax.random.PRNGKey(0)
    kx, kp = jax.random.split(key)

    # Small but non-trivial: N = 400 -> N_pad = 512 (exercises the additive
    # padding mask), TQ = 256 -> 2 query-row tiles per batch element
    # (exercises the qi==0 k/v projection and its reuse on the second tile),
    # C = 128 so every in-kernel tile and the output transpose are
    # (8,128)-aligned.
    B, C, H, W = 2, 128, 20, 20
    x = jax.random.normal(kx, (B, C, H, W), jnp.float32)
    params = make_params(kp, C)

    out = jax.block_until_ready(pam_module_forward(x, params))
    ref = pam_module_reference(x, params)

    assert out.shape == (B, C, H, W)
    # bf16 MXU operands + approximate softmax reciprocal -> looser tolerance
    # than the fp32 reference.
    assert jnp.allclose(out, ref, atol=1e-2, rtol=1e-2), \
        "Pallas kernel mismatch vs reference"

    print("KERNEL_OK")
</pallas_src>

<mosaic_0001>
module attributes {stable_mosaic.version = 11 : i64} {
  func.func @_pam_kernel(%arg0: i32, %arg1: i32, %arg2: memref<1xf32, #tpu.memory_space<smem>>, %arg3: memref<1x512x128xf32, #tpu.memory_space<vmem>>, %arg4: memref<1x512xf32, #tpu.memory_space<vmem>>, %arg5: memref<128x16xbf16, #tpu.memory_space<vmem>>, %arg6: memref<1x16xf32, #tpu.memory_space<vmem>>, %arg7: memref<128x16xbf16, #tpu.memory_space<vmem>>, %arg8: memref<1x16xf32, #tpu.memory_space<vmem>>, %arg9: memref<128x128xbf16, #tpu.memory_space<vmem>>, %arg10: memref<1x128xf32, #tpu.memory_space<vmem>>, %arg11: memref<1x128x256xf32, #tpu.memory_space<vmem>>, %arg12: memref<512x16xbf16, #tpu.memory_space<vmem>>, %arg13: memref<512x128xbf16, #tpu.memory_space<vmem>>) attributes {dimension_semantics = [#tpu.dimension_semantics<parallel>, #tpu.dimension_semantics<arbitrary>], iteration_bounds = array<i64: 2, 2>, scalar_prefetch = 0 : i64, scratch_operands = 2 : i64, tpu.core_type = #tpu.core_type<tc>, window_params = [{transform_indices = @transform_0, window_bounds = array<i64: 1>}, {transform_indices = @transform_1, window_bounds = array<i64: 1, 512, 128>}, {pipeline_mode = #tpu.pipeline_mode<synchronous>, transform_indices = @transform_2, window_bounds = array<i64: 1, 512>}, {pipeline_mode = #tpu.pipeline_mode<synchronous>, transform_indices = @transform_3, window_bounds = array<i64: 128, 16>}, {pipeline_mode = #tpu.pipeline_mode<synchronous>, transform_indices = @transform_4, window_bounds = array<i64: 1, 16>}, {pipeline_mode = #tpu.pipeline_mode<synchronous>, transform_indices = @transform_5, window_bounds = array<i64: 128, 16>}, {pipeline_mode = #tpu.pipeline_mode<synchronous>, transform_indices = @transform_6, window_bounds = array<i64: 1, 16>}, {pipeline_mode = #tpu.pipeline_mode<synchronous>, transform_indices = @transform_7, window_bounds = array<i64: 128, 128>}, {pipeline_mode = #tpu.pipeline_mode<synchronous>, transform_indices = @transform_8, window_bounds = array<i64: 1, 128>}, {transform_indices = @transform_9, window_bounds = array<i64: 1, 128, 256>}]} {
    %c0_i32 = arith.constant 0 : i32
    %0 = arith.cmpi eq, %arg1, %c0_i32 : i32
    %1 = arith.extui %0 : i1 to i32
    %c0_i32_0 = arith.constant 0 : i32
    %2 = arith.cmpi ne, %1, %c0_i32_0 : i32
    scf.if %2 {
      %c0_i32_22 = arith.constant 0 : i32
      %c512_i32 = arith.constant 512 : i32
      %47 = arith.muli %c0_i32_22, %c512_i32 : i32
      %48 = tpu.assume_multiple %47, 512 : i32
      %c0_23 = arith.constant 0 : index
      %49 = arith.index_cast %48 : i32 to index
      %c0_24 = arith.constant 0 : index
      %50 = vector.load %arg3[%c0_23, %49, %c0_24] : memref<1x512x128xf32, #tpu.memory_space<vmem>>, vector<1x512x128xf32>
      %51 = vector.shape_cast %50 : vector<1x512x128xf32> to vector<512x128xf32>
      %52 = arith.truncf %51 : vector<512x128xf32> to vector<512x128xbf16>
      %c0_25 = arith.constant 0 : index
      %c0_26 = arith.constant 0 : index
      %53 = vector.load %arg7[%c0_25, %c0_26] : memref<128x16xbf16, #tpu.memory_space<vmem>>, vector<128x16xbf16>
      %cst_27 = arith.constant dense<0.000000e+00> : vector<512x16xf32>
      %54 = tpu.matmul %52, %53, %cst_27 {dimension_numbers = #tpu.dot_dimension_numbers<[1], [0], [0], [1], [0, 0, 1, 1], [], []>} : vector<512x128xbf16>, vector<128x16xbf16>, vector<512x16xf32> -> vector<512x16xf32>
      %c0_28 = arith.constant 0 : index
      %c0_29 = arith.constant 0 : index
      %55 = vector.load %arg8[%c0_28, %c0_29] : memref<1x16xf32, #tpu.memory_space<vmem>>, vector<1x16xf32>
      %56 = vector.broadcast %55 : vector<1x16xf32> to vector<512x16xf32>
      %57 = arith.addf %54, %56 : vector<512x16xf32>
      %58 = arith.truncf %57 : vector<512x16xf32> to vector<512x16xbf16>
      %59 = arith.index_cast %48 : i32 to index
      %c0_30 = arith.constant 0 : index
      %60 = vector.load %arg12[%59, %c0_30] : memref<512x16xbf16, #tpu.memory_space<vmem>>, vector<512x16xbf16>
      tpu.vector_store %arg12[%59, %c0_30], %58 {strides = array<i32>} : memref<512x16xbf16, #tpu.memory_space<vmem>>, vector<512x16xbf16>,
      %c0_31 = arith.constant 0 : index
      %c0_32 = arith.constant 0 : index
      %61 = vector.load %arg9[%c0_31, %c0_32] : memref<128x128xbf16, #tpu.memory_space<vmem>>, vector<128x128xbf16>
      %cst_33 = arith.constant dense<0.000000e+00> : vector<512x128xf32>
      %62 = tpu.matmul %52, %61, %cst_33 {dimension_numbers = #tpu.dot_dimension_numbers<[1], [0], [0], [1], [0, 0, 1, 1], [], []>} : vector<512x128xbf16>, vector<128x128xbf16>, vector<512x128xf32> -> vector<512x128xf32>
      %c0_34 = arith.constant 0 : index
      %c0_35 = arith.constant 0 : index
      %63 = vector.load %arg10[%c0_34, %c0_35] : memref<1x128xf32, #tpu.memory_space<vmem>>, vector<1x128xf32>
      %64 = vector.broadcast %63 : vector<1x128xf32> to vector<512x128xf32>
      %65 = arith.addf %62, %64 : vector<512x128xf32>
      %66 = arith.truncf %65 : vector<512x128xf32> to vector<512x128xbf16>
      %67 = arith.index_cast %48 : i32 to index
      %c0_36 = arith.constant 0 : index
      %68 = vector.load %arg13[%67, %c0_36] : memref<512x128xbf16, #tpu.memory_space<vmem>>, vector<512x128xbf16>
      tpu.vector_store %arg13[%67, %c0_36], %66 {strides = array<i32>} : memref<512x128xbf16, #tpu.memory_space<vmem>>, vector<512x128xbf16>,
      %c1_i32 = arith.constant 1 : i32
    } else {
    }
    %c256_i32 = arith.constant 256 : i32
    %3 = arith.muli %arg1, %c256_i32 : i32
    %4 = tpu.assume_multiple %3, 256 : i32
    %c0 = arith.constant 0 : index
    %5 = arith.index_cast %4 : i32 to index
    %c0_1 = arith.constant 0 : index
    %6 = vector.load %arg3[%c0, %5, %c0_1] : memref<1x512x128xf32, #tpu.memory_space<vmem>>, vector<1x256x128xf32>
    %7 = vector.shape_cast %6 : vector<1x256x128xf32> to vector<256x128xf32>
    %8 = arith.truncf %7 : vector<256x128xf32> to vector<256x128xbf16>
    %c0_2 = arith.constant 0 : index
    %c0_3 = arith.constant 0 : index
    %9 = vector.load %arg5[%c0_2, %c0_3] : memref<128x16xbf16, #tpu.memory_space<vmem>>, vector<128x16xbf16>
    %cst = arith.constant dense<0.000000e+00> : vector<256x16xf32>
    %10 = tpu.matmul %8, %9, %cst {dimension_numbers = #tpu.dot_dimension_numbers<[1], [0], [0], [1], [0, 0, 1, 1], [], []>} : vector<256x128xbf16>, vector<128x16xbf16>, vector<256x16xf32> -> vector<256x16xf32>
    %c0_4 = arith.constant 0 : index
    %c0_5 = arith.constant 0 : index
    %11 = vector.load %arg6[%c0_4, %c0_5] : memref<1x16xf32, #tpu.memory_space<vmem>>, vector<1x16xf32>
    %12 = vector.broadcast %11 : vector<1x16xf32> to vector<256x16xf32>
    %13 = arith.addf %10, %12 : vector<256x16xf32>
    %14 = arith.truncf %13 : vector<256x16xf32> to vector<256x16xbf16>
    %c0_6 = arith.constant 0 : index
    %c0_7 = arith.constant 0 : index
    %15 = vector.load %arg12[%c0_6, %c0_7] : memref<512x16xbf16, #tpu.memory_space<vmem>>, vector<512x16xbf16>
    %cst_8 = arith.constant dense<0.000000e+00> : vector<256x512xf32>
    %16 = tpu.matmul %14, %15, %cst_8 {dimension_numbers = #tpu.dot_dimension_numbers<[1], [1], [0], [0], [0, 0, 1, 0], [], []>} : vector<256x16xbf16>, vector<512x16xbf16>, vector<256x512xf32> -> vector<256x512xf32>
    %c0_9 = arith.constant 0 : index
    %c0_10 = arith.constant 0 : index
    %17 = vector.load %arg4[%c0_9, %c0_10] : memref<1x512xf32, #tpu.memory_space<vmem>>, vector<1x512xf32>
    %18 = vector.broadcast %17 : vector<1x512xf32> to vector<256x512xf32>
    %19 = arith.addf %16, %18 : vector<256x512xf32>
    %cst_11 = arith.constant dense<0xFF800000> : vector<256xf32>
    %20 = vector.multi_reduction <maximumf>, %19, %cst_11 [1] : vector<256x512xf32> to vector<256xf32>
    %21 = vector.shape_cast %20 : vector<256xf32> to vector<256x1xf32>
    %22 = vector.broadcast %21 : vector<256x1xf32> to vector<256x512xf32>
    %23 = arith.subf %19, %22 : vector<256x512xf32>
    %24 = math.exp %23 : vector<256x512xf32>
    %cst_12 = arith.constant dense<0.000000e+00> : vector<256xf32>
    %25 = vector.multi_reduction <add>, %24, %cst_12 [1] : vector<256x512xf32> to vector<256xf32>
    %26 = vector.shape_cast %25 : vector<256xf32> to vector<256x1xf32>
    %cst_13 = arith.constant 5.000000e-01 : f32
    %27 = vector.broadcast %cst_13 : f32 to vector<256x1xf32>
    %28 = arith.mulf %27, %26 : vector<256x1xf32>
    %29 = vector.broadcast %28 : vector<256x1xf32> to vector<256x512xf32>
    %30 = arith.cmpf olt, %24, %29 : vector<256x512xf32>
    %cst_14 = arith.constant 0.000000e+00 : f32
    %31 = vector.broadcast %cst_14 : f32 to vector<256x512xf32>
    %32 = arith.select %30, %24, %31 : vector<256x512xi1>, vector<256x512xf32>
    %33 = arith.truncf %32 : vector<256x512xf32> to vector<256x512xbf16>
    %c0_15 = arith.constant 0 : index
    %c0_16 = arith.constant 0 : index
    %34 = vector.load %arg13[%c0_15, %c0_16] : memref<512x128xbf16, #tpu.memory_space<vmem>>, vector<512x128xbf16>
    %cst_17 = arith.constant dense<0.000000e+00> : vector<256x128xf32>
    %35 = tpu.matmul %33, %34, %cst_17 {dimension_numbers = #tpu.dot_dimension_numbers<[1], [0], [0], [1], [0, 0, 1, 1], [], []>} : vector<256x512xbf16>, vector<512x128xbf16>, vector<256x128xf32> -> vector<256x128xf32>
    %36 = tpu.reciprocal %26 {approx = true} : vector<256x1xf32> -> vector<256x1xf32>
    %c0_18 = arith.constant 0 : index
    %37 = memref.load %arg2[%c0_18] : memref<1xf32, #tpu.memory_space<smem>>
    %38 = vector.broadcast %36 : vector<256x1xf32> to vector<256x128xf32>
    %39 = arith.mulf %35, %38 : vector<256x128xf32>
    %40 = vector.broadcast %37 : f32 to vector<256x128xf32>
    %41 = arith.mulf %40, %39 : vector<256x128xf32>
    %42 = arith.addf %41, %7 : vector<256x128xf32>
    %43 = tpu.transpose %42, [1, 0] : vector<256x128xf32> -> vector<128x256xf32>
    %c0_19 = arith.constant 0 : index
    %c0_20 = arith.constant 0 : index
    %c0_21 = arith.constant 0 : index
    %44 = vector.load %arg11[%c0_19, %c0_20, %c0_21] : memref<1x128x256xf32, #tpu.memory_space<vmem>>, vector<1x128x256xf32>
    %45 = vector.shape_cast %44 : vector<1x128x256xf32> to vector<128x256xf32>
    %46 = vector.shape_cast %43 : vector<128x256xf32> to vector<1x128x256xf32>
    tpu.vector_store %arg11[%c0_19, %c0_20, %c0_21], %46 {strides = array<i32>} : memref<1x128x256xf32, #tpu.memory_space<vmem>>, vector<1x128x256xf32>,
    return
  }
  func.func @transform_0(%arg0: i32, %arg1: i32) -> i32 {
    %c0_i32 = arith.constant 0 : i32
    %c0_i32_0 = arith.constant 0 : i32
    return %c0_i32 : i32
  }
  func.func @transform_1(%arg0: i32, %arg1: i32) -> (i32, i32, i32) {
    %c0_i32 = arith.constant 0 : i32
    %c0_i32_0 = arith.constant 0 : i32
    %c0_i32_1 = arith.constant 0 : i32
    return %arg0, %c0_i32, %c0_i32_0 : i32, i32, i32
  }
  func.func @transform_2(%arg0: i32, %arg1: i32) -> (i32, i32) {
    %c0_i32 = arith.constant 0 : i32
    %c0_i32_0 = arith.constant 0 : i32
    %c0_i32_1 = arith.constant 0 : i32
    return %c0_i32, %c0_i32_0 : i32, i32
  }
  func.func @transform_3(%arg0: i32, %arg1: i32) -> (i32, i32) {
    %c0_i32 = arith.constant 0 : i32
    %c0_i32_0 = arith.constant 0 : i32
    %c0_i32_1 = arith.constant 0 : i32
    return %c0_i32, %c0_i32_0 : i32, i32
  }
  func.func @transform_4(%arg0: i32, %arg1: i32) -> (i32, i32) {
    %c0_i32 = arith.constant 0 : i32
    %c0_i32_0 = arith.constant 0 : i32
    %c0_i32_1 = arith.constant 0 : i32
    return %c0_i32, %c0_i32_0 : i32, i32
  }
  func.func @transform_5(%arg0: i32, %arg1: i32) -> (i32, i32) {
    %c0_i32 = arith.constant 0 : i32
    %c0_i32_0 = arith.constant 0 : i32
    %c0_i32_1 = arith.constant 0 : i32
    return %c0_i32, %c0_i32_0 : i32, i32
  }
  func.func @transform_6(%arg0: i32, %arg1: i32) -> (i32, i32) {
    %c0_i32 = arith.constant 0 : i32
    %c0_i32_0 = arith.constant 0 : i32
    %c0_i32_1 = arith.constant 0 : i32
    return %c0_i32, %c0_i32_0 : i32, i32
  }
  func.func @transform_7(%arg0: i32, %arg1: i32) -> (i32, i32) {
    %c0_i32 = arith.constant 0 : i32
    %c0_i32_0 = arith.constant 0 : i32
    %c0_i32_1 = arith.constant 0 : i32
    return %c0_i32, %c0_i32_0 : i32, i32
  }
  func.func @transform_8(%arg0: i32, %arg1: i32) -> (i32, i32) {
    %c0_i32 = arith.constant 0 : i32
    %c0_i32_0 = arith.constant 0 : i32
    %c0_i32_1 = arith.constant 0 : i32
    return %c0_i32, %c0_i32_0 : i32, i32
  }
  func.func @transform_9(%arg0: i32, %arg1: i32) -> (i32, i32, i32) {
    %c0_i32 = arith.constant 0 : i32
    %c0_i32_0 = arith.constant 0 : i32
    return %arg0, %c0_i32, %arg1 : i32, i32, i32
  }
}

</mosaic_0001>

<llo_original>
// kernel: tpu_custom_call.1
$region0: #{tpu_custom_call.1}
  #allocation0 [shape = 'u32[]', space=smem, size = 0x4, offset = 0x4, fixed_abs, tag = 'smem constant byte address 0x4 - core index']
  #allocation1 [shape = 'u32[144,128]{1,0:T(1,128)}', space=vmem, size = 0x12000, scoped, tag = 'internal scratch']
  #allocation2 [shape = 'bf16[512,16]{1,0:T(16,128)(2,1)}', space=vmem, size = 0x20000, scoped, tag = 'scratch operand']
  #allocation3 [shape = 'bf16[512,128]{1,0:T(16,128)(2,1)}', space=vmem, size = 0x20000, scoped, tag = 'scratch operand']
  #allocation4 [shape = 'f32[1]{0:T(128)S(6)}', space=smem, size = 0x200, scoped, tag = 'scoped memory for tpu_custom_call.1']
  %s0 = inlined_call_operand.<no memory space> [shape: f32[1], index: 0, kind: input, shape index: {}]
  %s1 = inlined_call_operand.hbm [shape: f32[2,512,128], index: 1, kind: input, shape index: {}]
  %s2 = inlined_call_operand.vmem [shape: f32[1,512], index: 2, kind: input, shape index: {}]
  %s3 = inlined_call_operand.vmem [shape: bf16[128,16], index: 3, kind: input, shape index: {}]
  %s4 = inlined_call_operand.vmem [shape: f32[1,16], index: 4, kind: input, shape index: {}]
  %s5 = inlined_call_operand.vmem [shape: bf16[128,16], index: 5, kind: input, shape index: {}]
  %s6 = inlined_call_operand.vmem [shape: f32[1,16], index: 6, kind: input, shape index: {}]
  %s7 = inlined_call_operand.vmem [shape: bf16[128,128], index: 7, kind: input, shape index: {}]
  %s8 = inlined_call_operand.vmem [shape: f32[1,128], index: 8, kind: input, shape index: {}]
  %s9 = inlined_call_operand.hbm [shape: f32[2,128,512], index: 9, kind: output, shape index: {}]
  %s10 = sld [smem:[#allocation0]]
  $region77: #{tpu_custom_call.1} parent=0
    _
  %s12 = ssub.s32 1, %s10
  %s13 = scalar_select 0, %s12, %s10
  %14 = sst [smem:[#allocation4]] %s0
  $region1: #{tpu_custom_call.1} parent=0
    #allocation5 [shape = 'u8[524288]{0}', space=vmem, size = 0x80000, scoped, tag = 'input window, operand 1']
    #allocation6 [shape = 's32[2]{0}', space=sflag, size = 0x8, scoped, tag = 'scoped memory for tpu_custom_call.1']
    #allocation7 [shape = 's32[2]{0}', space=sflag, size = 0x8, scoped, tag = 'scoped memory for tpu_custom_call.1']
    #allocation8 [shape = 'u8[262144]{0}', space=vmem, size = 0x40000, scoped, tag = 'output window, operand 0']
    %15 = vsyncpa [#allocation6], 0
    %s16 = scalar_lea.sflag [#allocation6], 1
    %17 = vsyncpa %s16, 0
    %18 = vsyncpa [#allocation7], 0
    %s19 = scalar_lea.sflag [#allocation7], 1
    %20 = vsyncpa %s19, 0
    loop: start=0, step=1, limit=6
    $region2: #{tpu_custom_call.1} parent=1 // loop_pre_header
      _
    $region3: #{tpu_custom_call.1} parent=1 // loop_header
      %s22 = sphi 0, %s26
      %p23 = scmp.ge.s32.totalorder %s22, 6
      %s29 = sphi 0, %s41
      %s30 = sphi 0, %s37
      %s31 = sphi 0, %s29
      %s32 = sphi 0, %s30
      %s33 = sphi 0, %s31
      %s34 = sphi 0, %s32
      %s42 = sphi 0, %s42
      %s44 = sphi 0, %s42
      %s45 = sphi 0, %s44
      %s59 = sphi 0, %s45
      %s65 = sphi 0, %s67
      %s68 = sphi 0, %s65
      %s69 = sphi 0, %s68
      %s85 = sphi 0, %s69
      %s89 = sphi 0, %s89
      %s91 = sphi 0, %s89
      %s92 = sphi 0, %s91
      %s106 = sphi 0, %s92
      %s110 = sphi 0, %s110
      %s112 = sphi 0, %s110
      %s113 = sphi 0, %s112
      %s127 = sphi 0, %s113
      %s131 = sphi 0, %s131
      %s133 = sphi 0, %s131
      %s134 = sphi 0, %s133
      %s148 = sphi 0, %s134
      %s152 = sphi 0, %s152
      %s154 = sphi 0, %s152
      %s155 = sphi 0, %s154
      %s169 = sphi 0, %s155
      %s173 = sphi 0, %s173
      %s175 = sphi 0, %s173
      %s176 = sphi 0, %s175
      %s190 = sphi 0, %s176
      %s194 = sphi 0, %s194
      %s196 = sphi 0, %s194
      %s197 = sphi 0, %s196
      %s211 = sphi 0, %s197
      %s215 = sphi 0, %s215
      %s217 = sphi 0, %s215
      %s218 = sphi 0, %s217
      %s232 = sphi 0, %s218
      %s240 = sphi 0, %s242
      %s243 = sphi 0, %s240
      %s244 = sphi 0, %s243
      %s260 = sphi 0, %s244
    $region4: #{tpu_custom_call.1} parent=1 // loop_header_branch
      %25 = sbr.rel (%p23) target = $region8
    $region5: #{tpu_custom_call.1} parent=1 // loop_body
      %s27 = ssub.s32 %s22, 1
      %s28 = ssub.s32 %s22, 2
      %s35 = sadd.s32 1, %s30
      %p36 = scmp.ge.s32.totalorder %s35, 2
      %s37 = scalar_select %p36, 0, %s35
      %s38 = sadd.s32 1, %s29
      %s39 = scalar_select %p36, %s38, %s29
      %p40 = scmp.ge.s32.totalorder %s39, 2
      %s41 = scalar_select %p40, 0, %s39
      %s43 = sadd.s32 %s42, 1
      %p46 = scmp.eq.s32.totalorder %s22, 3
      %p47 = scmp.ne.s32.totalorder %s42, %s44
      %p48 = scmp.eq.s32.totalorder %s22, 0
      %p49 = por %p47, %p48
      %p50 = scmp.ne.s32.totalorder %s42, %s44
      %p51 = scmp.eq.s32.totalorder %s27, 3
      %p52 = por %p50, %p51
      %p53 = scmp.ne.s32.totalorder %s44, %s45
      %p54 = scmp.eq.s32.totalorder %s27, 0
      %p55 = por %p53, %p54
      %p56 = scmp.ne.s32.totalorder %s44, %s45
      %p57 = scmp.eq.s32.totalorder %s28, 3
      %p58 = por %p56, %p57
      %p60 = scmp.ne.s32.totalorder %s45, %s59
      %p61 = scmp.eq.s32.totalorder %s28, 0
      %p62 = por %p60, %p61
      %s63 = ssub.s32 %s29, %s41
      %p64 = scmp.eq.s32.totalorder %s63, 0
      %s66 = sadd.s32 %s65, 1
      %s67 = scalar_select %p64, %s65, %s66
      %p70 = pneg %p64
      %p71 = scmp.eq.s32.totalorder %s22, 3
      %p72 = por %p70, %p71
      %p73 = scmp.ne.s32.totalorder %s65, %s68
      %p74 = scmp.eq.s32.totalorder %s22, 0
      %p75 = por %p73, %p74
      %p76 = scmp.ne.s32.totalorder %s65, %s68
      %p77 = scmp.eq.s32.totalorder %s27, 3
      %p78 = por %p76, %p77
      %p79 = scmp.ne.s32.totalorder %s68, %s69
      %p80 = scmp.eq.s32.totalorder %s27, 0
      %p81 = por %p79, %p80
      %p82 = scmp.ne.s32.totalorder %s68, %s69
      %p83 = scmp.eq.s32.totalorder %s28, 3
      %p84 = por %p82, %p83
      %p86 = scmp.ne.s32.totalorder %s69, %s85
      %p87 = scmp.eq.s32.totalorder %s28, 0
      %p88 = por %p86, %p87
      %s90 = sadd.s32 %s89, 1
      %p93 = scmp.eq.s32.totalorder %s22, 3
      %p94 = scmp.ne.s32.totalorder %s89, %s91
      %p95 = scmp.eq.s32.totalorder %s22, 0
      %p96 = por %p94, %p95
      %p97 = scmp.ne.s32.totalorder %s89, %s91
      %p98 = scmp.eq.s32.totalorder %s27, 3
      %p99 = por %p97, %p98
      %p100 = scmp.ne.s32.totalorder %s91, %s92
      %p101 = scmp.eq.s32.totalorder %s27, 0
      %p102 = por %p100, %p101
      %p103 = scmp.ne.s32.totalorder %s91, %s92
      %p104 = scmp.eq.s32.totalorder %s28, 3
      %p105 = por %p103, %p104
      %p107 = scmp.ne.s32.totalorder %s92, %s106
      %p108 = scmp.eq.s32.totalorder %s28, 0
      %p109 = por %p107, %p108
      %s111 = sadd.s32 %s110, 1
      %p114 = scmp.eq.s32.totalorder %s22, 3
      %p115 = scmp.ne.s32.totalorder %s110, %s112
      %p116 = scmp.eq.s32.totalorder %s22, 0
      %p117 = por %p115, %p116
      %p118 = scmp.ne.s32.totalorder %s110, %s112
      %p119 = scmp.eq.s32.totalorder %s27, 3
      %p120 = por %p118, %p119
      %p121 = scmp.ne.s32.totalorder %s112, %s113
      %p122 = scmp.eq.s32.totalorder %s27, 0
      %p123 = por %p121, %p122
      %p124 = scmp.ne.s32.totalorder %s112, %s113
      %p125 = scmp.eq.s32.totalorder %s28, 3
      %p126 = por %p124, %p125
      %p128 = scmp.ne.s32.totalorder %s113, %s127
      %p129 = scmp.eq.s32.totalorder %s28, 0
      %p130 = por %p128, %p129
      %s132 = sadd.s32 %s131, 1
      %p135 = scmp.eq.s32.totalorder %s22, 3
      %p136 = scmp.ne.s32.totalorder %s131, %s133
      %p137 = scmp.eq.s32.totalorder %s22, 0
      %p138 = por %p136, %p137
      %p139 = scmp.ne.s32.totalorder %s131, %s133
      %p140 = scmp.eq.s32.totalorder %s27, 3
      %p141 = por %p139, %p140
      %p142 = scmp.ne.s32.totalorder %s133, %s134
      %p143 = scmp.eq.s32.totalorder %s27, 0
      %p144 = por %p142, %p143
      %p145 = scmp.ne.s32.totalorder %s133, %s134
      %p146 = scmp.eq.s32.totalorder %s28, 3
      %p147 = por %p145, %p146
      %p149 = scmp.ne.s32.totalorder %s134, %s148
      %p150 = scmp.eq.s32.totalorder %s28, 0
      %p151 = por %p149, %p150
      %s153 = sadd.s32 %s152, 1
      %p156 = scmp.eq.s32.totalorder %s22, 3
      %p157 = scmp.ne.s32.totalorder %s152, %s154
      %p158 = scmp.eq.s32.totalorder %s22, 0
      %p159 = por %p157, %p158
      %p160 = scmp.ne.s32.totalorder %s152, %s154
      %p161 = scmp.eq.s32.totalorder %s27, 3
      %p162 = por %p160, %p161
      %p163 = scmp.ne.s32.totalorder %s154, %s155
      %p164 = scmp.eq.s32.totalorder %s27, 0
      %p165 = por %p163, %p164
      %p166 = scmp.ne.s32.totalorder %s154, %s155
      %p167 = scmp.eq.s32.totalorder %s28, 3
      %p168 = por %p166, %p167
      %p170 = scmp.ne.s32.totalorder %s155, %s169
      %p171 = scmp.eq.s32.totalorder %s28, 0
      %p172 = por %p170, %p171
      %s174 = sadd.s32 %s173, 1
      %p177 = scmp.eq.s32.totalorder %s22, 3
      %p178 = scmp.ne.s32.totalorder %s173, %s175
      %p179 = scmp.eq.s32.totalorder %s22, 0
      %p180 = por %p178, %p179
      %p181 = scmp.ne.s32.totalorder %s173, %s175
      %p182 = scmp.eq.s32.totalorder %s27, 3
      %p183 = por %p181, %p182
      %p184 = scmp.ne.s32.totalorder %s175, %s176
      %p185 = scmp.eq.s32.totalorder %s27, 0
      %p186 = por %p184, %p185
      %p187 = scmp.ne.s32.totalorder %s175, %s176
      %p188 = scmp.eq.s32.totalorder %s28, 3
      %p189 = por %p187, %p188
      %p191 = scmp.ne.s32.totalorder %s176, %s190
      %p192 = scmp.eq.s32.totalorder %s28, 0
      %p193 = por %p191, %p192
      %s195 = sadd.s32 %s194, 1
      %p198 = scmp.eq.s32.totalorder %s22, 3
      %p199 = scmp.ne.s32.totalorder %s194, %s196
      %p200 = scmp.eq.s32.totalorder %s22, 0
      %p201 = por %p199, %p200
      %p202 = scmp.ne.s32.totalorder %s194, %s196
      %p203 = scmp.eq.s32.totalorder %s27, 3
      %p204 = por %p202, %p203
      %p205 = scmp.ne.s32.totalorder %s196, %s197
      %p206 = scmp.eq.s32.totalorder %s27, 0
      %p207 = por %p205, %p206
      %p208 = scmp.ne.s32.totalorder %s196, %s197
      %p209 = scmp.eq.s32.totalorder %s28, 3
      %p210 = por %p208, %p209
      %p212 = scmp.ne.s32.totalorder %s197, %s211
      %p213 = scmp.eq.s32.totalorder %s28, 0
      %p214 = por %p212, %p213
      %s216 = sadd.s32 %s215, 1
      %p219 = scmp.eq.s32.totalorder %s22, 3
      %p220 = scmp.ne.s32.totalorder %s215, %s217
      %p221 = scmp.eq.s32.totalorder %s22, 0
      %p222 = por %p220, %p221
      %p223 = scmp.ne.s32.totalorder %s215, %s217
      %p224 = scmp.eq.s32.totalorder %s27, 3
      %p225 = por %p223, %p224
      %p226 = scmp.ne.s32.totalorder %s217, %s218
      %p227 = scmp.eq.s32.totalorder %s27, 0
      %p228 = por %p226, %p227
      %p229 = scmp.ne.s32.totalorder %s217, %s218
      %p230 = scmp.eq.s32.totalorder %s28, 3
      %p231 = por %p229, %p230
      %p233 = scmp.ne.s32.totalorder %s218, %s232
      %p234 = scmp.eq.s32.totalorder %s28, 0
      %p235 = por %p233, %p234
      %s236 = ssub.s32 %s29, %s41
      %s237 = ssub.s32 %s30, %s37
      %s238 = sor.u32 %s236, %s237
      %p239 = scmp.eq.s32.totalorder %s238, 0
      %s241 = sadd.s32 %s240, 1
      %s242 = scalar_select %p239, %s240, %s241
      %p245 = pneg %p239
      %p246 = scmp.eq.s32.totalorder %s22, 3
      %p247 = por %p245, %p246
      %p248 = scmp.ne.s32.totalorder %s240, %s243
      %p249 = scmp.eq.s32.totalorder %s22, 0
      %p250 = por %p248, %p249
      %p251 = scmp.ne.s32.totalorder %s240, %s243
      %p252 = scmp.eq.s32.totalorder %s27, 3
      %p253 = por %p251, %p252
      %p254 = scmp.ne.s32.totalorder %s243, %s244
      %p255 = scmp.eq.s32.totalorder %s27, 0
      %p256 = por %p254, %p255
      %p257 = scmp.ne.s32.totalorder %s243, %s244
      %p258 = scmp.eq.s32.totalorder %s28, 3
      %p259 = por %p257, %p258
      %p261 = scmp.ne.s32.totalorder %s244, %s260
      %p262 = scmp.eq.s32.totalorder %s28, 0
      %p263 = por %p261, %p262
      %p264 = scmp.le.s32.totalorder 1, %s22
      %p265 = scmp.lt.s32.totalorder %s22, 5
      %p266 = pnand %p264, %p265
      %p267 = pneg %p266
      // Predicated region
      $region9: #{tpu_custom_call.1} parent=5 // pred_check
        _
      $region10: #{tpu_custom_call.1} parent=5 // pred_check_branch
        %269 = sbr.rel (%p266) target = $region12
      $region11: #{tpu_custom_call.1} parent=5 // pred_region
        %s270 = ssub.s32 %s22, 1
        // Predicated region
        $region13: #{tpu_custom_call.1} parent=11 // pred_check
          %p271 = pneg %p55
        $region14: #{tpu_custom_call.1} parent=11 // pred_check_branch
          %273 = sbr.rel (%p271) target = $region16
        $region15: #{tpu_custom_call.1} parent=11 // pred_region
          _
        $region16: #{tpu_custom_call.1} parent=11 // pred_fallthru
          _
        // Predicated region
        $region17: #{tpu_custom_call.1} parent=11 // pred_check
          %p274 = pneg %p102
        $region18: #{tpu_custom_call.1} parent=11 // pred_check_branch
          %276 = sbr.rel (%p274) target = $region20
        $region19: #{tpu_custom_call.1} parent=11 // pred_region
          _
        $region20: #{tpu_custom_call.1} parent=11 // pred_fallthru
          _
        // Predicated region
        $region21: #{tpu_custom_call.1} parent=11 // pred_check
          %p277 = pneg %p123
        $region22: #{tpu_custom_call.1} parent=11 // pred_check_branch
          %279 = sbr.rel (%p277) target = $region24
        $region23: #{tpu_custom_call.1} parent=11 // pred_region
          _
        $region24: #{tpu_custom_call.1} parent=11 // pred_fallthru
          _
        // Predicated region
        $region25: #{tpu_custom_call.1} parent=11 // pred_check
          %p280 = pneg %p144
        $region26: #{tpu_custom_call.1} parent=11 // pred_check_branch
          %282 = sbr.rel (%p280) target = $region28
        $region27: #{tpu_custom_call.1} parent=11 // pred_region
          _
        $region28: #{tpu_custom_call.1} parent=11 // pred_fallthru
          _
        // Predicated region
        $region29: #{tpu_custom_call.1} parent=11 // pred_check
          %p283 = pneg %p165
        $region30: #{tpu_custom_call.1} parent=11 // pred_check_branch
          %285 = sbr.rel (%p283) target = $region32
        $region31: #{tpu_custom_call.1} parent=11 // pred_region
          _
        $region32: #{tpu_custom_call.1} parent=11 // pred_fallthru
          _
        // Predicated region
        $region33: #{tpu_custom_call.1} parent=11 // pred_check
          %p286 = pneg %p186
        $region34: #{tpu_custom_call.1} parent=11 // pred_check_branch
          %288 = sbr.rel (%p286) target = $region36
        $region35: #{tpu_custom_call.1} parent=11 // pred_region
          _
        $region36: #{tpu_custom_call.1} parent=11 // pred_fallthru
          _
        // Predicated region
        $region37: #{tpu_custom_call.1} parent=11 // pred_check
          %p289 = pneg %p207
        $region38: #{tpu_custom_call.1} parent=11 // pred_check_branch
          %291 = sbr.rel (%p289) target = $region40
        $region39: #{tpu_custom_call.1} parent=11 // pred_region
          _
        $region40: #{tpu_custom_call.1} parent=11 // pred_fallthru
          _
        // Predicated region
        $region41: #{tpu_custom_call.1} parent=11 // pred_check
          %p292 = pneg %p228
        $region42: #{tpu_custom_call.1} parent=11 // pred_check_branch
          %294 = sbr.rel (%p292) target = $region44
        $region43: #{tpu_custom_call.1} parent=11 // pred_region
          _
        $region44: #{tpu_custom_call.1} parent=11 // pred_fallthru
          _
      $region12: #{tpu_custom_call.1} parent=5 // pred_fallthru
        _
      %p295 = scmp.lt.s32.totalorder %s22, 4
      // Predicated region
      $region45: #{tpu_custom_call.1} parent=5 // pred_check
        %p296 = pneg %p295
      $region46: #{tpu_custom_call.1} parent=5 // pred_check_branch
        %298 = sbr.rel (%p296) target = $region48
      $region47: #{tpu_custom_call.1} parent=5 // pred_region
        // Predicated region
        $region49: #{tpu_custom_call.1} parent=47 // pred_check
          %p299 = pneg %p75
        $region50: #{tpu_custom_call.1} parent=47 // pred_check_branch
          %301 = sbr.rel (%p299) target = $region52
        $region51: #{tpu_custom_call.1} parent=47 // pred_region
          %s302 = sand.u32 %s65, 1
          %s303 = scalar_lea.sflag [#allocation6], %s302
          %s304 = sand.u32 %s65, 1
          %s305 = smul.addr %s304, 512
          %s306 = scalar_lea.vmem [#allocation5], %s305
          %s308 = ssub.s32 8192, 8192
          %309 = vsyncadd %s303, %s308
          %s310 = smul.addr %s29, 64
          %s311 = smul.addr %s310, 128
          %s312 = scalar_lea.hbm %s1, %s311
          %s313 = sshll.u32 %s306, 4
          %s314 = int_to_ptr.vmem [resolvable:$true] %s313
          %319 = dma.hbm_to_vmem [thread:$0]  %s312, 8192, %s314, %s303, 128, 128, 8
        $region52: #{tpu_custom_call.1} parent=47 // pred_fallthru
          _
      $region48: #{tpu_custom_call.1} parent=5 // pred_fallthru
        _
      %p320 = scmp.le.s32.totalorder 1, %s22
      %p321 = scmp.lt.s32.totalorder %s22, 5
      %p322 = pnand %p320, %p321
      %p323 = pneg %p322
      // Predicated region
      $region53: #{tpu_custom_call.1} parent=5 // pred_check
        _
      $region54: #{tpu_custom_call.1} parent=5 // pred_check_branch
        %325 = sbr.rel (%p322) target = $region56
      $region55: #{tpu_custom_call.1} parent=5 // pred_region
        %s326 = ssub.s32 %s22, 1
        %s327 = sand.u32 %s68, 1
        %s328 = scalar_lea.sflag [#allocation6], %s327
        %s329 = sand.u32 %s68, 1
        %s330 = smul.addr %s329, 512
        %s331 = scalar_lea.vmem [#allocation5], %s330
        // Predicated region
        $region57: #{tpu_custom_call.1} parent=55 // pred_check
          %p332 = pneg %p81
        $region58: #{tpu_custom_call.1} parent=55 // pred_check_branch
          %334 = sbr.rel (%p332) target = $region60
        $region59: #{tpu_custom_call.1} parent=55 // pred_region
          %335 = dma.done %s328, 8192
        $region60: #{tpu_custom_call.1} parent=55 // pred_fallthru
          _
        %p336 = pneg %p55
        %p337 = pneg %p52
        %s338 = sand.u32 %s68, 1
        %s339 = scalar_lea.sflag [#allocation6], %s338
        %s340 = sand.u32 %s68, 1
        %s341 = smul.addr %s340, 512
        %s342 = scalar_lea.vmem [#allocation5], %s341
        %p343 = pneg %p81
        %p344 = pneg %p78
        %p345 = pneg %p102
        %p346 = pneg %p99
        %p347 = pneg %p123
        %p348 = pneg %p120
        %p349 = pneg %p144
        %p350 = pneg %p141
        %p351 = pneg %p165
        %p352 = pneg %p162
        %p353 = pneg %p186
        %p354 = pneg %p183
        %p355 = pneg %p207
        %p356 = pneg %p204
        %p357 = pneg %p228
        %p358 = pneg %p225
        %p359 = pneg %p256
        %p360 = pneg %p253
        %s361 = sand.u32 %s243, 1
        %s362 = scalar_lea.sflag [#allocation7], %s361
        %s363 = sand.u32 %s243, 1
        %s364 = smul.addr %s363, 256
        %s365 = scalar_lea.vmem [#allocation8], %s364
        %s366 = smul.u32 2, %s32
        %p368 = scmp.eq.s32.totalorder %s32, 0
        // Predicated region
        $region61: #{tpu_custom_call.1} parent=55 // pred_check
          %p369 = pneg %p368
        $region62: #{tpu_custom_call.1} parent=55 // pred_check_branch
          %371 = sbr.rel (%p369) target = $region64
        $region63: #{tpu_custom_call.1} parent=55 // pred_region
          %v372 = vld [vmem:[%s331] sm:$0xff]
          %v373 = vld [vmem:[%s331 + $0x8] sm:$0xff]
          %v374 = vld [vmem:[%s331 + $0x10] sm:$0xff]
          %v375 = vld [vmem:[%s331 + $0x18] sm:$0xff]
          %v376 = vld [vmem:[%s331 + $0x20] sm:$0xff]
          %v377 = vld [vmem:[%s331 + $0x28] sm:$0xff]
          %v378 = vld [vmem:[%s331 + $0x30] sm:$0xff]
          %v379 = vld [vmem:[%s331 + $0x38] sm:$0xff]
          %v380 = vld [vmem:[%s331 + $0x40] sm:$0xff]
          %v381 = vld [vmem:[%s331 + $0x48] sm:$0xff]
          %v382 = vld [vmem:[%s331 + $0x50] sm:$0xff]
          %v383 = vld [vmem:[%s331 + $0x58] sm:$0xff]
          %v384 = vld [vmem:[%s331 + $0x60] sm:$0xff]
          %v385 = vld [vmem:[%s331 + $0x68] sm:$0xff]
          %v386 = vld [vmem:[%s331 + $0x70] sm:$0xff]
          %v387 = vld [vmem:[%s331 + $0x78] sm:$0xff]
          %v388 = vld [vmem:[%s331 + $0x80] sm:$0xff]
          %v389 = vld [vmem:[%s331 + $0x88] sm:$0xff]
          %v390 = vld [vmem:[%s331 + $0x90] sm:$0xff]
          %v391 = vld [vmem:[%s331 + $0x98] sm:$0xff]
          %v392 = vld [vmem:[%s331 + $0xa0] sm:$0xff]
          %v393 = vld [vmem:[%s331 + $0xa8] sm:$0xff]
          %v394 = vld [vmem:[%s331 + $0xb0] sm:$0xff]
          %v395 = vld [vmem:[%s331 + $0xb8] sm:$0xff]
          %v396 = vld [vmem:[%s331 + $0xc0] sm:$0xff]
          %v397 = vld [vmem:[%s331 + $0xc8] sm:$0xff]
          %v398 = vld [vmem:[%s331 + $0xd0] sm:$0xff]
          %v399 = vld [vmem:[%s331 + $0xd8] sm:$0xff]
          %v400 = vld [vmem:[%s331 + $0xe0] sm:$0xff]
          %v401 = vld [vmem:[%s331 + $0xe8] sm:$0xff]
          %v402 = vld [vmem:[%s331 + $0xf0] sm:$0xff]
          %v403 = vld [vmem:[%s331 + $0xf8] sm:$0xff]
          %v404 = vld [vmem:[%s331 + $0x100] sm:$0xff]
          %v405 = vld [vmem:[%s331 + $0x108] sm:$0xff]
          %v406 = vld [vmem:[%s331 + $0x110] sm:$0xff]
          %v407 = vld [vmem:[%s331 + $0x118] sm:$0xff]
          %v408 = vld [vmem:[%s331 + $0x120] sm:$0xff]
          %v409 = vld [vmem:[%s331 + $0x128] sm:$0xff]
          %v410 = vld [vmem:[%s331 + $0x130] sm:$0xff]
          %v411 = vld [vmem:[%s331 + $0x138] sm:$0xff]
          %v412 = vld [vmem:[%s331 + $0x140] sm:$0xff]
          %v413 = vld [vmem:[%s331 + $0x148] sm:$0xff]
          %v414 = vld [vmem:[%s331 + $0x150] sm:$0xff]
          %v415 = vld [vmem:[%s331 + $0x158] sm:$0xff]
          %v416 = vld [vmem:[%s331 + $0x160] sm:$0xff]
          %v417 = vld [vmem:[%s331 + $0x168] sm:$0xff]
          %v418 = vld [vmem:[%s331 + $0x170] sm:$0xff]
          %v419 = vld [vmem:[%s331 + $0x178] sm:$0xff]
          %v420 = vld [vmem:[%s331 + $0x180] sm:$0xff]
          %v421 = vld [vmem:[%s331 + $0x188] sm:$0xff]
          %v422 = vld [vmem:[%s331 + $0x190] sm:$0xff]
          %v423 = vld [vmem:[%s331 + $0x198] sm:$0xff]
          %v424 = vld [vmem:[%s331 + $0x1a0] sm:$0xff]
          %v425 = vld [vmem:[%s331 + $0x1a8] sm:$0xff]
          %v426 = vld [vmem:[%s331 + $0x1b0] sm:$0xff]
          %v427 = vld [vmem:[%s331 + $0x1b8] sm:$0xff]
          %v428 = vld [vmem:[%s331 + $0x1c0] sm:$0xff]
          %v429 = vld [vmem:[%s331 + $0x1c8] sm:$0xff]
          %v430 = vld [vmem:[%s331 + $0x1d0] sm:$0xff]
          %v431 = vld [vmem:[%s331 + $0x1d8] sm:$0xff]
          %v432 = vld [vmem:[%s331 + $0x1e0] sm:$0xff]
          %v433 = vld [vmem:[%s331 + $0x1e8] sm:$0xff]
          %v434 = vld [vmem:[%s331 + $0x1f0] sm:$0xff]
          %v435 = vld [vmem:[%s331 + $0x1f8] sm:$0xff]
          %v436 = vpack.c.bf16 %v373, %v372
          %v437 = vpack.c.bf16 %v375, %v374
          %v438 = vpack.c.bf16 %v377, %v376
          %v439 = vpack.c.bf16 %v379, %v378
          %v440 = vpack.c.bf16 %v381, %v380
          %v441 = vpack.c.bf16 %v383, %v382
          %v442 = vpack.c.bf16 %v385, %v384
          %v443 = vpack.c.bf16 %v387, %v386
          %v444 = vpack.c.bf16 %v389, %v388
          %v445 = vpack.c.bf16 %v391, %v390
          %v446 = vpack.c.bf16 %v393, %v392
          %v447 = vpack.c.bf16 %v395, %v394
          %v448 = vpack.c.bf16 %v397, %v396
          %v449 = vpack.c.bf16 %v399, %v398
          %v450 = vpack.c.bf16 %v401, %v400
          %v451 = vpack.c.bf16 %v403, %v402
          %v452 = vpack.c.bf16 %v405, %v404
          %v453 = vpack.c.bf16 %v407, %v406
          %v454 = vpack.c.bf16 %v409, %v408
          %v455 = vpack.c.bf16 %v411, %v410
          %v456 = vpack.c.bf16 %v413, %v412
          %v457 = vpack.c.bf16 %v415, %v414
          %v458 = vpack.c.bf16 %v417, %v416
          %v459 = vpack.c.bf16 %v419, %v418
          %v460 = vpack.c.bf16 %v421, %v420
          %v461 = vpack.c.bf16 %v423, %v422
          %v462 = vpack.c.bf16 %v425, %v424
          %v463 = vpack.c.bf16 %v427, %v426
          %v464 = vpack.c.bf16 %v429, %v428
          %v465 = vpack.c.bf16 %v431, %v430
          %v466 = vpack.c.bf16 %v433, %v432
          %v467 = vpack.c.bf16 %v435, %v434
          %v468 = vld [vmem:[%s5] sm:$0xf]
          %v469 = vld [vmem:[%s5 + $0x4] sm:$0xf]
          %v470 = vld [vmem:[%s5 + $0x8] sm:$0xf]
          %v471 = vld [vmem:[%s5 + $0xc] sm:$0xf]
          %v472 = vld [vmem:[%s5 + $0x10] sm:$0xf]
          %v473 = vld [vmem:[%s5 + $0x14] sm:$0xf]
          %v474 = vld [vmem:[%s5 + $0x18] sm:$0xf]
          %v475 = vld [vmem:[%s5 + $0x1c] sm:$0xf]
          %v476 = vld [vmem:[%s5 + $0x20] sm:$0xf]
          %v477 = vld [vmem:[%s5 + $0x24] sm:$0xf]
          %v478 = vld [vmem:[%s5 + $0x28] sm:$0xf]
          %v479 = vld [vmem:[%s5 + $0x2c] sm:$0xf]
          %v480 = vld [vmem:[%s5 + $0x30] sm:$0xf]
          %v481 = vld [vmem:[%s5 + $0x34] sm:$0xf]
          %v482 = vld [vmem:[%s5 + $0x38] sm:$0xf]
          %v483 = vld [vmem:[%s5 + $0x3c] sm:$0xf]
          %v484 = vld [vmem:[%s6] sm:$0x1]
          %v486 = vlaneseq
          %v487 = vshrl.u32 %v486, 7
          %v488 = vsub.s32 0, %v487
          %v489 = vrot.slane %v484, %v488
          %v507 = vunpack.c.l.b16 %v468
          %v508 = vunpack.c.l.b16 %v469
          %v509 = vunpack.c.l.b16 %v470
          %v510 = vunpack.c.l.b16 %v471
          %v511 = vunpack.c.l.b16 %v472
          %v512 = vunpack.c.l.b16 %v473
          %v513 = vunpack.c.l.b16 %v474
          %v514 = vunpack.c.l.b16 %v475
          %v515 = vunpack.c.l.b16 %v476
          %v516 = vunpack.c.l.b16 %v477
          %v517 = vunpack.c.l.b16 %v478
          %v518 = vunpack.c.l.b16 %v479
          %v519 = vunpack.c.l.b16 %v480
          %v520 = vunpack.c.l.b16 %v481
          %v521 = vunpack.c.l.b16 %v482
          %v522 = vunpack.c.l.b16 %v483
          %v523 = vpack.c.b16 %v508, %v507
          %v524 = vpack.c.b16 %v510, %v509
          %v525 = vpack.c.b16 %v512, %v511
          %v526 = vpack.c.b16 %v514, %v513
          %v527 = vpack.c.b16 %v516, %v515
          %v528 = vpack.c.b16 %v518, %v517
          %v529 = vpack.c.b16 %v520, %v519
          %v530 = vpack.c.b16 %v522, %v521
          %539 = vmatprep.subr.bf16.mxu0 0
          %540 = vmatpush1.bf16.msra.mxu0 %v523
          %541 = vmatprep.subr.bf16.mxu0 0
          %542 = vmatpush1.bf16.msra.mxu0 %v524
          %543 = vmatprep.subr.bf16.mxu0 0
          %544 = vmatpush1.bf16.msra.mxu0 %v525
          %545 = vmatprep.subr.bf16.mxu0 0
          %546 = vmatpush1.bf16.msra.mxu0 %v526
          %547 = vmatprep.subr.bf16.mxu0 0
          %548 = vmatpush1.bf16.msra.mxu0 %v527
          %549 = vmatprep.subr.bf16.mxu0 0
          %550 = vmatpush1.bf16.msra.mxu0 %v528
          %551 = vmatprep.subr.bf16.mxu0 0
          %552 = vmatpush1.bf16.msra.mxu0 %v529
          %553 = vmatprep.subr.bf16.mxu0 0
          %554 = vmatpush1.bf16.msra.mxu0 %v530
          %555 = vmatprep.subr.bf16.mxu0 0
          %556 = vmatpush1.bf16.msra.mxu0 0
          %557 = vmatprep.subr.bf16.mxu0 0
          %558 = vmatpush1.bf16.msra.mxu0 0
          %559 = vmatprep.subr.bf16.mxu0 0
          %560 = vmatpush1.bf16.msra.mxu0 0
          %561 = vmatprep.subr.bf16.mxu0 0
          %562 = vmatpush1.bf16.msra.mxu0 0
          %563 = vmatprep.subr.bf16.mxu0 0
          %564 = vmatpush1.bf16.msra.mxu0 0
          %565 = vmatprep.subr.bf16.mxu0 0
          %566 = vmatpush1.bf16.msra.mxu0 0
          %567 = vmatprep.subr.bf16.mxu0 0
          %568 = vmatpush1.bf16.msra.mxu0 0
          %569 = vmatprep.subr.bf16.mxu0 0
          %570 = vmatpush1.bf16.msra.mxu0 0
          %571 = vmatprep.mubr.bf16.mxu0 0
          %572 = vmatmul.mubr.bf16.gmra.mrb[0].mxu0 %v436
          %v573 = vpop.f32.mrb[0].mxu0
          %v574 = vadd.f32 %v489, %v573
          %v575 = vpop.f32.mrb[0].mxu0
          %v576 = vpop.f32.mrb[0].mxu0
          %v577 = vadd.f32 %v489, %v576
          %v578 = vpop.f32.mrb[0].mxu0
          %579 = vmatprep.mubr.bf16.mxu0 0
          %580 = vmatmul.mubr.bf16.gmra.mrb[0].mxu0 %v437
          %v581 = vpop.f32.mrb[0].mxu0
          %v582 = vadd.f32 %v489, %v581
          %v583 = vpop.f32.mrb[0].mxu0
          %v584 = vpop.f32.mrb[0].mxu0
          %v585 = vadd.f32 %v489, %v584
          %v586 = vpop.f32.mrb[0].mxu0
          %587 = vmatprep.mubr.bf16.mxu0 0
          %588 = vmatmul.mubr.bf16.gmra.mrb[0].mxu0 %v438
          %v589 = vpop.f32.mrb[0].mxu0
          %v590 = vadd.f32 %v489, %v589
          %v591 = vpop.f32.mrb[0].mxu0
          %v592 = vpop.f32.mrb[0].mxu0
          %v593 = vadd.f32 %v489, %v592
          %v594 = vpop.f32.mrb[0].mxu0
          %595 = vmatprep.mubr.bf16.mxu0 0
          %596 = vmatmul.mubr.bf16.gmra.mrb[0].mxu0 %v439
          %v597 = vpop.f32.mrb[0].mxu0
          %v598 = vadd.f32 %v489, %v597
          %v599 = vpop.f32.mrb[0].mxu0
          %v600 = vpop.f32.mrb[0].mxu0
          %v601 = vadd.f32 %v489, %v600
          %v602 = vpop.f32.mrb[0].mxu0
          %603 = vmatprep.mubr.bf16.mxu0 0
          %604 = vmatmul.mubr.bf16.gmra.mrb[0].mxu0 %v440
          %v605 = vpop.f32.mrb[0].mxu0
          %v606 = vadd.f32 %v489, %v605
          %v607 = vpop.f32.mrb[0].mxu0
          %v608 = vpop.f32.mrb[0].mxu0
          %v609 = vadd.f32 %v489, %v608
          %v610 = vpop.f32.mrb[0].mxu0
          %611 = vmatprep.mubr.bf16.mxu0 0
          %612 = vmatmul.mubr.bf16.gmra.mrb[0].mxu0 %v441
          %v613 = vpop.f32.mrb[0].mxu0
          %v614 = vadd.f32 %v489, %v613
          %v615 = vpop.f32.mrb[0].mxu0
          %v616 = vpop.f32.mrb[0].mxu0
          %v617 = vadd.f32 %v489, %v616
          %v618 = vpop.f32.mrb[0].mxu0
          %619 = vmatprep.mubr.bf16.mxu0 0
          %620 = vmatmul.mubr.bf16.gmra.mrb[0].mxu0 %v442
          %v621 = vpop.f32.mrb[0].mxu0
          %v622 = vadd.f32 %v489, %v621
          %v623 = vpop.f32.mrb[0].mxu0
          %v624 = vpop.f32.mrb[0].mxu0
          %v625 = vadd.f32 %v489, %v624
          %v626 = vpop.f32.mrb[0].mxu0
          %627 = vmatprep.mubr.bf16.mxu0 0
          %628 = vmatmul.mubr.bf16.gmra.mrb[0].mxu0 %v443
          %v629 = vpop.f32.mrb[0].mxu0
          %v630 = vadd.f32 %v489, %v629
          %v631 = vpop.f32.mrb[0].mxu0
          %v632 = vpop.f32.mrb[0].mxu0
          %v633 = vadd.f32 %v489, %v632
          %v634 = vpop.f32.mrb[0].mxu0
          %635 = vmatprep.mubr.bf16.mxu0 0
          %636 = vmatmul.mubr.bf16.gmra.mrb[0].mxu0 %v444
          %v637 = vpop.f32.mrb[0].mxu0
          %v638 = vadd.f32 %v489, %v637
          %v639 = vpop.f32.mrb[0].mxu0
          %v640 = vpop.f32.mrb[0].mxu0
          %v641 = vadd.f32 %v489, %v640
          %v642 = vpop.f32.mrb[0].mxu0
          %643 = vmatprep.mubr.bf16.mxu0 0
          %644 = vmatmul.mubr.bf16.gmra.mrb[0].mxu0 %v445
          %v645 = vpop.f32.mrb[0].mxu0
          %v646 = vadd.f32 %v489, %v645
          %v647 = vpop.f32.mrb[0].mxu0
          %v648 = vpop.f32.mrb[0].mxu0
          %v649 = vadd.f32 %v489, %v648
          %v650 = vpop.f32.mrb[0].mxu0
          %651 = vmatprep.mubr.bf16.mxu0 0
          %652 = vmatmul.mubr.bf16.gmra.mrb[0].mxu0 %v446
          %v653 = vpop.f32.mrb[0].mxu0
          %v654 = vadd.f32 %v489, %v653
          %v655 = vpop.f32.mrb[0].mxu0
          %v656 = vpop.f32.mrb[0].mxu0
          %v657 = vadd.f32 %v489, %v656
          %v658 = vpop.f32.mrb[0].mxu0
          %659 = vmatprep.mubr.bf16.mxu0 0
          %660 = vmatmul.mubr.bf16.gmra.mrb[0].mxu0 %v447
          %v661 = vpop.f32.mrb[0].mxu0
          %v662 = vadd.f32 %v489, %v661
          %v663 = vpop.f32.mrb[0].mxu0
          %v664 = vpop.f32.mrb[0].mxu0
          %v665 = vadd.f32 %v489, %v664
          %v666 = vpop.f32.mrb[0].mxu0
          %667 = vmatprep.mubr.bf16.mxu0 0
          %668 = vmatmul.mubr.bf16.gmra.mrb[0].mxu0 %v448
          %v669 = vpop.f32.mrb[0].mxu0
          %v670 = vadd.f32 %v489, %v669
          %v671 = vpop.f32.mrb[0].mxu0
          %v672 = vpop.f32.mrb[0].mxu0
          %v673 = vadd.f32 %v489, %v672
          %v674 = vpop.f32.mrb[0].mxu0
          %675 = vmatprep.mubr.bf16.mxu0 0
          %676 = vmatmul.mubr.bf16.gmra.mrb[0].mxu0 %v449
          %v677 = vpop.f32.mrb[0].mxu0
          %v678 = vadd.f32 %v489, %v677
          %v679 = vpop.f32.mrb[0].mxu0
          %v680 = vpop.f32.mrb[0].mxu0
          %v681 = vadd.f32 %v489, %v680
          %v682 = vpop.f32.mrb[0].mxu0
          %683 = vmatprep.mubr.bf16.mxu0 0
          %684 = vmatmul.mubr.bf16.gmra.mrb[0].mxu0 %v450
          %v685 = vpop.f32.mrb[0].mxu0
          %v686 = vadd.f32 %v489, %v685
          %v687 = vpop.f32.mrb[0].mxu0
          %v688 = vpop.f32.mrb[0].mxu0
          %v689 = vadd.f32 %v489, %v688
          %v690 = vpop.f32.mrb[0].mxu0
          %691 = vmatprep.mubr.bf16.mxu0 0
          %692 = vmatmul.mubr.bf16.gmra.mrb[0].mxu0 %v451
          %v693 = vpop.f32.mrb[0].mxu0
          %v694 = vadd.f32 %v489, %v693
          %v695 = vpop.f32.mrb[0].mxu0
          %v696 = vpop.f32.mrb[0].mxu0
          %v697 = vadd.f32 %v489, %v696
          %v698 = vpop.f32.mrb[0].mxu0
          %699 = vmatprep.mubr.bf16.mxu0 0
          %700 = vmatmul.mubr.bf16.gmra.mrb[0].mxu0 %v452
          %v701 = vpop.f32.mrb[0].mxu0
          %v702 = vadd.f32 %v489, %v701
          %v703 = vpop.f32.mrb[0].mxu0
          %v704 = vpop.f32.mrb[0].mxu0
          %v705 = vadd.f32 %v489, %v704
          %v706 = vpop.f32.mrb[0].mxu0
          %707 = vmatprep.mubr.bf16.mxu0 0
          %708 = vmatmul.mubr.bf16.gmra.mrb[0].mxu0 %v453
          %v709 = vpop.f32.mrb[0].mxu0
          %v710 = vadd.f32 %v489, %v709
          %v711 = vpop.f32.mrb[0].mxu0
          %v712 = vpop.f32.mrb[0].mxu0
          %v713 = vadd.f32 %v489, %v712
          %v714 = vpop.f32.mrb[0].mxu0
          %715 = vmatprep.mubr.bf16.mxu0 0
          %716 = vmatmul.mubr.bf16.gmra.mrb[0].mxu0 %v454
          %v717 = vpop.f32.mrb[0].mxu0
          %v718 = vadd.f32 %v489, %v717
          %v719 = vpop.f32.mrb[0].mxu0
          %v720 = vpop.f32.mrb[0].mxu0
          %v721 = vadd.f32 %v489, %v720
          %v722 = vpop.f32.mrb[0].mxu0
          %723 = vmatprep.mubr.bf16.mxu0 0
          %724 = vmatmul.mubr.bf16.gmra.mrb[0].mxu0 %v455
          %v725 = vpop.f32.mrb[0].mxu0
          %v726 = vadd.f32 %v489, %v725
          %v727 = vpop.f32.mrb[0].mxu0
          %v728 = vpop.f32.mrb[0].mxu0
          %v729 = vadd.f32 %v489, %v728
          %v730 = vpop.f32.mrb[0].mxu0
          %731 = vmatprep.mubr.bf16.mxu0 0
          %732 = vmatmul.mubr.bf16.gmra.mrb[0].mxu0 %v456
          %v733 = vpop.f32.mrb[0].mxu0
          %v734 = vadd.f32 %v489, %v733
          %v735 = vpop.f32.mrb[0].mxu0
          %v736 = vpop.f32.mrb[0].mxu0
          %v737 = vadd.f32 %v489, %v736
          %v738 = vpop.f32.mrb[0].mxu0
          %739 = vmatprep.mubr.bf16.mxu0 0
          %740 = vmatmul.mubr.bf16.gmra.mrb[0].mxu0 %v457
          %v741 = vpop.f32.mrb[0].mxu0
          %v742 = vadd.f32 %v489, %v741
          %v743 = vpop.f32.mrb[0].mxu0
          %v744 = vpop.f32.mrb[0].mxu0
          %v745 = vadd.f32 %v489, %v744
          %v746 = vpop.f32.mrb[0].mxu0
          %747 = vmatprep.mubr.bf16.mxu0 0
          %748 = vmatmul.mubr.bf16.gmra.mrb[0].mxu0 %v458
          %v749 = vpop.f32.mrb[0].mxu0
          %v750 = vadd.f32 %v489, %v749
          %v751 = vpop.f32.mrb[0].mxu0
          %v752 = vpop.f32.mrb[0].mxu0
          %v753 = vadd.f32 %v489, %v752
          %v754 = vpop.f32.mrb[0].mxu0
          %755 = vmatprep.mubr.bf16.mxu0 0
          %756 = vmatmul.mubr.bf16.gmra.mrb[0].mxu0 %v459
          %v757 = vpop.f32.mrb[0].mxu0
          %v758 = vadd.f32 %v489, %v757
          %v759 = vpop.f32.mrb[0].mxu0
          %v760 = vpop.f32.mrb[0].mxu0
          %v761 = vadd.f32 %v489, %v760
          %v762 = vpop.f32.mrb[0].mxu0
          %763 = vmatprep.mubr.bf16.mxu0 0
          %764 = vmatmul.mubr.bf16.gmra.mrb[0].mxu0 %v460
          %v765 = vpop.f32.mrb[0].mxu0
          %v766 = vadd.f32 %v489, %v765
          %v767 = vpop.f32.mrb[0].mxu0
          %v768 = vpop.f32.mrb[0].mxu0
          %v769 = vadd.f32 %v489, %v768
          %v770 = vpop.f32.mrb[0].mxu0
          %771 = vmatprep.mubr.bf16.mxu0 0
          %772 = vmatmul.mubr.bf16.gmra.mrb[0].mxu0 %v461
          %v773 = vpop.f32.mrb[0].mxu0
          %v774 = vadd.f32 %v489, %v773
          %v775 = vpop.f32.mrb[0].mxu0
          %v776 = vpop.f32.mrb[0].mxu0
          %v777 = vadd.f32 %v489, %v776
          %v778 = vpop.f32.mrb[0].mxu0
          %779 = vmatprep.mubr.bf16.mxu0 0
          %780 = vmatmul.mubr.bf16.gmra.mrb[0].mxu0 %v462
          %v781 = vpop.f32.mrb[0].mxu0
          %v782 = vadd.f32 %v489, %v781
          %v783 = vpop.f32.mrb[0].mxu0
          %v784 = vpop.f32.mrb[0].mxu0
          %v785 = vadd.f32 %v489, %v784
          %v786 = vpop.f32.mrb[0].mxu0
          %787 = vmatprep.mubr.bf16.mxu0 0
          %788 = vmatmul.mubr.bf16.gmra.mrb[0].mxu0 %v463
          %v789 = vpop.f32.mrb[0].mxu0
          %v790 = vadd.f32 %v489, %v789
          %v791 = vpop.f32.mrb[0].mxu0
          %v792 = vpop.f32.mrb[0].mxu0
          %v793 = vadd.f32 %v489, %v792
          %v794 = vpop.f32.mrb[0].mxu0
          %795 = vmatprep.mubr.bf16.mxu0 0
          %796 = vmatmul.mubr.bf16.gmra.mrb[0].mxu0 %v464
          %v797 = vpop.f32.mrb[0].mxu0
          %v798 = vadd.f32 %v489, %v797
          %v799 = vpop.f32.mrb[0].mxu0
          %v800 = vpop.f32.mrb[0].mxu0
          %v801 = vadd.f32 %v489, %v800
          %v802 = vpop.f32.mrb[0].mxu0
          %803 = vmatprep.mubr.bf16.mxu0 0
          %804 = vmatmul.mubr.bf16.gmra.mrb[0].mxu0 %v465
          %v805 = vpop.f32.mrb[0].mxu0
          %v806 = vadd.f32 %v489, %v805
          %v807 = vpop.f32.mrb[0].mxu0
          %v808 = vpop.f32.mrb[0].mxu0
          %v809 = vadd.f32 %v489, %v808
          %v810 = vpop.f32.mrb[0].mxu0
          %811 = vmatprep.mubr.bf16.mxu0 0
          %812 = vmatmul.mubr.bf16.gmra.mrb[0].mxu0 %v466
          %v813 = vpop.f32.mrb[0].mxu0
          %v814 = vadd.f32 %v489, %v813
          %v815 = vpop.f32.mrb[0].mxu0
          %v816 = vpop.f32.mrb[0].mxu0
          %v817 = vadd.f32 %v489, %v816
          %v818 = vpop.f32.mrb[0].mxu0
          %819 = vmatprep.mubr.bf16.mxu0 0
          %820 = vmatmul.mubr.bf16.gmra.mrb[0].mxu0 %v467
          %v821 = vpop.f32.mrb[0].mxu0
          %v822 = vadd.f32 %v489, %v821
          %v823 = vpop.f32.mrb[0].mxu0
          %v824 = vpop.f32.mrb[0].mxu0
          %v825 = vadd.f32 %v489, %v824
          %v826 = vpop.f32.mrb[0].mxu0
          %827 = vdwg.mxu0
          %v828 = vpack.c.bf16 %v577, %v574
          %v829 = vpack.c.bf16 %v585, %v582
          %v830 = vpack.c.bf16 %v593, %v590
          %v831 = vpack.c.bf16 %v601, %v598
          %v832 = vpack.c.bf16 %v609, %v606
          %v833 = vpack.c.bf16 %v617, %v614
          %v834 = vpack.c.bf16 %v625, %v622
          %v835 = vpack.c.bf16 %v633, %v630
          %v836 = vpack.c.bf16 %v641, %v638
          %v837 = vpack.c.bf16 %v649, %v646
          %v838 = vpack.c.bf16 %v657, %v654
          %v839 = vpack.c.bf16 %v665, %v662
          %v840 = vpack.c.bf16 %v673, %v670
          %v841 = vpack.c.bf16 %v681, %v678
          %v842 = vpack.c.bf16 %v689, %v686
          %v843 = vpack.c.bf16 %v697, %v694
          %v844 = vpack.c.bf16 %v705, %v702
          %v845 = vpack.c.bf16 %v713, %v710
          %v846 = vpack.c.bf16 %v721, %v718
          %v847 = vpack.c.bf16 %v729, %v726
          %v848 = vpack.c.bf16 %v737, %v734
          %v849 = vpack.c.bf16 %v745, %v742
          %v850 = vpack.c.bf16 %v753, %v750
          %v851 = vpack.c.bf16 %v761, %v758
          %v852 = vpack.c.bf16 %v769, %v766
          %v853 = vpack.c.bf16 %v777, %v774
          %v854 = vpack.c.bf16 %v785, %v782
          %v855 = vpack.c.bf16 %v793, %v790
          %v856 = vpack.c.bf16 %v801, %v798
          %v857 = vpack.c.bf16 %v809, %v806
          %v858 = vpack.c.bf16 %v817, %v814
          %v859 = vpack.c.bf16 %v825, %v822
          %vm860 = vcmask 130048
          %861 = vst.msk [vmem:[#allocation2] sm:$0xff] %vm860, %v828
          %862 = vst.msk [vmem:[#allocation2 + $0x8] sm:$0xff] %vm860, %v829
          %863 = vst.msk [vmem:[#allocation2 + $0x10] sm:$0xff] %vm860, %v830
          %864 = vst.msk [vmem:[#allocation2 + $0x18] sm:$0xff] %vm860, %v831
          %865 = vst.msk [vmem:[#allocation2 + $0x20] sm:$0xff] %vm860, %v832
          %866 = vst.msk [vmem:[#allocation2 + $0x28] sm:$0xff] %vm860, %v833
          %867 = vst.msk [vmem:[#allocation2 + $0x30] sm:$0xff] %vm860, %v834
          %868 = vst.msk [vmem:[#allocation2 + $0x38] sm:$0xff] %vm860, %v835
          %869 = vst.msk [vmem:[#allocation2 + $0x40] sm:$0xff] %vm860, %v836
          %870 = vst.msk [vmem:[#allocation2 + $0x48] sm:$0xff] %vm860, %v837
          %871 = vst.msk [vmem:[#allocation2 + $0x50] sm:$0xff] %vm860, %v838
          %872 = vst.msk [vmem:[#allocation2 + $0x58] sm:$0xff] %vm860, %v839
          %873 = vst.msk [vmem:[#allocation2 + $0x60] sm:$0xff] %vm860, %v840
          %874 = vst.msk [vmem:[#allocation2 + $0x68] sm:$0xff] %vm860, %v841
          %875 = vst.msk [vmem:[#allocation2 + $0x70] sm:$0xff] %vm860, %v842
          %876 = vst.msk [vmem:[#allocation2 + $0x78] sm:$0xff] %vm860, %v843
          %877 = vst.msk [vmem:[#allocation2 + $0x80] sm:$0xff] %vm860, %v844
          %878 = vst.msk [vmem:[#allocation2 + $0x88] sm:$0xff] %vm860, %v845
          %879 = vst.msk [vmem:[#allocation2 + $0x90] sm:$0xff] %vm860, %v846
          %880 = vst.msk [vmem:[#allocation2 + $0x98] sm:$0xff] %vm860, %v847
          %881 = vst.msk [vmem:[#allocation2 + $0xa0] sm:$0xff] %vm860, %v848
          %882 = vst.msk [vmem:[#allocation2 + $0xa8] sm:$0xff] %vm860, %v849
          %883 = vst.msk [vmem:[#allocation2 + $0xb0] sm:$0xff] %vm860, %v850
          %884 = vst.msk [vmem:[#allocation2 + $0xb8] sm:$0xff] %vm860, %v851
          %885 = vst.msk [vmem:[#allocation2 + $0xc0] sm:$0xff] %vm860, %v852
          %886 = vst.msk [vmem:[#allocation2 + $0xc8] sm:$0xff] %vm860, %v853
          %887 = vst.msk [vmem:[#allocation2 + $0xd0] sm:$0xff] %vm860, %v854
          %888 = vst.msk [vmem:[#allocation2 + $0xd8] sm:$0xff] %vm860, %v855
          %889 = vst.msk [vmem:[#allocation2 + $0xe0] sm:$0xff] %vm860, %v856
          %890 = vst.msk [vmem:[#allocation2 + $0xe8] sm:$0xff] %vm860, %v857
          %891 = vst.msk [vmem:[#allocation2 + $0xf0] sm:$0xff] %vm860, %v858
          %892 = vst.msk [vmem:[#allocation2 + $0xf8] sm:$0xff] %vm860, %v859
          %v893 = vld [vmem:[%s7] sm:$0xf]
          %v894 = vld [vmem:[%s7 + $0x4] sm:$0xf]
          %v895 = vld [vmem:[%s7 + $0x8] sm:$0xf]
          %v896 = vld [vmem:[%s7 + $0xc] sm:$0xf]
          %v897 = vld [vmem:[%s7 + $0x10] sm:$0xf]
          %v898 = vld [vmem:[%s7 + $0x14] sm:$0xf]
          %v899 = vld [vmem:[%s7 + $0x18] sm:$0xf]
          %v900 = vld [vmem:[%s7 + $0x1c] sm:$0xf]
          %v901 = vld [vmem:[%s7 + $0x20] sm:$0xf]
          %v902 = vld [vmem:[%s7 + $0x24] sm:$0xf]
          %v903 = vld [vmem:[%s7 + $0x28] sm:$0xf]
          %v904 = vld [vmem:[%s7 + $0x2c] sm:$0xf]
          %v905 = vld [vmem:[%s7 + $0x30] sm:$0xf]
          %v906 = vld [vmem:[%s7 + $0x34] sm:$0xf]
          %v907 = vld [vmem:[%s7 + $0x38] sm:$0xf]
          %v908 = vld [vmem:[%s7 + $0x3c] sm:$0xf]
          %v909 = vld [vmem:[%s8] sm:$0x1]
          %v911 = vlaneseq
          %v912 = vshrl.u32 %v911, 7
          %v913 = vsub.s32 0, %v912
          %v914 = vrot.slane %v909, %v913
          %v932 = vunpack.c.l.b16 %v893
          %v933 = vunpack.c.l.b16 %v894
          %v934 = vunpack.c.l.b16 %v895
          %v935 = vunpack.c.l.b16 %v896
          %v936 = vunpack.c.l.b16 %v897
          %v937 = vunpack.c.l.b16 %v898
          %v938 = vunpack.c.l.b16 %v899
          %v939 = vunpack.c.l.b16 %v900
          %v940 = vunpack.c.l.b16 %v901
          %v941 = vunpack.c.l.b16 %v902
          %v942 = vunpack.c.l.b16 %v903
          %v943 = vunpack.c.l.b16 %v904
          %v944 = vunpack.c.l.b16 %v905
          %v945 = vunpack.c.l.b16 %v906
          %v946 = vunpack.c.l.b16 %v907
          %v947 = vunpack.c.l.b16 %v908
          %v948 = vpack.c.b16 %v933, %v932
          %v949 = vpack.c.b16 %v935, %v934
          %v950 = vpack.c.b16 %v937, %v936
          %v951 = vpack.c.b16 %v939, %v938
          %v952 = vpack.c.b16 %v941, %v940
          %v953 = vpack.c.b16 %v943, %v942
          %v954 = vpack.c.b16 %v945, %v944
          %v955 = vpack.c.b16 %v947, %v946
          %964 = vmatprep.subr.bf16.mxu0 0
          %965 = vmatpush1.bf16.msra.mxu0 %v948
          %966 = vmatprep.subr.bf16.mxu0 0
          %967 = vmatpush1.bf16.msra.mxu0 %v949
          %968 = vmatprep.subr.bf16.mxu0 0
          %969 = vmatpush1.bf16.msra.mxu0 %v950
          %970 = vmatprep.subr.bf16.mxu0 0
          %971 = vmatpush1.bf16.msra.mxu0 %v951
          %972 = vmatprep.subr.bf16.mxu0 0
          %973 = vmatpush1.bf16.msra.mxu0 %v952
          %974 = vmatprep.subr.bf16.mxu0 0
          %975 = vmatpush1.bf16.msra.mxu0 %v953
          %976 = vmatprep.subr.bf16.mxu0 0
          %977 = vmatpush1.bf16.msra.mxu0 %v954
          %978 = vmatprep.subr.bf16.mxu0 0
          %979 = vmatpush1.bf16.msra.mxu0 %v955
          %980 = vmatprep.subr.bf16.mxu0 0
          %981 = vmatpush1.bf16.msra.mxu0 0
          %982 = vmatprep.subr.bf16.mxu0 0
          %983 = vmatpush1.bf16.msra.mxu0 0
          %984 = vmatprep.subr.bf16.mxu0 0
          %985 = vmatpush1.bf16.msra.mxu0 0
          %986 = vmatprep.subr.bf16.mxu0 0
          %987 = vmatpush1.bf16.msra.mxu0 0
          %988 = vmatprep.subr.bf16.mxu0 0
          %989 = vmatpush1.bf16.msra.mxu0 0
          %990 = vmatprep.subr.bf16.mxu0 0
          %991 = vmatpush1.bf16.msra.mxu0 0
          %992 = vmatprep.subr.bf16.mxu0 0
          %993 = vmatpush1.bf16.msra.mxu0 0
          %994 = vmatprep.subr.bf16.mxu0 0
          %995 = vmatpush1.bf16.msra.mxu0 0
          %996 = vmatprep.mubr.bf16.mxu0 0
          %997 = vmatmul.mubr.bf16.gmra.mrb[0].mxu0 %v436
          %v998 = vpop.f32.mrb[0].mxu0
          %v999 = vadd.f32 %v914, %v998
          %v1000 = vpop.f32.mrb[0].mxu0
          %v1001 = vpop.f32.mrb[0].mxu0
          %v1002 = vadd.f32 %v914, %v1001
          %v1003 = vpop.f32.mrb[0].mxu0
          %1004 = vmatprep.mubr.bf16.mxu0 0
          %1005 = vmatmul.mubr.bf16.gmra.mrb[0].mxu0 %v437
          %v1006 = vpop.f32.mrb[0].mxu0
          %v1007 = vadd.f32 %v914, %v1006
          %v1008 = vpop.f32.mrb[0].mxu0
          %v1009 = vpop.f32.mrb[0].mxu0
          %v1010 = vadd.f32 %v914, %v1009
          %v1011 = vpop.f32.mrb[0].mxu0
          %1012 = vmatprep.mubr.bf16.mxu0 0
          %1013 = vmatmul.mubr.bf16.gmra.mrb[0].mxu0 %v438
          %v1014 = vpop.f32.mrb[0].mxu0
          %v1015 = vadd.f32 %v914, %v1014
          %v1016 = vpop.f32.mrb[0].mxu0
          %v1017 = vpop.f32.mrb[0].mxu0
          %v1018 = vadd.f32 %v914, %v1017
          %v1019 = vpop.f32.mrb[0].mxu0
          %1020 = vmatprep.mubr.bf16.mxu0 0
          %1021 = vmatmul.mubr.bf16.gmra.mrb[0].mxu0 %v439
          %v1022 = vpop.f32.mrb[0].mxu0
          %v1023 = vadd.f32 %v914, %v1022
          %v1024 = vpop.f32.mrb[0].mxu0
          %v1025 = vpop.f32.mrb[0].mxu0
          %v1026 = vadd.f32 %v914, %v1025
          %v1027 = vpop.f32.mrb[0].mxu0
          %1028 = vmatprep.mubr.bf16.mxu0 0
          %1029 = vmatmul.mubr.bf16.gmra.mrb[0].mxu0 %v440
          %v1030 = vpop.f32.mrb[0].mxu0
          %v1031 = vadd.f32 %v914, %v1030
          %v1032 = vpop.f32.mrb[0].mxu0
          %v1033 = vpop.f32.mrb[0].mxu0
          %v1034 = vadd.f32 %v914, %v1033
          %v1035 = vpop.f32.mrb[0].mxu0
          %1036 = vmatprep.mubr.bf16.mxu0 0
          %1037 = vmatmul.mubr.bf16.gmra.mrb[0].mxu0 %v441
          %v1038 = vpop.f32.mrb[0].mxu0
          %v1039 = vadd.f32 %v914, %v1038
          %v1040 = vpop.f32.mrb[0].mxu0
          %v1041 = vpop.f32.mrb[0].mxu0
          %v1042 = vadd.f32 %v914, %v1041
          %v1043 = vpop.f32.mrb[0].mxu0
          %1044 = vmatprep.mubr.bf16.mxu0 0
          %1045 = vmatmul.mubr.bf16.gmra.mrb[0].mxu0 %v442
          %v1046 = vpop.f32.mrb[0].mxu0
          %v1047 = vadd.f32 %v914, %v1046
          %v1048 = vpop.f32.mrb[0].mxu0
          %v1049 = vpop.f32.mrb[0].mxu0
          %v1050 = vadd.f32 %v914, %v1049
          %v1051 = vpop.f32.mrb[0].mxu0
          %1052 = vmatprep.mubr.bf16.mxu0 0
          %1053 = vmatmul.mubr.bf16.gmra.mrb[0].mxu0 %v443
          %v1054 = vpop.f32.mrb[0].mxu0
          %v1055 = vadd.f32 %v914, %v1054
          %v1056 = vpop.f32.mrb[0].mxu0
          %v1057 = vpop.f32.mrb[0].mxu0
          %v1058 = vadd.f32 %v914, %v1057
          %v1059 = vpop.f32.mrb[0].mxu0
          %1060 = vmatprep.mubr.bf16.mxu0 0
          %1061 = vmatmul.mubr.bf16.gmra.mrb[0].mxu0 %v444
          %v1062 = vpop.f32.mrb[0].mxu0
          %v1063 = vadd.f32 %v914, %v1062
          %v1064 = vpop.f32.mrb[0].mxu0
          %v1065 = vpop.f32.mrb[0].mxu0
          %v1066 = vadd.f32 %v914, %v1065
          %v1067 = vpop.f32.mrb[0].mxu0
          %1068 = vmatprep.mubr.bf16.mxu0 0
          %1069 = vmatmul.mubr.bf16.gmra.mrb[0].mxu0 %v445
          %v1070 = vpop.f32.mrb[0].mxu0
          %v1071 = vadd.f32 %v914, %v1070
          %v1072 = vpop.f32.mrb[0].mxu0
          %v1073 = vpop.f32.mrb[0].mxu0
          %v1074 = vadd.f32 %v914, %v1073
          %v1075 = vpop.f32.mrb[0].mxu0
          %1076 = vmatprep.mubr.bf16.mxu0 0
          %1077 = vmatmul.mubr.bf16.gmra.mrb[0].mxu0 %v446
          %v1078 = vpop.f32.mrb[0].mxu0
          %v1079 = vadd.f32 %v914, %v1078
          %v1080 = vpop.f32.mrb[0].mxu0
          %v1081 = vpop.f32.mrb[0].mxu0
          %v1082 = vadd.f32 %v914, %v1081
          %v1083 = vpop.f32.mrb[0].mxu0
          %1084 = vmatprep.mubr.bf16.mxu0 0
          %1085 = vmatmul.mubr.bf16.gmra.mrb[0].mxu0 %v447
          %v1086 = vpop.f32.mrb[0].mxu0
          %v1087 = vadd.f32 %v914, %v1086
          %v1088 = vpop.f32.mrb[0].mxu0
          %v1089 = vpop.f32.mrb[0].mxu0
          %v1090 = vadd.f32 %v914, %v1089
          %v1091 = vpop.f32.mrb[0].mxu0
          %1092 = vmatprep.mubr.bf16.mxu0 0
          %1093 = vmatmul.mubr.bf16.gmra.mrb[0].mxu0 %v448
          %v1094 = vpop.f32.mrb[0].mxu0
          %v1095 = vadd.f32 %v914, %v1094
          %v1096 = vpop.f32.mrb[0].mxu0
          %v1097 = vpop.f32.mrb[0].mxu0
          %v1098 = vadd.f32 %v914, %v1097
          %v1099 = vpop.f32.mrb[0].mxu0
          %1100 = vmatprep.mubr.bf16.mxu0 0
          %1101 = vmatmul.mubr.bf16.gmra.mrb[0].mxu0 %v449
          %v1102 = vpop.f32.mrb[0].mxu0
          %v1103 = vadd.f32 %v914, %v1102
          %v1104 = vpop.f32.mrb[0].mxu0
          %v1105 = vpop.f32.mrb[0].mxu0
          %v1106 = vadd.f32 %v914, %v1105
          %v1107 = vpop.f32.mrb[0].mxu0
          %1108 = vmatprep.mubr.bf16.mxu0 0
          %1109 = vmatmul.mubr.bf16.gmra.mrb[0].mxu0 %v450
          %v1110 = vpop.f32.mrb[0].mxu0
          %v1111 = vadd.f32 %v914, %v1110
          %v1112 = vpop.f32.mrb[0].mxu0
          %v1113 = vpop.f32.mrb[0].mxu0
          %v1114 = vadd.f32 %v914, %v1113
          %v1115 = vpop.f32.mrb[0].mxu0
          %1116 = vmatprep.mubr.bf16.mxu0 0
          %1117 = vmatmul.mubr.bf16.gmra.mrb[0].mxu0 %v451
          %v1118 = vpop.f32.mrb[0].mxu0
          %v1119 = vadd.f32 %v914, %v1118
          %v1120 = vpop.f32.mrb[0].mxu0
          %v1121 = vpop.f32.mrb[0].mxu0
          %v1122 = vadd.f32 %v914, %v1121
          %v1123 = vpop.f32.mrb[0].mxu0
          %1124 = vmatprep.mubr.bf16.mxu0 0
          %1125 = vmatmul.mubr.bf16.gmra.mrb[0].mxu0 %v452
          %v1126 = vpop.f32.mrb[0].mxu0
          %v1127 = vadd.f32 %v914, %v1126
          %v1128 = vpop.f32.mrb[0].mxu0
          %v1129 = vpop.f32.mrb[0].mxu0
          %v1130 = vadd.f32 %v914, %v1129
          %v1131 = vpop.f32.mrb[0].mxu0
          %1132 = vmatprep.mubr.bf16.mxu0 0
          %1133 = vmatmul.mubr.bf16.gmra.mrb[0].mxu0 %v453
          %v1134 = vpop.f32.mrb[0].mxu0
          %v1135 = vadd.f32 %v914, %v1134
          %v1136 = vpop.f32.mrb[0].mxu0
          %v1137 = vpop.f32.mrb[0].mxu0
          %v1138 = vadd.f32 %v914, %v1137
          %v1139 = vpop.f32.mrb[0].mxu0
          %1140 = vmatprep.mubr.bf16.mxu0 0
          %1141 = vmatmul.mubr.bf16.gmra.mrb[0].mxu0 %v454
          %v1142 = vpop.f32.mrb[0].mxu0
          %v1143 = vadd.f32 %v914, %v1142
          %v1144 = vpop.f32.mrb[0].mxu0
          %v1145 = vpop.f32.mrb[0].mxu0
          %v1146 = vadd.f32 %v914, %v1145
          %v1147 = vpop.f32.mrb[0].mxu0
          %1148 = vmatprep.mubr.bf16.mxu0 0
          %1149 = vmatmul.mubr.bf16.gmra.mrb[0].mxu0 %v455
          %v1150 = vpop.f32.mrb[0].mxu0
          %v1151 = vadd.f32 %v914, %v1150
          %v1152 = vpop.f32.mrb[0].mxu0
          %v1153 = vpop.f32.mrb[0].mxu0
          %v1154 = vadd.f32 %v914, %v1153
          %v1155 = vpop.f32.mrb[0].mxu0
          %1156 = vmatprep.mubr.bf16.mxu0 0
          %1157 = vmatmul.mubr.bf16.gmra.mrb[0].mxu0 %v456
          %v1158 = vpop.f32.mrb[0].mxu0
          %v1159 = vadd.f32 %v914, %v1158
          %v1160 = vpop.f32.mrb[0].mxu0
          %v1161 = vpop.f32.mrb[0].mxu0
          %v1162 = vadd.f32 %v914, %v1161
          %v1163 = vpop.f32.mrb[0].mxu0
          %1164 = vmatprep.mubr.bf16.mxu0 0
          %1165 = vmatmul.mubr.bf16.gmra.mrb[0].mxu0 %v457
          %v1166 = vpop.f32.mrb[0].mxu0
          %v1167 = vadd.f32 %v914, %v1166
          %v1168 = vpop.f32.mrb[0].mxu0
          %v1169 = vpop.f32.mrb[0].mxu0
          %v1170 = vadd.f32 %v914, %v1169
          %v1171 = vpop.f32.mrb[0].mxu0
          %1172 = vmatprep.mubr.bf16.mxu0 0
          %1173 = vmatmul.mubr.bf16.gmra.mrb[0].mxu0 %v458
          %v1174 = vpop.f32.mrb[0].mxu0
          %v1175 = vadd.f32 %v914, %v1174
          %v1176 = vpop.f32.mrb[0].mxu0
          %v1177 = vpop.f32.mrb[0].mxu0
          %v1178 = vadd.f32 %v914, %v1177
          %v1179 = vpop.f32.mrb[0].mxu0
          %1180 = vmatprep.mubr.bf16.mxu0 0
          %1181 = vmatmul.mubr.bf16.gmra.mrb[0].mxu0 %v459
          %v1182 = vpop.f32.mrb[0].mxu0
          %v1183 = vadd.f32 %v914, %v1182
          %v1184 = vpop.f32.mrb[0].mxu0
          %v1185 = vpop.f32.mrb[0].mxu0
          %v1186 = vadd.f32 %v914, %v1185
          %v1187 = vpop.f32.mrb[0].mxu0
          %1188 = vmatprep.mubr.bf16.mxu0 0
          %1189 = vmatmul.mubr.bf16.gmra.mrb[0].mxu0 %v460
          %v1190 = vpop.f32.mrb[0].mxu0
          %v1191 = vadd.f32 %v914, %v1190
          %v1192 = vpop.f32.mrb[0].mxu0
          %v1193 = vpop.f32.mrb[0].mxu0
          %v1194 = vadd.f32 %v914, %v1193
          %v1195 = vpop.f32.mrb[0].mxu0
          %1196 = vmatprep.mubr.bf16.mxu0 0
          %1197 = vmatmul.mubr.bf16.gmra.mrb[0].mxu0 %v461
          %v1198 = vpop.f32.mrb[0].mxu0
          %v1199 = vadd.f32 %v914, %v1198
          %v1200 = vpop.f32.mrb[0].mxu0
          %v1201 = vpop.f32.mrb[0].mxu0
          %v1202 = vadd.f32 %v914, %v1201
          %v1203 = vpop.f32.mrb[0].mxu0
          %1204 = vmatprep.mubr.bf16.mxu0 0
          %1205 = vmatmul.mubr.bf16.gmra.mrb[0].mxu0 %v462
          %v1206 = vpop.f32.mrb[0].mxu0
          %v1207 = vadd.f32 %v914, %v1206
          %v1208 = vpop.f32.mrb[0].mxu0
          %v1209 = vpop.f32.mrb[0].mxu0
          %v1210 = vadd.f32 %v914, %v1209
          %v1211 = vpop.f32.mrb[0].mxu0
          %1212 = vmatprep.mubr.bf16.mxu0 0
          %1213 = vmatmul.mubr.bf16.gmra.mrb[0].mxu0 %v463
          %v1214 = vpop.f32.mrb[0].mxu0
          %v1215 = vadd.f32 %v914, %v1214
          %v1216 = vpop.f32.mrb[0].mxu0
          %v1217 = vpop.f32.mrb[0].mxu0
          %v1218 = vadd.f32 %v914, %v1217
          %v1219 = vpop.f32.mrb[0].mxu0
          %1220 = vmatprep.mubr.bf16.mxu0 0
          %1221 = vmatmul.mubr.bf16.gmra.mrb[0].mxu0 %v464
          %v1222 = vpop.f32.mrb[0].mxu0
          %v1223 = vadd.f32 %v914, %v1222
          %v1224 = vpop.f32.mrb[0].mxu0
          %v1225 = vpop.f32.mrb[0].mxu0
          %v1226 = vadd.f32 %v914, %v1225
          %v1227 = vpop.f32.mrb[0].mxu0
          %1228 = vmatprep.mubr.bf16.mxu0 0
          %1229 = vmatmul.mubr.bf16.gmra.mrb[0].mxu0 %v465
          %v1230 = vpop.f32.mrb[0].mxu0
          %v1231 = vadd.f32 %v914, %v1230
          %v1232 = vpop.f32.mrb[0].mxu0
          %v1233 = vpop.f32.mrb[0].mxu0
          %v1234 = vadd.f32 %v914, %v1233
          %v1235 = vpop.f32.mrb[0].mxu0
          %1236 = vmatprep.mubr.bf16.mxu0 0
          %1237 = vmatmul.mubr.bf16.gmra.mrb[0].mxu0 %v466
          %v1238 = vpop.f32.mrb[0].mxu0
          %v1239 = vadd.f32 %v914, %v1238
          %v1240 = vpop.f32.mrb[0].mxu0
          %v1241 = vpop.f32.mrb[0].mxu0
          %v1242 = vadd.f32 %v914, %v1241
          %v1243 = vpop.f32.mrb[0].mxu0
          %1244 = vmatprep.mubr.bf16.mxu0 0
          %1245 = vmatmul.mubr.bf16.gmra.mrb[0].mxu0 %v467
          %v1246 = vpop.f32.mrb[0].mxu0
          %v1247 = vadd.f32 %v914, %v1246
          %v1248 = vpop.f32.mrb[0].mxu0
          %v1249 = vpop.f32.mrb[0].mxu0
          %v1250 = vadd.f32 %v914, %v1249
          %v1251 = vpop.f32.mrb[0].mxu0
          %1252 = vdwg.mxu0
          %v1253 = vpack.c.bf16 %v1002, %v999
          %v1254 = vpack.c.bf16 %v1010, %v1007
          %v1255 = vpack.c.bf16 %v1018, %v1015
          %v1256 = vpack.c.bf16 %v1026, %v1023
          %v1257 = vpack.c.bf16 %v1034, %v1031
          %v1258 = vpack.c.bf16 %v1042, %v1039
          %v1259 = vpack.c.bf16 %v1050, %v1047
          %v1260 = vpack.c.bf16 %v1058, %v1055
          %v1261 = vpack.c.bf16 %v1066, %v1063
          %v1262 = vpack.c.bf16 %v1074, %v1071
          %v1263 = vpack.c.bf16 %v1082, %v1079
          %v1264 = vpack.c.bf16 %v1090, %v1087
          %v1265 = vpack.c.bf16 %v1098, %v1095
          %v1266 = vpack.c.bf16 %v1106, %v1103
          %v1267 = vpack.c.bf16 %v1114, %v1111
          %v1268 = vpack.c.bf16 %v1122, %v1119
          %v1269 = vpack.c.bf16 %v1130, %v1127
          %v1270 = vpack.c.bf16 %v1138, %v1135
          %v1271 = vpack.c.bf16 %v1146, %v1143
          %v1272 = vpack.c.bf16 %v1154, %v1151
          %v1273 = vpack.c.bf16 %v1162, %v1159
          %v1274 = vpack.c.bf16 %v1170, %v1167
          %v1275 = vpack.c.bf16 %v1178, %v1175
          %v1276 = vpack.c.bf16 %v1186, %v1183
          %v1277 = vpack.c.bf16 %v1194, %v1191
          %v1278 = vpack.c.bf16 %v1202, %v1199
          %v1279 = vpack.c.bf16 %v1210, %v1207
          %v1280 = vpack.c.bf16 %v1218, %v1215
          %v1281 = vpack.c.bf16 %v1226, %v1223
          %v1282 = vpack.c.bf16 %v1234, %v1231
          %v1283 = vpack.c.bf16 %v1242, %v1239
          %v1284 = vpack.c.bf16 %v1250, %v1247
          %1285 = vst [vmem:[#allocation3] sm:$0xff] %v1253
          %1286 = vst [vmem:[#allocation3 + $0x8] sm:$0xff] %v1254
          %1287 = vst [vmem:[#allocation3 + $0x10] sm:$0xff] %v1255
          %1288 = vst [vmem:[#allocation3 + $0x18] sm:$0xff] %v1256
          %1289 = vst [vmem:[#allocation3 + $0x20] sm:$0xff] %v1257
          %1290 = vst [vmem:[#allocation3 + $0x28] sm:$0xff] %v1258
          %1291 = vst [vmem:[#allocation3 + $0x30] sm:$0xff] %v1259
          %1292 = vst [vmem:[#allocation3 + $0x38] sm:$0xff] %v1260
          %1293 = vst [vmem:[#allocation3 + $0x40] sm:$0xff] %v1261
          %1294 = vst [vmem:[#allocation3 + $0x48] sm:$0xff] %v1262
          %1295 = vst [vmem:[#allocation3 + $0x50] sm:$0xff] %v1263
          %1296 = vst [vmem:[#allocation3 + $0x58] sm:$0xff] %v1264
          %1297 = vst [vmem:[#allocation3 + $0x60] sm:$0xff] %v1265
          %1298 = vst [vmem:[#allocation3 + $0x68] sm:$0xff] %v1266
          %1299 = vst [vmem:[#allocation3 + $0x70] sm:$0xff] %v1267
          %1300 = vst [vmem:[#allocation3 + $0x78] sm:$0xff] %v1268
          %1301 = vst [vmem:[#allocation3 + $0x80] sm:$0xff] %v1269
          %1302 = vst [vmem:[#allocation3 + $0x88] sm:$0xff] %v1270
          %1303 = vst [vmem:[#allocation3 + $0x90] sm:$0xff] %v1271
          %1304 = vst [vmem:[#allocation3 + $0x98] sm:$0xff] %v1272
          %1305 = vst [vmem:[#allocation3 + $0xa0] sm:$0xff] %v1273
          %1306 = vst [vmem:[#allocation3 + $0xa8] sm:$0xff] %v1274
          %1307 = vst [vmem:[#allocation3 + $0xb0] sm:$0xff] %v1275
          %1308 = vst [vmem:[#allocation3 + $0xb8] sm:$0xff] %v1276
          %1309 = vst [vmem:[#allocation3 + $0xc0] sm:$0xff] %v1277
          %1310 = vst [vmem:[#allocation3 + $0xc8] sm:$0xff] %v1278
          %1311 = vst [vmem:[#allocation3 + $0xd0] sm:$0xff] %v1279
          %1312 = vst [vmem:[#allocation3 + $0xd8] sm:$0xff] %v1280
          %1313 = vst [vmem:[#allocation3 + $0xe0] sm:$0xff] %v1281
          %1314 = vst [vmem:[#allocation3 + $0xe8] sm:$0xff] %v1282
          %1315 = vst [vmem:[#allocation3 + $0xf0] sm:$0xff] %v1283
          %1316 = vst [vmem:[#allocation3 + $0xf8] sm:$0xff] %v1284
        $region64: #{tpu_custom_call.1} parent=55 // pred_fallthru
          _
        %s1317 = smul.u32 %s32, 256
        %s1318 = scalar_lea.vmem %s331, %s1317 [#allocation5]
        %v1319 = vld [vmem:[%s1318] sm:$0xff]
        %v1320 = vld [vmem:[%s1318 + $0x8] sm:$0xff]
        %v1321 = vld [vmem:[%s1318 + $0x10] sm:$0xff]
        %v1322 = vld [vmem:[%s1318 + $0x18] sm:$0xff]
        %v1323 = vld [vmem:[%s1318 + $0x20] sm:$0xff]
        %v1324 = vld [vmem:[%s1318 + $0x28] sm:$0xff]
        %v1325 = vld [vmem:[%s1318 + $0x30] sm:$0xff]
        %v1326 = vld [vmem:[%s1318 + $0x38] sm:$0xff]
        %v1327 = vld [vmem:[%s1318 + $0x40] sm:$0xff]
        %v1328 = vld [vmem:[%s1318 + $0x48] sm:$0xff]
        %v1329 = vld [vmem:[%s1318 + $0x50] sm:$0xff]
        %v1330 = vld [vmem:[%s1318 + $0x58] sm:$0xff]
        %v1331 = vld [vmem:[%s1318 + $0x60] sm:$0xff]
        %v1332 = vld [vmem:[%s1318 + $0x68] sm:$0xff]
        %v1333 = vld [vmem:[%s1318 + $0x70] sm:$0xff]
        %v1334 = vld [vmem:[%s1318 + $0x78] sm:$0xff]
        %v1335 = vld [vmem:[%s1318 + $0x80] sm:$0xff]
        %v1336 = vld [vmem:[%s1318 + $0x88] sm:$0xff]
        %v1337 = vld [vmem:[%s1318 + $0x90] sm:$0xff]
        %v1338 = vld [vmem:[%s1318 + $0x98] sm:$0xff]
        %v1339 = vld [vmem:[%s1318 + $0xa0] sm:$0xff]
        %v1340 = vld [vmem:[%s1318 + $0xa8] sm:$0xff]
        %v1341 = vld [vmem:[%s1318 + $0xb0] sm:$0xff]
        %v1342 = vld [vmem:[%s1318 + $0xb8] sm:$0xff]
        %v1343 = vld [vmem:[%s1318 + $0xc0] sm:$0xff]
        %v1344 = vld [vmem:[%s1318 + $0xc8] sm:$0xff]
        %v1345 = vld [vmem:[%s1318 + $0xd0] sm:$0xff]
        %v1346 = vld [vmem:[%s1318 + $0xd8] sm:$0xff]
        %v1347 = vld [vmem:[%s1318 + $0xe0] sm:$0xff]
        %v1348 = vld [vmem:[%s1318 + $0xe8] sm:$0xff]
        %v1349 = vld [vmem:[%s1318 + $0xf0] sm:$0xff]
        %v1350 = vld [vmem:[%s1318 + $0xf8] sm:$0xff]
        %v1351 = vpack.c.bf16 %v1320, %v1319
        %v1352 = vpack.c.bf16 %v1322, %v1321
        %v1353 = vpack.c.bf16 %v1324, %v1323
        %v1354 = vpack.c.bf16 %v1326, %v1325
        %v1355 = vpack.c.bf16 %v1328, %v1327
        %v1356 = vpack.c.bf16 %v1330, %v1329
        %v1357 = vpack.c.bf16 %v1332, %v1331
        %v1358 = vpack.c.bf16 %v1334, %v1333
        %v1359 = vpack.c.bf16 %v1336, %v1335
        %v1360 = vpack.c.bf16 %v1338, %v1337
        %v1361 = vpack.c.bf16 %v1340, %v1339
        %v1362 = vpack.c.bf16 %v1342, %v1341
        %v1363 = vpack.c.bf16 %v1344, %v1343
        %v1364 = vpack.c.bf16 %v1346, %v1345
        %v1365 = vpack.c.bf16 %v1348, %v1347
        %v1366 = vpack.c.bf16 %v1350, %v1349
        %v1367 = vld [vmem:[%s3] sm:$0xf]
        %v1368 = vld [vmem:[%s3 + $0x4] sm:$0xf]
        %v1369 = vld [vmem:[%s3 + $0x8] sm:$0xf]
        %v1370 = vld [vmem:[%s3 + $0xc] sm:$0xf]
        %v1371 = vld [vmem:[%s3 + $0x10] sm:$0xf]
        %v1372 = vld [vmem:[%s3 + $0x14] sm:$0xf]
        %v1373 = vld [vmem:[%s3 + $0x18] sm:$0xf]
        %v1374 = vld [vmem:[%s3 + $0x1c] sm:$0xf]
        %v1375 = vld [vmem:[%s3 + $0x20] sm:$0xf]
        %v1376 = vld [vmem:[%s3 + $0x24] sm:$0xf]
        %v1377 = vld [vmem:[%s3 + $0x28] sm:$0xf]
        %v1378 = vld [vmem:[%s3 + $0x2c] sm:$0xf]
        %v1379 = vld [vmem:[%s3 + $0x30] sm:$0xf]
        %v1380 = vld [vmem:[%s3 + $0x34] sm:$0xf]
        %v1381 = vld [vmem:[%s3 + $0x38] sm:$0xf]
        %v1382 = vld [vmem:[%s3 + $0x3c] sm:$0xf]
        %v1383 = vld [vmem:[%s4] sm:$0x1]
        %v1385 = vlaneseq
        %v1386 = vshrl.u32 %v1385, 7
        %v1387 = vsub.s32 0, %v1386
        %v1388 = vrot.slane %v1383, %v1387
        %v1406 = vunpack.c.l.b16 %v1367
        %v1407 = vunpack.c.l.b16 %v1368
        %v1408 = vunpack.c.l.b16 %v1369
        %v1409 = vunpack.c.l.b16 %v1370
        %v1410 = vunpack.c.l.b16 %v1371
        %v1411 = vunpack.c.l.b16 %v1372
        %v1412 = vunpack.c.l.b16 %v1373
        %v1413 = vunpack.c.l.b16 %v1374
        %v1414 = vunpack.c.l.b16 %v1375
        %v1415 = vunpack.c.l.b16 %v1376
        %v1416 = vunpack.c.l.b16 %v1377
        %v1417 = vunpack.c.l.b16 %v1378
        %v1418 = vunpack.c.l.b16 %v1379
        %v1419 = vunpack.c.l.b16 %v1380
        %v1420 = vunpack.c.l.b16 %v1381
        %v1421 = vunpack.c.l.b16 %v1382
        %v1422 = vpack.c.b16 %v1407, %v1406
        %v1423 = vpack.c.b16 %v1409, %v1408
        %v1424 = vpack.c.b16 %v1411, %v1410
        %v1425 = vpack.c.b16 %v1413, %v1412
        %v1426 = vpack.c.b16 %v1415, %v1414
        %v1427 = vpack.c.b16 %v1417, %v1416
        %v1428 = vpack.c.b16 %v1419, %v1418
        %v1429 = vpack.c.b16 %v1421, %v1420
        %1438 = vmatprep.subr.bf16.mxu0 0
        %1439 = vmatpush1.bf16.msra.mxu0 %v1422
        %1440 = vmatprep.subr.bf16.mxu0 0
        %1441 = vmatpush1.bf16.msra.mxu0 %v1423
        %1442 = vmatprep.subr.bf16.mxu0 0
        %1443 = vmatpush1.bf16.msra.mxu0 %v1424
        %1444 = vmatprep.subr.bf16.mxu0 0
        %1445 = vmatpush1.bf16.msra.mxu0 %v1425
        %1446 = vmatprep.subr.bf16.mxu0 0
        %1447 = vmatpush1.bf16.msra.mxu0 %v1426
        %1448 = vmatprep.subr.bf16.mxu0 0
        %1449 = vmatpush1.bf16.msra.mxu0 %v1427
        %1450 = vmatprep.subr.bf16.mxu0 0
        %1451 = vmatpush1.bf16.msra.mxu0 %v1428
        %1452 = vmatprep.subr.bf16.mxu0 0
        %1453 = vmatpush1.bf16.msra.mxu0 %v1429
        %1454 = vmatprep.subr.bf16.mxu0 0
        %1455 = vmatpush1.bf16.msra.mxu0 0
        %1456 = vmatprep.subr.bf16.mxu0 0
        %1457 = vmatpush1.bf16.msra.mxu0 0
        %1458 = vmatprep.subr.bf16.mxu0 0
        %1459 = vmatpush1.bf16.msra.mxu0 0
        %1460 = vmatprep.subr.bf16.mxu0 0
        %1461 = vmatpush1.bf16.msra.mxu0 0
        %1462 = vmatprep.subr.bf16.mxu0 0
        %1463 = vmatpush1.bf16.msra.mxu0 0
        %1464 = vmatprep.subr.bf16.mxu0 0
        %1465 = vmatpush1.bf16.msra.mxu0 0
        %1466 = vmatprep.subr.bf16.mxu0 0
        %1467 = vmatpush1.bf16.msra.mxu0 0
        %1468 = vmatprep.subr.bf16.mxu0 0
        %1469 = vmatpush1.bf16.msra.mxu0 0
        %1470 = vmatprep.mubr.bf16.mxu0 0
        %1471 = vmatmul.mubr.bf16.gmra.mrb[0].mxu0 %v1351
        %v1472 = vpop.f32.mrb[0].mxu0
        %v1473 = vadd.f32 %v1388, %v1472
        %v1474 = vpop.f32.mrb[0].mxu0
        %v1475 = vpop.f32.mrb[0].mxu0
        %v1476 = vadd.f32 %v1388, %v1475
        %v1477 = vpop.f32.mrb[0].mxu0
        %1478 = vmatprep.mubr.bf16.mxu0 0
        %1479 = vmatmul.mubr.bf16.gmra.mrb[0].mxu0 %v1352
        %v1480 = vpop.f32.mrb[0].mxu0
        %v1481 = vadd.f32 %v1388, %v1480
        %v1482 = vpop.f32.mrb[0].mxu0
        %v1483 = vpop.f32.mrb[0].mxu0
        %v1484 = vadd.f32 %v1388, %v1483
        %v1485 = vpop.f32.mrb[0].mxu0
        %1486 = vmatprep.mubr.bf16.mxu0 0
        %1487 = vmatmul.mubr.bf16.gmra.mrb[0].mxu0 %v1353
        %v1488 = vpop.f32.mrb[0].mxu0
        %v1489 = vadd.f32 %v1388, %v1488
        %v1490 = vpop.f32.mrb[0].mxu0
        %v1491 = vpop.f32.mrb[0].mxu0
        %v1492 = vadd.f32 %v1388, %v1491
        %v1493 = vpop.f32.mrb[0].mxu0
        %1494 = vmatprep.mubr.bf16.mxu0 0
        %1495 = vmatmul.mubr.bf16.gmra.mrb[0].mxu0 %v1354
        %v1496 = vpop.f32.mrb[0].mxu0
        %v1497 = vadd.f32 %v1388, %v1496
        %v1498 = vpop.f32.mrb[0].mxu0
        %v1499 = vpop.f32.mrb[0].mxu0
        %v1500 = vadd.f32 %v1388, %v1499
        %v1501 = vpop.f32.mrb[0].mxu0
        %1502 = vmatprep.mubr.bf16.mxu0 0
        %1503 = vmatmul.mubr.bf16.gmra.mrb[0].mxu0 %v1355
        %v1504 = vpop.f32.mrb[0].mxu0
        %v1505 = vadd.f32 %v1388, %v1504
        %v1506 = vpop.f32.mrb[0].mxu0
        %v1507 = vpop.f32.mrb[0].mxu0
        %v1508 = vadd.f32 %v1388, %v1507
        %v1509 = vpop.f32.mrb[0].mxu0
        %1510 = vmatprep.mubr.bf16.mxu0 0
        %1511 = vmatmul.mubr.bf16.gmra.mrb[0].mxu0 %v1356
        %v1512 = vpop.f32.mrb[0].mxu0
        %v1513 = vadd.f32 %v1388, %v1512
        %v1514 = vpop.f32.mrb[0].mxu0
        %v1515 = vpop.f32.mrb[0].mxu0
        %v1516 = vadd.f32 %v1388, %v1515
        %v1517 = vpop.f32.mrb[0].mxu0
        %1518 = vmatprep.mubr.bf16.mxu0 0
        %1519 = vmatmul.mubr.bf16.gmra.mrb[0].mxu0 %v1357
        %v1520 = vpop.f32.mrb[0].mxu0
        %v1521 = vadd.f32 %v1388, %v1520
        %v1522 = vpop.f32.mrb[0].mxu0
        %v1523 = vpop.f32.mrb[0].mxu0
        %v1524 = vadd.f32 %v1388, %v1523
        %v1525 = vpop.f32.mrb[0].mxu0
        %1526 = vmatprep.mubr.bf16.mxu0 0
        %1527 = vmatmul.mubr.bf16.gmra.mrb[0].mxu0 %v1358
        %v1528 = vpop.f32.mrb[0].mxu0
        %v1529 = vadd.f32 %v1388, %v1528
        %v1530 = vpop.f32.mrb[0].mxu0
        %v1531 = vpop.f32.mrb[0].mxu0
        %v1532 = vadd.f32 %v1388, %v1531
        %v1533 = vpop.f32.mrb[0].mxu0
        %1534 = vmatprep.mubr.bf16.mxu0 0
        %1535 = vmatmul.mubr.bf16.gmra.mrb[0].mxu0 %v1359
        %v1536 = vpop.f32.mrb[0].mxu0
        %v1537 = vadd.f32 %v1388, %v1536
        %v1538 = vpop.f32.mrb[0].mxu0
        %v1539 = vpop.f32.mrb[0].mxu0
        %v1540 = vadd.f32 %v1388, %v1539
        %v1541 = vpop.f32.mrb[0].mxu0
        %1542 = vmatprep.mubr.bf16.mxu0 0
        %1543 = vmatmul.mubr.bf16.gmra.mrb[0].mxu0 %v1360
        %v1544 = vpop.f32.mrb[0].mxu0
        %v1545 = vadd.f32 %v1388, %v1544
        %v1546 = vpop.f32.mrb[0].mxu0
        %v1547 = vpop.f32.mrb[0].mxu0
        %v1548 = vadd.f32 %v1388, %v1547
        %v1549 = vpop.f32.mrb[0].mxu0
        %1550 = vmatprep.mubr.bf16.mxu0 0
        %1551 = vmatmul.mubr.bf16.gmra.mrb[0].mxu0 %v1361
        %v1552 = vpop.f32.mrb[0].mxu0
        %v1553 = vadd.f32 %v1388, %v1552
        %v1554 = vpop.f32.mrb[0].mxu0
        %v1555 = vpop.f32.mrb[0].mxu0
        %v1556 = vadd.f32 %v1388, %v1555
        %v1557 = vpop.f32.mrb[0].mxu0
        %1558 = vmatprep.mubr.bf16.mxu0 0
        %1559 = vmatmul.mubr.bf16.gmra.mrb[0].mxu0 %v1362
        %v1560 = vpop.f32.mrb[0].mxu0
        %v1561 = vadd.f32 %v1388, %v1560
        %v1562 = vpop.f32.mrb[0].mxu0
        %v1563 = vpop.f32.mrb[0].mxu0
        %v1564 = vadd.f32 %v1388, %v1563
        %v1565 = vpop.f32.mrb[0].mxu0
        %1566 = vmatprep.mubr.bf16.mxu0 0
        %1567 = vmatmul.mubr.bf16.gmra.mrb[0].mxu0 %v1363
        %v1568 = vpop.f32.mrb[0].mxu0
        %v1569 = vadd.f32 %v1388, %v1568
        %v1570 = vpop.f32.mrb[0].mxu0
        %v1571 = vpop.f32.mrb[0].mxu0
        %v1572 = vadd.f32 %v1388, %v1571
        %v1573 = vpop.f32.mrb[0].mxu0
        %1574 = vmatprep.mubr.bf16.mxu0 0
        %1575 = vmatmul.mubr.bf16.gmra.mrb[0].mxu0 %v1364
        %v1576 = vpop.f32.mrb[0].mxu0
        %v1577 = vadd.f32 %v1388, %v1576
        %v1578 = vpop.f32.mrb[0].mxu0
        %v1579 = vpop.f32.mrb[0].mxu0
        %v1580 = vadd.f32 %v1388, %v1579
        %v1581 = vpop.f32.mrb[0].mxu0
        %1582 = vmatprep.mubr.bf16.mxu0 0
        %1583 = vmatmul.mubr.bf16.gmra.mrb[0].mxu0 %v1365
        %v1584 = vpop.f32.mrb[0].mxu0
        %v1585 = vadd.f32 %v1388, %v1584
        %v1586 = vpop.f32.mrb[0].mxu0
        %v1587 = vpop.f32.mrb[0].mxu0
        %v1588 = vadd.f32 %v1388, %v1587
        %v1589 = vpop.f32.mrb[0].mxu0
        %1590 = vmatprep.mubr.bf16.mxu0 0
        %1591 = vmatmul.mubr.bf16.gmra.mrb[0].mxu0 %v1366
        %v1592 = vpop.f32.mrb[0].mxu0
        %v1593 = vadd.f32 %v1388, %v1592
        %v1594 = vpop.f32.mrb[0].mxu0
        %v1595 = vpop.f32.mrb[0].mxu0
        %v1596 = vadd.f32 %v1388, %v1595
        %v1597 = vpop.f32.mrb[0].mxu0
        %1598 = vdwg.mxu0
        %v1599 = vpack.c.bf16 %v1476, %v1473
        %v1600 = vpack.c.bf16 %v1484, %v1481
        %v1601 = vpack.c.bf16 %v1492, %v1489
        %v1602 = vpack.c.bf16 %v1500, %v1497
        %v1603 = vpack.c.bf16 %v1508, %v1505
        %v1604 = vpack.c.bf16 %v1516, %v1513
        %v1605 = vpack.c.bf16 %v1524, %v1521
        %v1606 = vpack.c.bf16 %v1532, %v1529
        %v1607 = vpack.c.bf16 %v1540, %v1537
        %v1608 = vpack.c.bf16 %v1548, %v1545
        %v1609 = vpack.c.bf16 %v1556, %v1553
        %v1610 = vpack.c.bf16 %v1564, %v1561
        %v1611 = vpack.c.bf16 %v1572, %v1569
        %v1612 = vpack.c.bf16 %v1580, %v1577
        %v1613 = vpack.c.bf16 %v1588, %v1585
        %v1614 = vpack.c.bf16 %v1596, %v1593
        %v1615 = vld [vmem:[#allocation2] sm:$0xff]
        %v1616 = vld [vmem:[#allocation2 + $0x8] sm:$0xff]
        %v1617 = vld [vmem:[#allocation2 + $0x10] sm:$0xff]
        %v1618 = vld [vmem:[#allocation2 + $0x18] sm:$0xff]
        %v1619 = vld [vmem:[#allocation2 + $0x20] sm:$0xff]
        %v1620 = vld [vmem:[#allocation2 + $0x28] sm:$0xff]
        %v1621 = vld [vmem:[#allocation2 + $0x30] sm:$0xff]
        %v1622 = vld [vmem:[#allocation2 + $0x38] sm:$0xff]
        %v1623 = vld [vmem:[#allocation2 + $0x40] sm:$0xff]
        %v1624 = vld [vmem:[#allocation2 + $0x48] sm:$0xff]
        %v1625 = vld [vmem:[#allocation2 + $0x50] sm:$0xff]
        %v1626 = vld [vmem:[#allocation2 + $0x58] sm:$0xff]
        %v1627 = vld [vmem:[#allocation2 + $0x60] sm:$0xff]
        %v1628 = vld [vmem:[#allocation2 + $0x68] sm:$0xff]
        %v1629 = vld [vmem:[#allocation2 + $0x70] sm:$0xff]
        %v1630 = vld [vmem:[#allocation2 + $0x78] sm:$0xff]
        %v1631 = vld [vmem:[#allocation2 + $0x80] sm:$0xff]
        %v1632 = vld [vmem:[#allocation2 + $0x88] sm:$0xff]
        %v1633 = vld [vmem:[#allocation2 + $0x90] sm:$0xff]
        %v1634 = vld [vmem:[#allocation2 + $0x98] sm:$0xff]
        %v1635 = vld [vmem:[#allocation2 + $0xa0] sm:$0xff]
        %v1636 = vld [vmem:[#allocation2 + $0xa8] sm:$0xff]
        %v1637 = vld [vmem:[#allocation2 + $0xb0] sm:$0xff]
        %v1638 = vld [vmem:[#allocation2 + $0xb8] sm:$0xff]
        %v1639 = vld [vmem:[#allocation2 + $0xc0] sm:$0xff]
        %v1640 = vld [vmem:[#allocation2 + $0xc8] sm:$0xff]
        %v1641 = vld [vmem:[#allocation2 + $0xd0] sm:$0xff]
        %v1642 = vld [vmem:[#allocation2 + $0xd8] sm:$0xff]
        %v1643 = vld [vmem:[#allocation2 + $0xe0] sm:$0xff]
        %v1644 = vld [vmem:[#allocation2 + $0xe8] sm:$0xff]
        %v1645 = vld [vmem:[#allocation2 + $0xf0] sm:$0xff]
        %v1646 = vld [vmem:[#allocation2 + $0xf8] sm:$0xff]
        %v1647 = vld [vmem:[%s2] sm:$0xf]
        %v1649 = vlaneseq
        %v1650 = vshrl.u32 %v1649, 7
        %v1651 = vsub.s32 0, %v1650
        %v1652 = vrot.slane %v1647, %v1651
        %v1653 = vlaneseq
        %v1654 = vshrl.u32 %v1653, 7
        %v1655 = vsub.s32 1, %v1654
        %v1656 = vrot.slane %v1647, %v1655
        %v1657 = vlaneseq
        %v1658 = vshrl.u32 %v1657, 7
        %v1659 = vsub.s32 2, %v1658
        %v1660 = vrot.slane %v1647, %v1659
        %v1661 = vlaneseq
        %v1662 = vshrl.u32 %v1661, 7
        %v1663 = vsub.s32 3, %v1662
        %v1664 = vrot.slane %v1647, %v1663
        %vm1669 = vcmask 130048
        %v1671 = vsel %vm1669, %v1599, 0
        %v1674 = vsel %vm1669, %v1600, 0
        %v1677 = vsel %vm1669, %v1601, 0
        %v1680 = vsel %vm1669, %v1602, 0
        %v1683 = vsel %vm1669, %v1603, 0
        %v1686 = vsel %vm1669, %v1604, 0
        %v1689 = vsel %vm1669, %v1605, 0
        %v1692 = vsel %vm1669, %v1606, 0
        %v1695 = vsel %vm1669, %v1607, 0
        %v1698 = vsel %vm1669, %v1608, 0
        %v1701 = vsel %vm1669, %v1609, 0
        %v1704 = vsel %vm1669, %v1610, 0
        %v1707 = vsel %vm1669, %v1611, 0
        %v1710 = vsel %vm1669, %v1612, 0
        %v1713 = vsel %vm1669, %v1613, 0
        %v1716 = vsel %vm1669, %v1614, 0
        %v1719 = vsel %vm1669, %v1615, 0
        %v1722 = vsel %vm1669, %v1616, 0
        %v1725 = vsel %vm1669, %v1617, 0
        %v1728 = vsel %vm1669, %v1618, 0
        %v1731 = vsel %vm1669, %v1619, 0
        %v1734 = vsel %vm1669, %v1620, 0
        %v1737 = vsel %vm1669, %v1621, 0
        %v1740 = vsel %vm1669, %v1622, 0
        %v1743 = vsel %vm1669, %v1623, 0
        %v1746 = vsel %vm1669, %v1624, 0
        %v1749 = vsel %vm1669, %v1625, 0
        %v1752 = vsel %vm1669, %v1626, 0
        %v1755 = vsel %vm1669, %v1627, 0
        %v1758 = vsel %vm1669, %v1628, 0
        %v1761 = vsel %vm1669, %v1629, 0
        %v1764 = vsel %vm1669, %v1630, 0
        %v1767 = vsel %vm1669, %v1631, 0
        %v1770 = vsel %vm1669, %v1632, 0
        %v1773 = vsel %vm1669, %v1633, 0
        %v1776 = vsel %vm1669, %v1634, 0
        %v1779 = vsel %vm1669, %v1635, 0
        %v1782 = vsel %vm1669, %v1636, 0
        %v1785 = vsel %vm1669, %v1637, 0
        %v1788 = vsel %vm1669, %v1638, 0
        %v1791 = vsel %vm1669, %v1639, 0
        %v1794 = vsel %vm1669, %v1640, 0
        %v1797 = vsel %vm1669, %v1641, 0
        %v1800 = vsel %vm1669, %v1642, 0
        %v1803 = vsel %vm1669, %v1643, 0
        %v1806 = vsel %vm1669, %v1644, 0
        %v1809 = vsel %vm1669, %v1645, 0
        %v1812 = vsel %vm1669, %v1646, 0
        %1814 = vmatprep.subr.bf16.mxu0 0
        %1815 = vmatpush1.bf16.xpose.msra.mxu0 %v1719
        %1816 = vmatprep.subr.bf16.mxu0 0
        %1817 = vmatpush1.bf16.xpose.msra.mxu0 %v1722
        %1818 = vmatprep.subr.bf16.mxu0 0
        %1819 = vmatpush1.bf16.xpose.msra.mxu0 %v1725
        %1820 = vmatprep.subr.bf16.mxu0 0
        %1821 = vmatpush1.bf16.xpose.msra.mxu0 %v1728
        %1822 = vmatprep.subr.bf16.mxu0 0
        %1823 = vmatpush1.bf16.xpose.msra.mxu0 %v1731
        %1824 = vmatprep.subr.bf16.mxu0 0
        %1825 = vmatpush1.bf16.xpose.msra.mxu0 %v1734
        %1826 = vmatprep.subr.bf16.mxu0 0
        %1827 = vmatpush1.bf16.xpose.msra.mxu0 %v1737
        %1828 = vmatprep.subr.bf16.mxu0 0
        %1829 = vmatpush1.bf16.xpose.msra.mxu0 %v1740
        %1830 = vmatprep.subr.bf16.mxu0 0
        %1831 = vmatpush1.bf16.xpose.msra.mxu0 %v1743
        %1832 = vmatprep.subr.bf16.mxu0 0
        %1833 = vmatpush1.bf16.xpose.msra.mxu0 %v1746
        %1834 = vmatprep.subr.bf16.mxu0 0
        %1835 = vmatpush1.bf16.xpose.msra.mxu0 %v1749
        %1836 = vmatprep.subr.bf16.mxu0 0
        %1837 = vmatpush1.bf16.xpose.msra.mxu0 %v1752
        %1838 = vmatprep.subr.bf16.mxu0 0
        %1839 = vmatpush1.bf16.xpose.msra.mxu0 %v1755
        %1840 = vmatprep.subr.bf16.mxu0 0
        %1841 = vmatpush1.bf16.xpose.msra.mxu0 %v1758
        %1842 = vmatprep.subr.bf16.mxu0 0
        %1843 = vmatpush1.bf16.xpose.msra.mxu0 %v1761
        %1844 = vmatprep.subr.bf16.mxu0 0
        %1845 = vmatpush1.bf16.xpose.msra.mxu0 %v1764
        %1846 = vmatprep.mubr.bf16.mxu0 0
        %1847 = vmatmul.mubr.bf16.gmra.mrb[0].mxu0 %v1671
        %v1848 = vpop.f32.mrb[0].mxu0
        %v1849 = vadd.f32 %v1652, %v1848
        %v1850 = vpop.f32.mrb[0].mxu0
        %v1851 = vadd.f32 %v1656, %v1850
        %v1852 = vpop.f32.mrb[0].mxu0
        %v1853 = vadd.f32 %v1652, %v1852
        %v1854 = vpop.f32.mrb[0].mxu0
        %v1855 = vadd.f32 %v1656, %v1854
        %1856 = vmatprep.mubr.bf16.mxu0 0
        %1857 = vmatmul.mubr.bf16.gmra.mrb[0].mxu0 %v1674
        %v1858 = vpop.f32.mrb[0].mxu0
        %v1859 = vadd.f32 %v1652, %v1858
        %v1860 = vpop.f32.mrb[0].mxu0
        %v1861 = vadd.f32 %v1656, %v1860
        %v1862 = vpop.f32.mrb[0].mxu0
        %v1863 = vadd.f32 %v1652, %v1862
        %v1864 = vpop.f32.mrb[0].mxu0
        %v1865 = vadd.f32 %v1656, %v1864
        %1866 = vmatprep.mubr.bf16.mxu0 0
        %1867 = vmatmul.mubr.bf16.gmra.mrb[0].mxu0 %v1677
        %v1868 = vpop.f32.mrb[0].mxu0
        %v1869 = vadd.f32 %v1652, %v1868
        %v1870 = vpop.f32.mrb[0].mxu0
        %v1871 = vadd.f32 %v1656, %v1870
        %v1872 = vpop.f32.mrb[0].mxu0
        %v1873 = vadd.f32 %v1652, %v1872
        %v1874 = vpop.f32.mrb[0].mxu0
        %v1875 = vadd.f32 %v1656, %v1874
        %1876 = vmatprep.mubr.bf16.mxu0 0
        %1877 = vmatmul.mubr.bf16.gmra.mrb[0].mxu0 %v1680
        %v1878 = vpop.f32.mrb[0].mxu0
        %v1879 = vadd.f32 %v1652, %v1878
        %v1880 = vpop.f32.mrb[0].mxu0
        %v1881 = vadd.f32 %v1656, %v1880
        %v1882 = vpop.f32.mrb[0].mxu0
        %v1883 = vadd.f32 %v1652, %v1882
        %v1884 = vpop.f32.mrb[0].mxu0
        %v1885 = vadd.f32 %v1656, %v1884
        %1886 = vmatprep.mubr.bf16.mxu0 0
        %1887 = vmatmul.mubr.bf16.gmra.mrb[0].mxu0 %v1683
        %v1888 = vpop.f32.mrb[0].mxu0
        %v1889 = vadd.f32 %v1652, %v1888
        %v1890 = vpop.f32.mrb[0].mxu0
        %v1891 = vadd.f32 %v1656, %v1890
        %v1892 = vpop.f32.mrb[0].mxu0
        %v1893 = vadd.f32 %v1652, %v1892
        %v1894 = vpop.f32.mrb[0].mxu0
        %v1895 = vadd.f32 %v1656, %v1894
        %1896 = vmatprep.mubr.bf16.mxu0 0
        %1897 = vmatmul.mubr.bf16.gmra.mrb[0].mxu0 %v1686
        %v1898 = vpop.f32.mrb[0].mxu0
        %v1899 = vadd.f32 %v1652, %v1898
        %v1900 = vpop.f32.mrb[0].mxu0
        %v1901 = vadd.f32 %v1656, %v1900
        %v1902 = vpop.f32.mrb[0].mxu0
        %v1903 = vadd.f32 %v1652, %v1902
        %v1904 = vpop.f32.mrb[0].mxu0
        %v1905 = vadd.f32 %v1656, %v1904
        %1906 = vmatprep.mubr.bf16.mxu0 0
        %1907 = vmatmul.mubr.bf16.gmra.mrb[0].mxu0 %v1689
        %v1908 = vpop.f32.mrb[0].mxu0
        %v1909 = vadd.f32 %v1652, %v1908
        %v1910 = vpop.f32.mrb[0].mxu0
        %v1911 = vadd.f32 %v1656, %v1910
        %v1912 = vpop.f32.mrb[0].mxu0
        %v1913 = vadd.f32 %v1652, %v1912
        %v1914 = vpop.f32.mrb[0].mxu0
        %v1915 = vadd.f32 %v1656, %v1914
        %1916 = vmatprep.mubr.bf16.mxu0 0
        %1917 = vmatmul.mubr.bf16.gmra.mrb[0].mxu0 %v1692
        %v1918 = vpop.f32.mrb[0].mxu0
        %v1919 = vadd.f32 %v1652, %v1918
        %v1920 = vpop.f32.mrb[0].mxu0
        %v1921 = vadd.f32 %v1656, %v1920
        %v1922 = vpop.f32.mrb[0].mxu0
        %v1923 = vadd.f32 %v1652, %v1922
        %v1924 = vpop.f32.mrb[0].mxu0
        %v1925 = vadd.f32 %v1656, %v1924
        %1926 = vmatprep.mubr.bf16.mxu0 0
        %1927 = vmatmul.mubr.bf16.gmra.mrb[0].mxu0 %v1695
        %v1928 = vpop.f32.mrb[0].mxu0
        %v1929 = vadd.f32 %v1652, %v1928
        %v1930 = vpop.f32.mrb[0].mxu0
        %v1931 = vadd.f32 %v1656, %v1930
        %v1932 = vpop.f32.mrb[0].mxu0
        %v1933 = vadd.f32 %v1652, %v1932
        %v1934 = vpop.f32.mrb[0].mxu0
        %v1935 = vadd.f32 %v1656, %v1934
        %1936 = vmatprep.mubr.bf16.mxu0 0
        %1937 = vmatmul.mubr.bf16.gmra.mrb[0].mxu0 %v1698
        %v1938 = vpop.f32.mrb[0].mxu0
        %v1939 = vadd.f32 %v1652, %v1938
        %v1940 = vpop.f32.mrb[0].mxu0
        %v1941 = vadd.f32 %v1656, %v1940
        %v1942 = vpop.f32.mrb[0].mxu0
        %v1943 = vadd.f32 %v1652, %v1942
        %v1944 = vpop.f32.mrb[0].mxu0
        %v1945 = vadd.f32 %v1656, %v1944
        %1946 = vmatprep.mubr.bf16.mxu0 0
        %1947 = vmatmul.mubr.bf16.gmra.mrb[0].mxu0 %v1701
        %v1948 = vpop.f32.mrb[0].mxu0
        %v1949 = vadd.f32 %v1652, %v1948
        %v1950 = vpop.f32.mrb[0].mxu0
        %v1951 = vadd.f32 %v1656, %v1950
        %v1952 = vpop.f32.mrb[0].mxu0
        %v1953 = vadd.f32 %v1652, %v1952
        %v1954 = vpop.f32.mrb[0].mxu0
        %v1955 = vadd.f32 %v1656, %v1954
        %1956 = vmatprep.mubr.bf16.mxu0 0
        %1957 = vmatmul.mubr.bf16.gmra.mrb[0].mxu0 %v1704
        %v1958 = vpop.f32.mrb[0].mxu0
        %v1959 = vadd.f32 %v1652, %v1958
        %v1960 = vpop.f32.mrb[0].mxu0
        %v1961 = vadd.f32 %v1656, %v1960
        %v1962 = vpop.f32.mrb[0].mxu0
        %v1963 = vadd.f32 %v1652, %v1962
        %v1964 = vpop.f32.mrb[0].mxu0
        %v1965 = vadd.f32 %v1656, %v1964
        %1966 = vmatprep.mubr.bf16.mxu0 0
        %1967 = vmatmul.mubr.bf16.gmra.mrb[0].mxu0 %v1707
        %v1968 = vpop.f32.mrb[0].mxu0
        %v1969 = vadd.f32 %v1652, %v1968
        %v1970 = vpop.f32.mrb[0].mxu0
        %v1971 = vadd.f32 %v1656, %v1970
        %v1972 = vpop.f32.mrb[0].mxu0
        %v1973 = vadd.f32 %v1652, %v1972
        %v1974 = vpop.f32.mrb[0].mxu0
        %v1975 = vadd.f32 %v1656, %v1974
        %1976 = vmatprep.mubr.bf16.mxu0 0
        %1977 = vmatmul.mubr.bf16.gmra.mrb[0].mxu0 %v1710
        %v1978 = vpop.f32.mrb[0].mxu0
        %v1979 = vadd.f32 %v1652, %v1978
        %v1980 = vpop.f32.mrb[0].mxu0
        %v1981 = vadd.f32 %v1656, %v1980
        %v1982 = vpop.f32.mrb[0].mxu0
        %v1983 = vadd.f32 %v1652, %v1982
        %v1984 = vpop.f32.mrb[0].mxu0
        %v1985 = vadd.f32 %v1656, %v1984
        %1986 = vmatprep.mubr.bf16.mxu0 0
        %1987 = vmatmul.mubr.bf16.gmra.mrb[0].mxu0 %v1713
        %v1988 = vpop.f32.mrb[0].mxu0
        %v1989 = vadd.f32 %v1652, %v1988
        %v1990 = vpop.f32.mrb[0].mxu0
        %v1991 = vadd.f32 %v1656, %v1990
        %v1992 = vpop.f32.mrb[0].mxu0
        %v1993 = vadd.f32 %v1652, %v1992
        %v1994 = vpop.f32.mrb[0].mxu0
        %v1995 = vadd.f32 %v1656, %v1994
        %1996 = vmatprep.mubr.bf16.mxu0 0
        %1997 = vmatmul.mubr.bf16.gmra.mrb[0].mxu0 %v1716
        %v1998 = vpop.f32.mrb[0].mxu0
        %v1999 = vadd.f32 %v1652, %v1998
        %v2000 = vpop.f32.mrb[0].mxu0
        %v2001 = vadd.f32 %v1656, %v2000
        %v2002 = vpop.f32.mrb[0].mxu0
        %v2003 = vadd.f32 %v1652, %v2002
        %v2004 = vpop.f32.mrb[0].mxu0
        %v2005 = vadd.f32 %v1656, %v2004
        %2006 = vdwg.mxu0
        %2007 = vmatprep.subr.bf16.mxu0 0
        %2008 = vmatpush1.bf16.xpose.msra.mxu0 %v1767
        %2009 = vmatprep.subr.bf16.mxu0 0
        %2010 = vmatpush1.bf16.xpose.msra.mxu0 %v1770
        %2011 = vmatprep.subr.bf16.mxu0 0
        %2012 = vmatpush1.bf16.xpose.msra.mxu0 %v1773
        %2013 = vmatprep.subr.bf16.mxu0 0
        %2014 = vmatpush1.bf16.xpose.msra.mxu0 %v1776
        %2015 = vmatprep.subr.bf16.mxu0 0
        %2016 = vmatpush1.bf16.xpose.msra.mxu0 %v1779
        %2017 = vmatprep.subr.bf16.mxu0 0
        %2018 = vmatpush1.bf16.xpose.msra.mxu0 %v1782
        %2019 = vmatprep.subr.bf16.mxu0 0
        %2020 = vmatpush1.bf16.xpose.msra.mxu0 %v1785
        %2021 = vmatprep.subr.bf16.mxu0 0
        %2022 = vmatpush1.bf16.xpose.msra.mxu0 %v1788
        %2023 = vmatprep.subr.bf16.mxu0 0
        %2024 = vmatpush1.bf16.xpose.msra.mxu0 %v1791
        %2025 = vmatprep.subr.bf16.mxu0 0
        %2026 = vmatpush1.bf16.xpose.msra.mxu0 %v1794
        %2027 = vmatprep.subr.bf16.mxu0 0
        %2028 = vmatpush1.bf16.xpose.msra.mxu0 %v1797
        %2029 = vmatprep.subr.bf16.mxu0 0
        %2030 = vmatpush1.bf16.xpose.msra.mxu0 %v1800
        %2031 = vmatprep.subr.bf16.mxu0 0
        %2032 = vmatpush1.bf16.xpose.msra.mxu0 %v1803
        %2033 = vmatprep.subr.bf16.mxu0 0
        %2034 = vmatpush1.bf16.xpose.msra.mxu0 %v1806
        %2035 = vmatprep.subr.bf16.mxu0 0
        %2036 = vmatpush1.bf16.xpose.msra.mxu0 %v1809
        %2037 = vmatprep.subr.bf16.mxu0 0
        %2038 = vmatpush1.bf16.xpose.msra.mxu0 %v1812
        %2039 = vmatprep.mubr.bf16.mxu0 0
        %2040 = vmatmul.mubr.bf16.gmra.mrb[0].mxu0 %v1671
        %v2041 = vpop.f32.mrb[0].mxu0
        %v2042 = vadd.f32 %v1660, %v2041
        %v2043 = vpop.f32.mrb[0].mxu0
        %v2044 = vadd.f32 %v1664, %v2043
        %v2045 = vpop.f32.mrb[0].mxu0
        %v2046 = vadd.f32 %v1660, %v2045
        %v2047 = vpop.f32.mrb[0].mxu0
        %v2048 = vadd.f32 %v1664, %v2047
        %2049 = vmatprep.mubr.bf16.mxu0 0
        %2050 = vmatmul.mubr.bf16.gmra.mrb[0].mxu0 %v1674
        %v2051 = vpop.f32.mrb[0].mxu0
        %v2052 = vadd.f32 %v1660, %v2051
        %v2053 = vpop.f32.mrb[0].mxu0
        %v2054 = vadd.f32 %v1664, %v2053
        %v2055 = vpop.f32.mrb[0].mxu0
        %v2056 = vadd.f32 %v1660, %v2055
        %v2057 = vpop.f32.mrb[0].mxu0
        %v2058 = vadd.f32 %v1664, %v2057
        %2059 = vmatprep.mubr.bf16.mxu0 0
        %2060 = vmatmul.mubr.bf16.gmra.mrb[0].mxu0 %v1677
        %v2061 = vpop.f32.mrb[0].mxu0
        %v2062 = vadd.f32 %v1660, %v2061
        %v2063 = vpop.f32.mrb[0].mxu0
        %v2064 = vadd.f32 %v1664, %v2063
        %v2065 = vpop.f32.mrb[0].mxu0
        %v2066 = vadd.f32 %v1660, %v2065
        %v2067 = vpop.f32.mrb[0].mxu0
        %v2068 = vadd.f32 %v1664, %v2067
        %2069 = vmatprep.mubr.bf16.mxu0 0
        %2070 = vmatmul.mubr.bf16.gmra.mrb[0].mxu0 %v1680
        %v2071 = vpop.f32.mrb[0].mxu0
        %v2072 = vadd.f32 %v1660, %v2071
        %v2073 = vpop.f32.mrb[0].mxu0
        %v2074 = vadd.f32 %v1664, %v2073
        %v2075 = vpop.f32.mrb[0].mxu0
        %v2076 = vadd.f32 %v1660, %v2075
        %v2077 = vpop.f32.mrb[0].mxu0
        %v2078 = vadd.f32 %v1664, %v2077
        %2079 = vmatprep.mubr.bf16.mxu0 0
        %2080 = vmatmul.mubr.bf16.gmra.mrb[0].mxu0 %v1683
        %v2081 = vpop.f32.mrb[0].mxu0
        %v2082 = vadd.f32 %v1660, %v2081
        %v2083 = vpop.f32.mrb[0].mxu0
        %v2084 = vadd.f32 %v1664, %v2083
        %v2085 = vpop.f32.mrb[0].mxu0
        %v2086 = vadd.f32 %v1660, %v2085
        %v2087 = vpop.f32.mrb[0].mxu0
        %v2088 = vadd.f32 %v1664, %v2087
        %2089 = vmatprep.mubr.bf16.mxu0 0
        %2090 = vmatmul.mubr.bf16.gmra.mrb[0].mxu0 %v1686
        %v2091 = vpop.f32.mrb[0].mxu0
        %v2092 = vadd.f32 %v1660, %v2091
        %v2093 = vpop.f32.mrb[0].mxu0
        %v2094 = vadd.f32 %v1664, %v2093
        %v2095 = vpop.f32.mrb[0].mxu0
        %v2096 = vadd.f32 %v1660, %v2095
        %v2097 = vpop.f32.mrb[0].mxu0
        %v2098 = vadd.f32 %v1664, %v2097
        %2099 = vmatprep.mubr.bf16.mxu0 0
        %2100 = vmatmul.mubr.bf16.gmra.mrb[0].mxu0 %v1689
        %v2101 = vpop.f32.mrb[0].mxu0
        %v2102 = vadd.f32 %v1660, %v2101
        %v2103 = vpop.f32.mrb[0].mxu0
        %v2104 = vadd.f32 %v1664, %v2103
        %v2105 = vpop.f32.mrb[0].mxu0
        %v2106 = vadd.f32 %v1660, %v2105
        %v2107 = vpop.f32.mrb[0].mxu0
        %v2108 = vadd.f32 %v1664, %v2107
        %2109 = vmatprep.mubr.bf16.mxu0 0
        %2110 = vmatmul.mubr.bf16.gmra.mrb[0].mxu0 %v1692
        %v2111 = vpop.f32.mrb[0].mxu0
        %v2112 = vadd.f32 %v1660, %v2111
        %v2113 = vpop.f32.mrb[0].mxu0
        %v2114 = vadd.f32 %v1664, %v2113
        %v2115 = vpop.f32.mrb[0].mxu0
        %v2116 = vadd.f32 %v1660, %v2115
        %v2117 = vpop.f32.mrb[0].mxu0
        %v2118 = vadd.f32 %v1664, %v2117
        %2119 = vmatprep.mubr.bf16.mxu0 0
        %2120 = vmatmul.mubr.bf16.gmra.mrb[0].mxu0 %v1695
        %v2121 = vpop.f32.mrb[0].mxu0
        %v2122 = vadd.f32 %v1660, %v2121
        %v2123 = vpop.f32.mrb[0].mxu0
        %v2124 = vadd.f32 %v1664, %v2123
        %v2125 = vpop.f32.mrb[0].mxu0
        %v2126 = vadd.f32 %v1660, %v2125
        %v2127 = vpop.f32.mrb[0].mxu0
        %v2128 = vadd.f32 %v1664, %v2127
        %2129 = vmatprep.mubr.bf16.mxu0 0
        %2130 = vmatmul.mubr.bf16.gmra.mrb[0].mxu0 %v1698
        %v2131 = vpop.f32.mrb[0].mxu0
        %v2132 = vadd.f32 %v1660, %v2131
        %v2133 = vpop.f32.mrb[0].mxu0
        %v2134 = vadd.f32 %v1664, %v2133
        %v2135 = vpop.f32.mrb[0].mxu0
        %v2136 = vadd.f32 %v1660, %v2135
        %v2137 = vpop.f32.mrb[0].mxu0
        %v2138 = vadd.f32 %v1664, %v2137
        %2139 = vmatprep.mubr.bf16.mxu0 0
        %2140 = vmatmul.mubr.bf16.gmra.mrb[0].mxu0 %v1701
        %v2141 = vpop.f32.mrb[0].mxu0
        %v2142 = vadd.f32 %v1660, %v2141
        %v2143 = vpop.f32.mrb[0].mxu0
        %v2144 = vadd.f32 %v1664, %v2143
        %v2145 = vpop.f32.mrb[0].mxu0
        %v2146 = vadd.f32 %v1660, %v2145
        %v2147 = vpop.f32.mrb[0].mxu0
        %v2148 = vadd.f32 %v1664, %v2147
        %2149 = vmatprep.mubr.bf16.mxu0 0
        %2150 = vmatmul.mubr.bf16.gmra.mrb[0].mxu0 %v1704
        %v2151 = vpop.f32.mrb[0].mxu0
        %v2152 = vadd.f32 %v1660, %v2151
        %v2153 = vpop.f32.mrb[0].mxu0
        %v2154 = vadd.f32 %v1664, %v2153
        %v2155 = vpop.f32.mrb[0].mxu0
        %v2156 = vadd.f32 %v1660, %v2155
        %v2157 = vpop.f32.mrb[0].mxu0
        %v2158 = vadd.f32 %v1664, %v2157
        %2159 = vmatprep.mubr.bf16.mxu0 0
        %2160 = vmatmul.mubr.bf16.gmra.mrb[0].mxu0 %v1707
        %v2161 = vpop.f32.mrb[0].mxu0
        %v2162 = vadd.f32 %v1660, %v2161
        %v2163 = vpop.f32.mrb[0].mxu0
        %v2164 = vadd.f32 %v1664, %v2163
        %v2165 = vpop.f32.mrb[0].mxu0
        %v2166 = vadd.f32 %v1660, %v2165
        %v2167 = vpop.f32.mrb[0].mxu0
        %v2168 = vadd.f32 %v1664, %v2167
        %2169 = vmatprep.mubr.bf16.mxu0 0
        %2170 = vmatmul.mubr.bf16.gmra.mrb[0].mxu0 %v1710
        %v2171 = vpop.f32.mrb[0].mxu0
        %v2172 = vadd.f32 %v1660, %v2171
        %v2173 = vpop.f32.mrb[0].mxu0
        %v2174 = vadd.f32 %v1664, %v2173
        %v2175 = vpop.f32.mrb[0].mxu0
        %v2176 = vadd.f32 %v1660, %v2175
        %v2177 = vpop.f32.mrb[0].mxu0
        %v2178 = vadd.f32 %v1664, %v2177
        %2179 = vmatprep.mubr.bf16.mxu0 0
        %2180 = vmatmul.mubr.bf16.gmra.mrb[0].mxu0 %v1713
        %v2181 = vpop.f32.mrb[0].mxu0
        %v2182 = vadd.f32 %v1660, %v2181
        %v2183 = vpop.f32.mrb[0].mxu0
        %v2184 = vadd.f32 %v1664, %v2183
        %v2185 = vpop.f32.mrb[0].mxu0
        %v2186 = vadd.f32 %v1660, %v2185
        %v2187 = vpop.f32.mrb[0].mxu0
        %v2188 = vadd.f32 %v1664, %v2187
        %2189 = vmatprep.mubr.bf16.mxu0 0
        %2190 = vmatmul.mubr.bf16.gmra.mrb[0].mxu0 %v1716
        %v2191 = vpop.f32.mrb[0].mxu0
        %v2192 = vadd.f32 %v1660, %v2191
        %v2193 = vpop.f32.mrb[0].mxu0
        %v2194 = vadd.f32 %v1664, %v2193
        %v2195 = vpop.f32.mrb[0].mxu0
        %v2196 = vadd.f32 %v1660, %v2195
        %v2197 = vpop.f32.mrb[0].mxu0
        %v2198 = vadd.f32 %v1664, %v2197
        %2199 = vdwg.mxu0
        %v2200 = vmax.f32 %v1849, %v1851
        %v2201 = vmax.f32 %v2200, %v2042
        %v2202 = vmax.f32 %v2201, %v2044
        %2203 = vmax.xlane.f32.xlu0 %v2202
        %v2204 = vpop.xlane.xlu0 %2203
        %v2205 = vmax.f32 %v1853, %v1855
        %v2206 = vmax.f32 %v2205, %v2046
        %v2207 = vmax.f32 %v2206, %v2048
        %2208 = vmax.xlane.f32.xlu0 %v2207
        %v2209 = vpop.xlane.xlu0 %2208
        %v2210 = vmax.f32 %v1859, %v1861
        %v2211 = vmax.f32 %v2210, %v2052
        %v2212 = vmax.f32 %v2211, %v2054
        %2213 = vmax.xlane.f32.xlu0 %v2212
        %v2214 = vpop.xlane.xlu0 %2213
        %v2215 = vmax.f32 %v1863, %v1865
        %v2216 = vmax.f32 %v2215, %v2056
        %v2217 = vmax.f32 %v2216, %v2058
        %2218 = vmax.xlane.f32.xlu0 %v2217
        %v2219 = vpop.xlane.xlu0 %2218
        %v2220 = vmax.f32 %v1869, %v1871
        %v2221 = vmax.f32 %v2220, %v2062
        %v2222 = vmax.f32 %v2221, %v2064
        %2223 = vmax.xlane.f32.xlu0 %v2222
        %v2224 = vpop.xlane.xlu0 %2223
        %v2225 = vmax.f32 %v1873, %v1875
        %v2226 = vmax.f32 %v2225, %v2066
        %v2227 = vmax.f32 %v2226, %v2068
        %2228 = vmax.xlane.f32.xlu0 %v2227
        %v2229 = vpop.xlane.xlu0 %2228
        %v2230 = vmax.f32 %v1879, %v1881
        %v2231 = vmax.f32 %v2230, %v2072
        %v2232 = vmax.f32 %v2231, %v2074
        %2233 = vmax.xlane.f32.xlu0 %v2232
        %v2234 = vpop.xlane.xlu0 %2233
        %v2235 = vmax.f32 %v1883, %v1885
        %v2236 = vmax.f32 %v2235, %v2076
        %v2237 = vmax.f32 %v2236, %v2078
        %2238 = vmax.xlane.f32.xlu0 %v2237
        %v2239 = vpop.xlane.xlu0 %2238
        %v2240 = vmax.f32 %v1889, %v1891
        %v2241 = vmax.f32 %v2240, %v2082
        %v2242 = vmax.f32 %v2241, %v2084
        %2243 = vmax.xlane.f32.xlu0 %v2242
        %v2244 = vpop.xlane.xlu0 %2243
        %v2245 = vmax.f32 %v1893, %v1895
        %v2246 = vmax.f32 %v2245, %v2086
        %v2247 = vmax.f32 %v2246, %v2088
        %2248 = vmax.xlane.f32.xlu0 %v2247
        %v2249 = vpop.xlane.xlu0 %2248
        %v2250 = vmax.f32 %v1899, %v1901
        %v2251 = vmax.f32 %v2250, %v2092
        %v2252 = vmax.f32 %v2251, %v2094
        %2253 = vmax.xlane.f32.xlu0 %v2252
        %v2254 = vpop.xlane.xlu0 %2253
        %v2255 = vmax.f32 %v1903, %v1905
        %v2256 = vmax.f32 %v2255, %v2096
        %v2257 = vmax.f32 %v2256, %v2098
        %2258 = vmax.xlane.f32.xlu0 %v2257
        %v2259 = vpop.xlane.xlu0 %2258
        %v2260 = vmax.f32 %v1909, %v1911
        %v2261 = vmax.f32 %v2260, %v2102
        %v2262 = vmax.f32 %v2261, %v2104
        %2263 = vmax.xlane.f32.xlu0 %v2262
        %v2264 = vpop.xlane.xlu0 %2263
        %v2265 = vmax.f32 %v1913, %v1915
        %v2266 = vmax.f32 %v2265, %v2106
        %v2267 = vmax.f32 %v2266, %v2108
        %2268 = vmax.xlane.f32.xlu0 %v2267
        %v2269 = vpop.xlane.xlu0 %2268
        %v2270 = vmax.f32 %v1919, %v1921
        %v2271 = vmax.f32 %v2270, %v2112
        %v2272 = vmax.f32 %v2271, %v2114
        %2273 = vmax.xlane.f32.xlu0 %v2272
        %v2274 = vpop.xlane.xlu0 %2273
        %v2275 = vmax.f32 %v1923, %v1925
        %v2276 = vmax.f32 %v2275, %v2116
        %v2277 = vmax.f32 %v2276, %v2118
        %2278 = vmax.xlane.f32.xlu0 %v2277
        %v2279 = vpop.xlane.xlu0 %2278
        %v2280 = vmax.f32 %v1929, %v1931
        %v2281 = vmax.f32 %v2280, %v2122
        %v2282 = vmax.f32 %v2281, %v2124
        %2283 = vmax.xlane.f32.xlu0 %v2282
        %v2284 = vpop.xlane.xlu0 %2283
        %v2285 = vmax.f32 %v1933, %v1935
        %v2286 = vmax.f32 %v2285, %v2126
        %v2287 = vmax.f32 %v2286, %v2128
        %2288 = vmax.xlane.f32.xlu0 %v2287
        %v2289 = vpop.xlane.xlu0 %2288
        %v2290 = vmax.f32 %v1939, %v1941
        %v2291 = vmax.f32 %v2290, %v2132
        %v2292 = vmax.f32 %v2291, %v2134
        %2293 = vmax.xlane.f32.xlu0 %v2292
        %v2294 = vpop.xlane.xlu0 %2293
        %v2295 = vmax.f32 %v1943, %v1945
        %v2296 = vmax.f32 %v2295, %v2136
        %v2297 = vmax.f32 %v2296, %v2138
        %2298 = vmax.xlane.f32.xlu0 %v2297
        %v2299 = vpop.xlane.xlu0 %2298
        %v2300 = vmax.f32 %v1949, %v1951
        %v2301 = vmax.f32 %v2300, %v2142
        %v2302 = vmax.f32 %v2301, %v2144
        %2303 = vmax.xlane.f32.xlu0 %v2302
        %v2304 = vpop.xlane.xlu0 %2303
        %v2305 = vmax.f32 %v1953, %v1955
        %v2306 = vmax.f32 %v2305, %v2146
        %v2307 = vmax.f32 %v2306, %v2148
        %2308 = vmax.xlane.f32.xlu0 %v2307
        %v2309 = vpop.xlane.xlu0 %2308
        %v2310 = vmax.f32 %v1959, %v1961
        %v2311 = vmax.f32 %v2310, %v2152
        %v2312 = vmax.f32 %v2311, %v2154
        %2313 = vmax.xlane.f32.xlu0 %v2312
        %v2314 = vpop.xlane.xlu0 %2313
        %v2315 = vmax.f32 %v1963, %v1965
        %v2316 = vmax.f32 %v2315, %v2156
        %v2317 = vmax.f32 %v2316, %v2158
        %2318 = vmax.xlane.f32.xlu0 %v2317
        %v2319 = vpop.xlane.xlu0 %2318
        %v2320 = vmax.f32 %v1969, %v1971
        %v2321 = vmax.f32 %v2320, %v2162
        %v2322 = vmax.f32 %v2321, %v2164
        %2323 = vmax.xlane.f32.xlu0 %v2322
        %v2324 = vpop.xlane.xlu0 %2323
        %v2325 = vmax.f32 %v1973, %v1975
        %v2326 = vmax.f32 %v2325, %v2166
        %v2327 = vmax.f32 %v2326, %v2168
        %2328 = vmax.xlane.f32.xlu0 %v2327
        %v2329 = vpop.xlane.xlu0 %2328
        %v2330 = vmax.f32 %v1979, %v1981
        %v2331 = vmax.f32 %v2330, %v2172
        %v2332 = vmax.f32 %v2331, %v2174
        %2333 = vmax.xlane.f32.xlu0 %v2332
        %v2334 = vpop.xlane.xlu0 %2333
        %v2335 = vmax.f32 %v1983, %v1985
        %v2336 = vmax.f32 %v2335, %v2176
        %v2337 = vmax.f32 %v2336, %v2178
        %2338 = vmax.xlane.f32.xlu0 %v2337
        %v2339 = vpop.xlane.xlu0 %2338
        %v2340 = vmax.f32 %v1989, %v1991
        %v2341 = vmax.f32 %v2340, %v2182
        %v2342 = vmax.f32 %v2341, %v2184
        %2343 = vmax.xlane.f32.xlu0 %v2342
        %v2344 = vpop.xlane.xlu0 %2343
        %v2345 = vmax.f32 %v1993, %v1995
        %v2346 = vmax.f32 %v2345, %v2186
        %v2347 = vmax.f32 %v2346, %v2188
        %2348 = vmax.xlane.f32.xlu0 %v2347
        %v2349 = vpop.xlane.xlu0 %2348
        %v2350 = vmax.f32 %v1999, %v2001
        %v2351 = vmax.f32 %v2350, %v2192
        %v2352 = vmax.f32 %v2351, %v2194
        %2353 = vmax.xlane.f32.xlu0 %v2352
        %v2354 = vpop.xlane.xlu0 %2353
        %v2355 = vmax.f32 %v2003, %v2005
        %v2356 = vmax.f32 %v2355, %v2196
        %v2357 = vmax.f32 %v2356, %v2198
        %2358 = vmax.xlane.f32.xlu0 %v2357
        %v2359 = vpop.xlane.xlu0 %2358
        %v2360 = vsub.f32 %v1849, %v2204
        %v2361 = vsub.f32 %v1851, %v2204
        %v2362 = vsub.f32 %v2042, %v2204
        %v2363 = vsub.f32 %v2044, %v2204
        %v2364 = vsub.f32 %v1853, %v2209
        %v2365 = vsub.f32 %v1855, %v2209
        %v2366 = vsub.f32 %v2046, %v2209
        %v2367 = vsub.f32 %v2048, %v2209
        %v2368 = vsub.f32 %v1859, %v2214
        %v2369 = vsub.f32 %v1861, %v2214
        %v2370 = vsub.f32 %v2052, %v2214
        %v2371 = vsub.f32 %v2054, %v2214
        %v2372 = vsub.f32 %v1863, %v2219
        %v2373 = vsub.f32 %v1865, %v2219
        %v2374 = vsub.f32 %v2056, %v2219
        %v2375 = vsub.f32 %v2058, %v2219
        %v2376 = vsub.f32 %v1869, %v2224
        %v2377 = vsub.f32 %v1871, %v2224
        %v2378 = vsub.f32 %v2062, %v2224
        %v2379 = vsub.f32 %v2064, %v2224
        %v2380 = vsub.f32 %v1873, %v2229
        %v2381 = vsub.f32 %v1875, %v2229
        %v2382 = vsub.f32 %v2066, %v2229
        %v2383 = vsub.f32 %v2068, %v2229
        %v2384 = vsub.f32 %v1879, %v2234
        %v2385 = vsub.f32 %v1881, %v2234
        %v2386 = vsub.f32 %v2072, %v2234
        %v2387 = vsub.f32 %v2074, %v2234
        %v2388 = vsub.f32 %v1883, %v2239
        %v2389 = vsub.f32 %v1885, %v2239
        %v2390 = vsub.f32 %v2076, %v2239
        %v2391 = vsub.f32 %v2078, %v2239
        %v2392 = vsub.f32 %v1889, %v2244
        %v2393 = vsub.f32 %v1891, %v2244
        %v2394 = vsub.f32 %v2082, %v2244
        %v2395 = vsub.f32 %v2084, %v2244
        %v2396 = vsub.f32 %v1893, %v2249
        %v2397 = vsub.f32 %v1895, %v2249
        %v2398 = vsub.f32 %v2086, %v2249
        %v2399 = vsub.f32 %v2088, %v2249
        %v2400 = vsub.f32 %v1899, %v2254
        %v2401 = vsub.f32 %v1901, %v2254
        %v2402 = vsub.f32 %v2092, %v2254
        %v2403 = vsub.f32 %v2094, %v2254
        %v2404 = vsub.f32 %v1903, %v2259
        %v2405 = vsub.f32 %v1905, %v2259
        %v2406 = vsub.f32 %v2096, %v2259
        %v2407 = vsub.f32 %v2098, %v2259
        %v2408 = vsub.f32 %v1909, %v2264
        %v2409 = vsub.f32 %v1911, %v2264
        %v2410 = vsub.f32 %v2102, %v2264
        %v2411 = vsub.f32 %v2104, %v2264
        %v2412 = vsub.f32 %v1913, %v2269
        %v2413 = vsub.f32 %v1915, %v2269
        %v2414 = vsub.f32 %v2106, %v2269
        %v2415 = vsub.f32 %v2108, %v2269
        %v2416 = vsub.f32 %v1919, %v2274
        %v2417 = vsub.f32 %v1921, %v2274
        %v2418 = vsub.f32 %v2112, %v2274
        %v2419 = vsub.f32 %v2114, %v2274
        %v2420 = vsub.f32 %v1923, %v2279
        %v2421 = vsub.f32 %v1925, %v2279
        %v2422 = vsub.f32 %v2116, %v2279
        %v2423 = vsub.f32 %v2118, %v2279
        %v2424 = vsub.f32 %v1929, %v2284
        %v2425 = vsub.f32 %v1931, %v2284
        %v2426 = vsub.f32 %v2122, %v2284
        %v2427 = vsub.f32 %v2124, %v2284
        %v2428 = vsub.f32 %v1933, %v2289
        %v2429 = vsub.f32 %v1935, %v2289
        %v2430 = vsub.f32 %v2126, %v2289
        %v2431 = vsub.f32 %v2128, %v2289
        %v2432 = vsub.f32 %v1939, %v2294
        %v2433 = vsub.f32 %v1941, %v2294
        %v2434 = vsub.f32 %v2132, %v2294
        %v2435 = vsub.f32 %v2134, %v2294
        %v2436 = vsub.f32 %v1943, %v2299
        %v2437 = vsub.f32 %v1945, %v2299
        %v2438 = vsub.f32 %v2136, %v2299
        %v2439 = vsub.f32 %v2138, %v2299
        %v2440 = vsub.f32 %v1949, %v2304
        %v2441 = vsub.f32 %v1951, %v2304
        %v2442 = vsub.f32 %v2142, %v2304
        %v2443 = vsub.f32 %v2144, %v2304
        %v2444 = vsub.f32 %v1953, %v2309
        %v2445 = vsub.f32 %v1955, %v2309
        %v2446 = vsub.f32 %v2146, %v2309
        %v2447 = vsub.f32 %v2148, %v2309
        %v2448 = vsub.f32 %v1959, %v2314
        %v2449 = vsub.f32 %v1961, %v2314
        %v2450 = vsub.f32 %v2152, %v2314
        %v2451 = vsub.f32 %v2154, %v2314
        %v2452 = vsub.f32 %v1963, %v2319
        %v2453 = vsub.f32 %v1965, %v2319
        %v2454 = vsub.f32 %v2156, %v2319
        %v2455 = vsub.f32 %v2158, %v2319
        %v2456 = vsub.f32 %v1969, %v2324
        %v2457 = vsub.f32 %v1971, %v2324
        %v2458 = vsub.f32 %v2162, %v2324
        %v2459 = vsub.f32 %v2164, %v2324
        %v2460 = vsub.f32 %v1973, %v2329
        %v2461 = vsub.f32 %v1975, %v2329
        %v2462 = vsub.f32 %v2166, %v2329
        %v2463 = vsub.f32 %v2168, %v2329
        %v2464 = vsub.f32 %v1979, %v2334
        %v2465 = vsub.f32 %v1981, %v2334
        %v2466 = vsub.f32 %v2172, %v2334
        %v2467 = vsub.f32 %v2174, %v2334
        %v2468 = vsub.f32 %v1983, %v2339
        %v2469 = vsub.f32 %v1985, %v2339
        %v2470 = vsub.f32 %v2176, %v2339
        %v2471 = vsub.f32 %v2178, %v2339
        %v2472 = vsub.f32 %v1989, %v2344
        %v2473 = vsub.f32 %v1991, %v2344
        %v2474 = vsub.f32 %v2182, %v2344
        %v2475 = vsub.f32 %v2184, %v2344
        %v2476 = vsub.f32 %v1993, %v2349
        %v2477 = vsub.f32 %v1995, %v2349
        %v2478 = vsub.f32 %v2186, %v2349
        %v2479 = vsub.f32 %v2188, %v2349
        %v2480 = vsub.f32 %v1999, %v2354
        %v2481 = vsub.f32 %v2001, %v2354
        %v2482 = vsub.f32 %v2192, %v2354
        %v2483 = vsub.f32 %v2194, %v2354
        %v2484 = vsub.f32 %v2003, %v2359
        %v2485 = vsub.f32 %v2005, %v2359
        %v2486 = vsub.f32 %v2196, %v2359
        %v2487 = vsub.f32 %v2198, %v2359
        %v2488 = vmul.f32 %v2360, 1.442695
        %v2489 = vpow.pop %v2488
        %v2490 = vmul.f32 %v2361, 1.442695
        %v2491 = vpow.pop %v2490
        %v2492 = vmul.f32 %v2362, 1.442695
        %v2493 = vpow.pop %v2492
        %v2494 = vmul.f32 %v2363, 1.442695
        %v2495 = vpow.pop %v2494
        %v2496 = vmul.f32 %v2364, 1.442695
        %v2497 = vpow.pop %v2496
        %v2498 = vmul.f32 %v2365, 1.442695
        %v2499 = vpow.pop %v2498
        %v2500 = vmul.f32 %v2366, 1.442695
        %v2501 = vpow.pop %v2500
        %v2502 = vmul.f32 %v2367, 1.442695
        %v2503 = vpow.pop %v2502
        %v2504 = vmul.f32 %v2368, 1.442695
        %v2505 = vpow.pop %v2504
        %v2506 = vmul.f32 %v2369, 1.442695
        %v2507 = vpow.pop %v2506
        %v2508 = vmul.f32 %v2370, 1.442695
        %v2509 = vpow.pop %v2508
        %v2510 = vmul.f32 %v2371, 1.442695
        %v2511 = vpow.pop %v2510
        %v2512 = vmul.f32 %v2372, 1.442695
        %v2513 = vpow.pop %v2512
        %v2514 = vmul.f32 %v2373, 1.442695
        %v2515 = vpow.pop %v2514
        %v2516 = vmul.f32 %v2374, 1.442695
        %v2517 = vpow.pop %v2516
        %v2518 = vmul.f32 %v2375, 1.442695
        %v2519 = vpow.pop %v2518
        %v2520 = vmul.f32 %v2376, 1.442695
        %v2521 = vpow.pop %v2520
        %v2522 = vmul.f32 %v2377, 1.442695
        %v2523 = vpow.pop %v2522
        %v2524 = vmul.f32 %v2378, 1.442695
        %v2525 = vpow.pop %v2524
        %v2526 = vmul.f32 %v2379, 1.442695
        %v2527 = vpow.pop %v2526
        %v2528 = vmul.f32 %v2380, 1.442695
        %v2529 = vpow.pop %v2528
        %v2530 = vmul.f32 %v2381, 1.442695
        %v2531 = vpow.pop %v2530
        %v2532 = vmul.f32 %v2382, 1.442695
        %v2533 = vpow.pop %v2532
        %v2534 = vmul.f32 %v2383, 1.442695
        %v2535 = vpow.pop %v2534
        %v2536 = vmul.f32 %v2384, 1.442695
        %v2537 = vpow.pop %v2536
        %v2538 = vmul.f32 %v2385, 1.442695
        %v2539 = vpow.pop %v2538
        %v2540 = vmul.f32 %v2386, 1.442695
        %v2541 = vpow.pop %v2540
        %v2542 = vmul.f32 %v2387, 1.442695
        %v2543 = vpow.pop %v2542
        %v2544 = vmul.f32 %v2388, 1.442695
        %v2545 = vpow.pop %v2544
        %v2546 = vmul.f32 %v2389, 1.442695
        %v2547 = vpow.pop %v2546
        %v2548 = vmul.f32 %v2390, 1.442695
        %v2549 = vpow.pop %v2548
        %v2550 = vmul.f32 %v2391, 1.442695
        %v2551 = vpow.pop %v2550
        %v2552 = vmul.f32 %v2392, 1.442695
        %v2553 = vpow.pop %v2552
        %v2554 = vmul.f32 %v2393, 1.442695
        %v2555 = vpow.pop %v2554
        %v2556 = vmul.f32 %v2394, 1.442695
        %v2557 = vpow.pop %v2556
        %v2558 = vmul.f32 %v2395, 1.442695
        %v2559 = vpow.pop %v2558
        %v2560 = vmul.f32 %v2396, 1.442695
        %v2561 = vpow.pop %v2560
        %v2562 = vmul.f32 %v2397, 1.442695
        %v2563 = vpow.pop %v2562
        %v2564 = vmul.f32 %v2398, 1.442695
        %v2565 = vpow.pop %v2564
        %v2566 = vmul.f32 %v2399, 1.442695
        %v2567 = vpow.pop %v2566
        %v2568 = vmul.f32 %v2400, 1.442695
        %v2569 = vpow.pop %v2568
        %v2570 = vmul.f32 %v2401, 1.442695
        %v2571 = vpow.pop %v2570
        %v2572 = vmul.f32 %v2402, 1.442695
        %v2573 = vpow.pop %v2572
        %v2574 = vmul.f32 %v2403, 1.442695
        %v2575 = vpow.pop %v2574
        %v2576 = vmul.f32 %v2404, 1.442695
        %v2577 = vpow.pop %v2576
        %v2578 = vmul.f32 %v2405, 1.442695
        %v2579 = vpow.pop %v2578
        %v2580 = vmul.f32 %v2406, 1.442695
        %v2581 = vpow.pop %v2580
        %v2582 = vmul.f32 %v2407, 1.442695
        %v2583 = vpow.pop %v2582
        %v2584 = vmul.f32 %v2408, 1.442695
        %v2585 = vpow.pop %v2584
        %v2586 = vmul.f32 %v2409, 1.442695
        %v2587 = vpow.pop %v2586
        %v2588 = vmul.f32 %v2410, 1.442695
        %v2589 = vpow.pop %v2588
        %v2590 = vmul.f32 %v2411, 1.442695
        %v2591 = vpow.pop %v2590
        %v2592 = vmul.f32 %v2412, 1.442695
        %v2593 = vpow.pop %v2592
        %v2594 = vmul.f32 %v2413, 1.442695
        %v2595 = vpow.pop %v2594
        %v2596 = vmul.f32 %v2414, 1.442695
        %v2597 = vpow.pop %v2596
        %v2598 = vmul.f32 %v2415, 1.442695
        %v2599 = vpow.pop %v2598
        %v2600 = vmul.f32 %v2416, 1.442695
        %v2601 = vpow.pop %v2600
        %v2602 = vmul.f32 %v2417, 1.442695
        %v2603 = vpow.pop %v2602
        %v2604 = vmul.f32 %v2418, 1.442695
        %v2605 = vpow.pop %v2604
        %v2606 = vmul.f32 %v2419, 1.442695
        %v2607 = vpow.pop %v2606
        %v2608 = vmul.f32 %v2420, 1.442695
        %v2609 = vpow.pop %v2608
        %v2610 = vmul.f32 %v2421, 1.442695
        %v2611 = vpow.pop %v2610
        %v2612 = vmul.f32 %v2422, 1.442695
        %v2613 = vpow.pop %v2612
        %v2614 = vmul.f32 %v2423, 1.442695
        %v2615 = vpow.pop %v2614
        %v2616 = vmul.f32 %v2424, 1.442695
        %v2617 = vpow.pop %v2616
        %v2618 = vmul.f32 %v2425, 1.442695
        %v2619 = vpow.pop %v2618
        %v2620 = vmul.f32 %v2426, 1.442695
        %v2621 = vpow.pop %v2620
        %v2622 = vmul.f32 %v2427, 1.442695
        %v2623 = vpow.pop %v2622
        %v2624 = vmul.f32 %v2428, 1.442695
        %v2625 = vpow.pop %v2624
        %v2626 = vmul.f32 %v2429, 1.442695
        %v2627 = vpow.pop %v2626
        %v2628 = vmul.f32 %v2430, 1.442695
        %v2629 = vpow.pop %v2628
        %v2630 = vmul.f32 %v2431, 1.442695
        %v2631 = vpow.pop %v2630
        %v2632 = vmul.f32 %v2432, 1.442695
        %v2633 = vpow.pop %v2632
        %v2634 = vmul.f32 %v2433, 1.442695
        %v2635 = vpow.pop %v2634
        %v2636 = vmul.f32 %v2434, 1.442695
        %v2637 = vpow.pop %v2636
        %v2638 = vmul.f32 %v2435, 1.442695
        %v2639 = vpow.pop %v2638
        %v2640 = vmul.f32 %v2436, 1.442695
        %v2641 = vpow.pop %v2640
        %v2642 = vmul.f32 %v2437, 1.442695
        %v2643 = vpow.pop %v2642
        %v2644 = vmul.f32 %v2438, 1.442695
        %v2645 = vpow.pop %v2644
        %v2646 = vmul.f32 %v2439, 1.442695
        %v2647 = vpow.pop %v2646
        %v2648 = vmul.f32 %v2440, 1.442695
        %v2649 = vpow.pop %v2648
        %v2650 = vmul.f32 %v2441, 1.442695
        %v2651 = vpow.pop %v2650
        %v2652 = vmul.f32 %v2442, 1.442695
        %v2653 = vpow.pop %v2652
        %v2654 = vmul.f32 %v2443, 1.442695
        %v2655 = vpow.pop %v2654
        %v2656 = vmul.f32 %v2444, 1.442695
        %v2657 = vpow.pop %v2656
        %v2658 = vmul.f32 %v2445, 1.442695
        %v2659 = vpow.pop %v2658
        %v2660 = vmul.f32 %v2446, 1.442695
        %v2661 = vpow.pop %v2660
        %v2662 = vmul.f32 %v2447, 1.442695
        %v2663 = vpow.pop %v2662
        %v2664 = vmul.f32 %v2448, 1.442695
        %v2665 = vpow.pop %v2664
        %v2666 = vmul.f32 %v2449, 1.442695
        %v2667 = vpow.pop %v2666
        %v2668 = vmul.f32 %v2450, 1.442695
        %v2669 = vpow.pop %v2668
        %v2670 = vmul.f32 %v2451, 1.442695
        %v2671 = vpow.pop %v2670
        %v2672 = vmul.f32 %v2452, 1.442695
        %v2673 = vpow.pop %v2672
        %v2674 = vmul.f32 %v2453, 1.442695
        %v2675 = vpow.pop %v2674
        %v2676 = vmul.f32 %v2454, 1.442695
        %v2677 = vpow.pop %v2676
        %v2678 = vmul.f32 %v2455, 1.442695
        %v2679 = vpow.pop %v2678
        %v2680 = vmul.f32 %v2456, 1.442695
        %v2681 = vpow.pop %v2680
        %v2682 = vmul.f32 %v2457, 1.442695
        %v2683 = vpow.pop %v2682
        %v2684 = vmul.f32 %v2458, 1.442695
        %v2685 = vpow.pop %v2684
        %v2686 = vmul.f32 %v2459, 1.442695
        %v2687 = vpow.pop %v2686
        %v2688 = vmul.f32 %v2460, 1.442695
        %v2689 = vpow.pop %v2688
        %v2690 = vmul.f32 %v2461, 1.442695
        %v2691 = vpow.pop %v2690
        %v2692 = vmul.f32 %v2462, 1.442695
        %v2693 = vpow.pop %v2692
        %v2694 = vmul.f32 %v2463, 1.442695
        %v2695 = vpow.pop %v2694
        %v2696 = vmul.f32 %v2464, 1.442695
        %v2697 = vpow.pop %v2696
        %v2698 = vmul.f32 %v2465, 1.442695
        %v2699 = vpow.pop %v2698
        %v2700 = vmul.f32 %v2466, 1.442695
        %v2701 = vpow.pop %v2700
        %v2702 = vmul.f32 %v2467, 1.442695
        %v2703 = vpow.pop %v2702
        %v2704 = vmul.f32 %v2468, 1.442695
        %v2705 = vpow.pop %v2704
        %v2706 = vmul.f32 %v2469, 1.442695
        %v2707 = vpow.pop %v2706
        %v2708 = vmul.f32 %v2470, 1.442695
        %v2709 = vpow.pop %v2708
        %v2710 = vmul.f32 %v2471, 1.442695
        %v2711 = vpow.pop %v2710
        %v2712 = vmul.f32 %v2472, 1.442695
        %v2713 = vpow.pop %v2712
        %v2714 = vmul.f32 %v2473, 1.442695
        %v2715 = vpow.pop %v2714
        %v2716 = vmul.f32 %v2474, 1.442695
        %v2717 = vpow.pop %v2716
        %v2718 = vmul.f32 %v2475, 1.442695
        %v2719 = vpow.pop %v2718
        %v2720 = vmul.f32 %v2476, 1.442695
        %v2721 = vpow.pop %v2720
        %v2722 = vmul.f32 %v2477, 1.442695
        %v2723 = vpow.pop %v2722
        %v2724 = vmul.f32 %v2478, 1.442695
        %v2725 = vpow.pop %v2724
        %v2726 = vmul.f32 %v2479, 1.442695
        %v2727 = vpow.pop %v2726
        %v2728 = vmul.f32 %v2480, 1.442695
        %v2729 = vpow.pop %v2728
        %v2730 = vmul.f32 %v2481, 1.442695
        %v2731 = vpow.pop %v2730
        %v2732 = vmul.f32 %v2482, 1.442695
        %v2733 = vpow.pop %v2732
        %v2734 = vmul.f32 %v2483, 1.442695
        %v2735 = vpow.pop %v2734
        %v2736 = vmul.f32 %v2484, 1.442695
        %v2737 = vpow.pop %v2736
        %v2738 = vmul.f32 %v2485, 1.442695
        %v2739 = vpow.pop %v2738
        %v2740 = vmul.f32 %v2486, 1.442695
        %v2741 = vpow.pop %v2740
        %v2742 = vmul.f32 %v2487, 1.442695
        %v2743 = vpow.pop %v2742
        %v2744 = vadd.f32 %v2489, %v2491
        %v2745 = vadd.f32 %v2744, %v2493
        %v2746 = vadd.f32 %v2745, %v2495
        %2747 = vadd.xlane.f32.xlu0 %v2746
        %v2748 = vpop.xlane.xlu0 %2747
        %v2749 = vadd.f32 %v2497, %v2499
        %v2750 = vadd.f32 %v2749, %v2501
        %v2751 = vadd.f32 %v2750, %v2503
        %2752 = vadd.xlane.f32.xlu0 %v2751
        %v2753 = vpop.xlane.xlu0 %2752
        %v2754 = vadd.f32 %v2505, %v2507
        %v2755 = vadd.f32 %v2754, %v2509
        %v2756 = vadd.f32 %v2755, %v2511
        %2757 = vadd.xlane.f32.xlu0 %v2756
        %v2758 = vpop.xlane.xlu0 %2757
        %v2759 = vadd.f32 %v2513, %v2515
        %v2760 = vadd.f32 %v2759, %v2517
        %v2761 = vadd.f32 %v2760, %v2519
        %2762 = vadd.xlane.f32.xlu0 %v2761
        %v2763 = vpop.xlane.xlu0 %2762
        %v2764 = vadd.f32 %v2521, %v2523
        %v2765 = vadd.f32 %v2764, %v2525
        %v2766 = vadd.f32 %v2765, %v2527
        %2767 = vadd.xlane.f32.xlu0 %v2766
        %v2768 = vpop.xlane.xlu0 %2767
        %v2769 = vadd.f32 %v2529, %v2531
        %v2770 = vadd.f32 %v2769, %v2533
        %v2771 = vadd.f32 %v2770, %v2535
        %2772 = vadd.xlane.f32.xlu0 %v2771
        %v2773 = vpop.xlane.xlu0 %2772
        %v2774 = vadd.f32 %v2537, %v2539
        %v2775 = vadd.f32 %v2774, %v2541
        %v2776 = vadd.f32 %v2775, %v2543
        %2777 = vadd.xlane.f32.xlu0 %v2776
        %v2778 = vpop.xlane.xlu0 %2777
        %v2779 = vadd.f32 %v2545, %v2547
        %v2780 = vadd.f32 %v2779, %v2549
        %v2781 = vadd.f32 %v2780, %v2551
        %2782 = vadd.xlane.f32.xlu0 %v2781
        %v2783 = vpop.xlane.xlu0 %2782
        %v2784 = vadd.f32 %v2553, %v2555
        %v2785 = vadd.f32 %v2784, %v2557
        %v2786 = vadd.f32 %v2785, %v2559
        %2787 = vadd.xlane.f32.xlu0 %v2786
        %v2788 = vpop.xlane.xlu0 %2787
        %v2789 = vadd.f32 %v2561, %v2563
        %v2790 = vadd.f32 %v2789, %v2565
        %v2791 = vadd.f32 %v2790, %v2567
        %2792 = vadd.xlane.f32.xlu0 %v2791
        %v2793 = vpop.xlane.xlu0 %2792
        %v2794 = vadd.f32 %v2569, %v2571
        %v2795 = vadd.f32 %v2794, %v2573
        %v2796 = vadd.f32 %v2795, %v2575
        %2797 = vadd.xlane.f32.xlu0 %v2796
        %v2798 = vpop.xlane.xlu0 %2797
        %v2799 = vadd.f32 %v2577, %v2579
        %v2800 = vadd.f32 %v2799, %v2581
        %v2801 = vadd.f32 %v2800, %v2583
        %2802 = vadd.xlane.f32.xlu0 %v2801
        %v2803 = vpop.xlane.xlu0 %2802
        %v2804 = vadd.f32 %v2585, %v2587
        %v2805 = vadd.f32 %v2804, %v2589
        %v2806 = vadd.f32 %v2805, %v2591
        %2807 = vadd.xlane.f32.xlu0 %v2806
        %v2808 = vpop.xlane.xlu0 %2807
        %v2809 = vadd.f32 %v2593, %v2595
        %v2810 = vadd.f32 %v2809, %v2597
        %v2811 = vadd.f32 %v2810, %v2599
        %2812 = vadd.xlane.f32.xlu0 %v2811
        %v2813 = vpop.xlane.xlu0 %2812
        %v2814 = vadd.f32 %v2601, %v2603
        %v2815 = vadd.f32 %v2814, %v2605
        %v2816 = vadd.f32 %v2815, %v2607
        %2817 = vadd.xlane.f32.xlu0 %v2816
        %v2818 = vpop.xlane.xlu0 %2817
        %v2819 = vadd.f32 %v2609, %v2611
        %v2820 = vadd.f32 %v2819, %v2613
        %v2821 = vadd.f32 %v2820, %v2615
        %2822 = vadd.xlane.f32.xlu0 %v2821
        %v2823 = vpop.xlane.xlu0 %2822
        %v2824 = vadd.f32 %v2617, %v2619
        %v2825 = vadd.f32 %v2824, %v2621
        %v2826 = vadd.f32 %v2825, %v2623
        %2827 = vadd.xlane.f32.xlu0 %v2826
        %v2828 = vpop.xlane.xlu0 %2827
        %v2829 = vadd.f32 %v2625, %v2627
        %v2830 = vadd.f32 %v2829, %v2629
        %v2831 = vadd.f32 %v2830, %v2631
        %2832 = vadd.xlane.f32.xlu0 %v2831
        %v2833 = vpop.xlane.xlu0 %2832
        %v2834 = vadd.f32 %v2633, %v2635
        %v2835 = vadd.f32 %v2834, %v2637
        %v2836 = vadd.f32 %v2835, %v2639
        %2837 = vadd.xlane.f32.xlu0 %v2836
        %v2838 = vpop.xlane.xlu0 %2837
        %v2839 = vadd.f32 %v2641, %v2643
        %v2840 = vadd.f32 %v2839, %v2645
        %v2841 = vadd.f32 %v2840, %v2647
        %2842 = vadd.xlane.f32.xlu0 %v2841
        %v2843 = vpop.xlane.xlu0 %2842
        %v2844 = vadd.f32 %v2649, %v2651
        %v2845 = vadd.f32 %v2844, %v2653
        %v2846 = vadd.f32 %v2845, %v2655
        %2847 = vadd.xlane.f32.xlu0 %v2846
        %v2848 = vpop.xlane.xlu0 %2847
        %v2849 = vadd.f32 %v2657, %v2659
        %v2850 = vadd.f32 %v2849, %v2661
        %v2851 = vadd.f32 %v2850, %v2663
        %2852 = vadd.xlane.f32.xlu0 %v2851
        %v2853 = vpop.xlane.xlu0 %2852
        %v2854 = vadd.f32 %v2665, %v2667
        %v2855 = vadd.f32 %v2854, %v2669
        %v2856 = vadd.f32 %v2855, %v2671
        %2857 = vadd.xlane.f32.xlu0 %v2856
        %v2858 = vpop.xlane.xlu0 %2857
        %v2859 = vadd.f32 %v2673, %v2675
        %v2860 = vadd.f32 %v2859, %v2677
        %v2861 = vadd.f32 %v2860, %v2679
        %2862 = vadd.xlane.f32.xlu0 %v2861
        %v2863 = vpop.xlane.xlu0 %2862
        %v2864 = vadd.f32 %v2681, %v2683
        %v2865 = vadd.f32 %v2864, %v2685
        %v2866 = vadd.f32 %v2865, %v2687
        %2867 = vadd.xlane.f32.xlu0 %v2866
        %v2868 = vpop.xlane.xlu0 %2867
        %v2869 = vadd.f32 %v2689, %v2691
        %v2870 = vadd.f32 %v2869, %v2693
        %v2871 = vadd.f32 %v2870, %v2695
        %2872 = vadd.xlane.f32.xlu0 %v2871
        %v2873 = vpop.xlane.xlu0 %2872
        %v2874 = vadd.f32 %v2697, %v2699
        %v2875 = vadd.f32 %v2874, %v2701
        %v2876 = vadd.f32 %v2875, %v2703
        %2877 = vadd.xlane.f32.xlu0 %v2876
        %v2878 = vpop.xlane.xlu0 %2877
        %v2879 = vadd.f32 %v2705, %v2707
        %v2880 = vadd.f32 %v2879, %v2709
        %v2881 = vadd.f32 %v2880, %v2711
        %2882 = vadd.xlane.f32.xlu0 %v2881
        %v2883 = vpop.xlane.xlu0 %2882
        %v2884 = vadd.f32 %v2713, %v2715
        %v2885 = vadd.f32 %v2884, %v2717
        %v2886 = vadd.f32 %v2885, %v2719
        %2887 = vadd.xlane.f32.xlu0 %v2886
        %v2888 = vpop.xlane.xlu0 %2887
        %v2889 = vadd.f32 %v2721, %v2723
        %v2890 = vadd.f32 %v2889, %v2725
        %v2891 = vadd.f32 %v2890, %v2727
        %2892 = vadd.xlane.f32.xlu0 %v2891
        %v2893 = vpop.xlane.xlu0 %2892
        %v2894 = vadd.f32 %v2729, %v2731
        %v2895 = vadd.f32 %v2894, %v2733
        %v2896 = vadd.f32 %v2895, %v2735
        %2897 = vadd.xlane.f32.xlu0 %v2896
        %v2898 = vpop.xlane.xlu0 %2897
        %v2899 = vadd.f32 %v2737, %v2739
        %v2900 = vadd.f32 %v2899, %v2741
        %v2901 = vadd.f32 %v2900, %v2743
        %2902 = vadd.xlane.f32.xlu0 %v2901
        %v2903 = vpop.xlane.xlu0 %2902
        %v2904 = vmul.f32 %v2748, 0.5
        %v2905 = vmul.f32 %v2753, 0.5
        %v2906 = vmul.f32 %v2758, 0.5
        %v2907 = vmul.f32 %v2763, 0.5
        %v2908 = vmul.f32 %v2768, 0.5
        %v2909 = vmul.f32 %v2773, 0.5
        %v2910 = vmul.f32 %v2778, 0.5
        %v2911 = vmul.f32 %v2783, 0.5
        %v2912 = vmul.f32 %v2788, 0.5
        %v2913 = vmul.f32 %v2793, 0.5
        %v2914 = vmul.f32 %v2798, 0.5
        %v2915 = vmul.f32 %v2803, 0.5
        %v2916 = vmul.f32 %v2808, 0.5
        %v2917 = vmul.f32 %v2813, 0.5
        %v2918 = vmul.f32 %v2818, 0.5
        %v2919 = vmul.f32 %v2823, 0.5
        %v2920 = vmul.f32 %v2828, 0.5
        %v2921 = vmul.f32 %v2833, 0.5
        %v2922 = vmul.f32 %v2838, 0.5
        %v2923 = vmul.f32 %v2843, 0.5
        %v2924 = vmul.f32 %v2848, 0.5
        %v2925 = vmul.f32 %v2853, 0.5
        %v2926 = vmul.f32 %v2858, 0.5
        %v2927 = vmul.f32 %v2863, 0.5
        %v2928 = vmul.f32 %v2868, 0.5
        %v2929 = vmul.f32 %v2873, 0.5
        %v2930 = vmul.f32 %v2878, 0.5
        %v2931 = vmul.f32 %v2883, 0.5
        %v2932 = vmul.f32 %v2888, 0.5
        %v2933 = vmul.f32 %v2893, 0.5
        %v2934 = vmul.f32 %v2898, 0.5
        %v2935 = vmul.f32 %v2903, 0.5
        %vm2936 = vcmp.lt.f32.partialorder %v2489, %v2904
        %vm2937 = vcmp.lt.f32.partialorder %v2491, %v2904
        %vm2938 = vcmp.lt.f32.partialorder %v2493, %v2904
        %vm2939 = vcmp.lt.f32.partialorder %v2495, %v2904
        %vm2940 = vcmp.lt.f32.partialorder %v2497, %v2905
        %vm2941 = vcmp.lt.f32.partialorder %v2499, %v2905
        %vm2942 = vcmp.lt.f32.partialorder %v2501, %v2905
        %vm2943 = vcmp.lt.f32.partialorder %v2503, %v2905
        %vm2944 = vcmp.lt.f32.partialorder %v2505, %v2906
        %vm2945 = vcmp.lt.f32.partialorder %v2507, %v2906
        %vm2946 = vcmp.lt.f32.partialorder %v2509, %v2906
        %vm2947 = vcmp.lt.f32.partialorder %v2511, %v2906
        %vm2948 = vcmp.lt.f32.partialorder %v2513, %v2907
        %vm2949 = vcmp.lt.f32.partialorder %v2515, %v2907
        %vm2950 = vcmp.lt.f32.partialorder %v2517, %v2907
        %vm2951 = vcmp.lt.f32.partialorder %v2519, %v2907
        %vm2952 = vcmp.lt.f32.partialorder %v2521, %v2908
        %vm2953 = vcmp.lt.f32.partialorder %v2523, %v2908
        %vm2954 = vcmp.lt.f32.partialorder %v2525, %v2908
        %vm2955 = vcmp.lt.f32.partialorder %v2527, %v2908
        %vm2956 = vcmp.lt.f32.partialorder %v2529, %v2909
        %vm2957 = vcmp.lt.f32.partialorder %v2531, %v2909
        %vm2958 = vcmp.lt.f32.partialorder %v2533, %v2909
        %vm2959 = vcmp.lt.f32.partialorder %v2535, %v2909
        %vm2960 = vcmp.lt.f32.partialorder %v2537, %v2910
        %vm2961 = vcmp.lt.f32.partialorder %v2539, %v2910
        %vm2962 = vcmp.lt.f32.partialorder %v2541, %v2910
        %vm2963 = vcmp.lt.f32.partialorder %v2543, %v2910
        %vm2964 = vcmp.lt.f32.partialorder %v2545, %v2911
        %vm2965 = vcmp.lt.f32.partialorder %v2547, %v2911
        %vm2966 = vcmp.lt.f32.partialorder %v2549, %v2911
        %vm2967 = vcmp.lt.f32.partialorder %v2551, %v2911
        %vm2968 = vcmp.lt.f32.partialorder %v2553, %v2912
        %vm2969 = vcmp.lt.f32.partialorder %v2555, %v2912
        %vm2970 = vcmp.lt.f32.partialorder %v2557, %v2912
        %vm2971 = vcmp.lt.f32.partialorder %v2559, %v2912
        %vm2972 = vcmp.lt.f32.partialorder %v2561, %v2913
        %vm2973 = vcmp.lt.f32.partialorder %v2563, %v2913
        %vm2974 = vcmp.lt.f32.partialorder %v2565, %v2913
        %vm2975 = vcmp.lt.f32.partialorder %v2567, %v2913
        %vm2976 = vcmp.lt.f32.partialorder %v2569, %v2914
        %vm2977 = vcmp.lt.f32.partialorder %v2571, %v2914
        %vm2978 = vcmp.lt.f32.partialorder %v2573, %v2914
        %vm2979 = vcmp.lt.f32.partialorder %v2575, %v2914
        %vm2980 = vcmp.lt.f32.partialorder %v2577, %v2915
        %vm2981 = vcmp.lt.f32.partialorder %v2579, %v2915
        %vm2982 = vcmp.lt.f32.partialorder %v2581, %v2915
        %vm2983 = vcmp.lt.f32.partialorder %v2583, %v2915
        %vm2984 = vcmp.lt.f32.partialorder %v2585, %v2916
        %vm2985 = vcmp.lt.f32.partialorder %v2587, %v2916
        %vm2986 = vcmp.lt.f32.partialorder %v2589, %v2916
        %vm2987 = vcmp.lt.f32.partialorder %v2591, %v2916
        %vm2988 = vcmp.lt.f32.partialorder %v2593, %v2917
        %vm2989 = vcmp.lt.f32.partialorder %v2595, %v2917
        %vm2990 = vcmp.lt.f32.partialorder %v2597, %v2917
        %vm2991 = vcmp.lt.f32.partialorder %v2599, %v2917
        %vm2992 = vcmp.lt.f32.partialorder %v2601, %v2918
        %vm2993 = vcmp.lt.f32.partialorder %v2603, %v2918
        %vm2994 = vcmp.lt.f32.partialorder %v2605, %v2918
        %vm2995 = vcmp.lt.f32.partialorder %v2607, %v2918
        %vm2996 = vcmp.lt.f32.partialorder %v2609, %v2919
        %vm2997 = vcmp.lt.f32.partialorder %v2611, %v2919
        %vm2998 = vcmp.lt.f32.partialorder %v2613, %v2919
        %vm2999 = vcmp.lt.f32.partialorder %v2615, %v2919
        %vm3000 = vcmp.lt.f32.partialorder %v2617, %v2920
        %vm3001 = vcmp.lt.f32.partialorder %v2619, %v2920
        %vm3002 = vcmp.lt.f32.partialorder %v2621, %v2920
        %vm3003 = vcmp.lt.f32.partialorder %v2623, %v2920
        %vm3004 = vcmp.lt.f32.partialorder %v2625, %v2921
        %vm3005 = vcmp.lt.f32.partialorder %v2627, %v2921
        %vm3006 = vcmp.lt.f32.partialorder %v2629, %v2921
        %vm3007 = vcmp.lt.f32.partialorder %v2631, %v2921
        %vm3008 = vcmp.lt.f32.partialorder %v2633, %v2922
        %vm3009 = vcmp.lt.f32.partialorder %v2635, %v2922
        %vm3010 = vcmp.lt.f32.partialorder %v2637, %v2922
        %vm3011 = vcmp.lt.f32.partialorder %v2639, %v2922
        %vm3012 = vcmp.lt.f32.partialorder %v2641, %v2923
        %vm3013 = vcmp.lt.f32.partialorder %v2643, %v2923
        %vm3014 = vcmp.lt.f32.partialorder %v2645, %v2923
        %vm3015 = vcmp.lt.f32.partialorder %v2647, %v2923
        %vm3016 = vcmp.lt.f32.partialorder %v2649, %v2924
        %vm3017 = vcmp.lt.f32.partialorder %v2651, %v2924
        %vm3018 = vcmp.lt.f32.partialorder %v2653, %v2924
        %vm3019 = vcmp.lt.f32.partialorder %v2655, %v2924
        %vm3020 = vcmp.lt.f32.partialorder %v2657, %v2925
        %vm3021 = vcmp.lt.f32.partialorder %v2659, %v2925
        %vm3022 = vcmp.lt.f32.partialorder %v2661, %v2925
        %vm3023 = vcmp.lt.f32.partialorder %v2663, %v2925
        %vm3024 = vcmp.lt.f32.partialorder %v2665, %v2926
        %vm3025 = vcmp.lt.f32.partialorder %v2667, %v2926
        %vm3026 = vcmp.lt.f32.partialorder %v2669, %v2926
        %vm3027 = vcmp.lt.f32.partialorder %v2671, %v2926
        %vm3028 = vcmp.lt.f32.partialorder %v2673, %v2927
        %vm3029 = vcmp.lt.f32.partialorder %v2675, %v2927
        %vm3030 = vcmp.lt.f32.partialorder %v2677, %v2927
        %vm3031 = vcmp.lt.f32.partialorder %v2679, %v2927
        %vm3032 = vcmp.lt.f32.partialorder %v2681, %v2928
        %vm3033 = vcmp.lt.f32.partialorder %v2683, %v2928
        %vm3034 = vcmp.lt.f32.partialorder %v2685, %v2928
        %vm3035 = vcmp.lt.f32.partialorder %v2687, %v2928
        %vm3036 = vcmp.lt.f32.partialorder %v2689, %v2929
        %vm3037 = vcmp.lt.f32.partialorder %v2691, %v2929
        %vm3038 = vcmp.lt.f32.partialorder %v2693, %v2929
        %vm3039 = vcmp.lt.f32.partialorder %v2695, %v2929
        %vm3040 = vcmp.lt.f32.partialorder %v2697, %v2930
        %vm3041 = vcmp.lt.f32.partialorder %v2699, %v2930
        %vm3042 = vcmp.lt.f32.partialorder %v2701, %v2930
        %vm3043 = vcmp.lt.f32.partialorder %v2703, %v2930
        %vm3044 = vcmp.lt.f32.partialorder %v2705, %v2931
        %vm3045 = vcmp.lt.f32.partialorder %v2707, %v2931
        %vm3046 = vcmp.lt.f32.partialorder %v2709, %v2931
        %vm3047 = vcmp.lt.f32.partialorder %v2711, %v2931
        %vm3048 = vcmp.lt.f32.partialorder %v2713, %v2932
        %vm3049 = vcmp.lt.f32.partialorder %v2715, %v2932
        %vm3050 = vcmp.lt.f32.partialorder %v2717, %v2932
        %vm3051 = vcmp.lt.f32.partialorder %v2719, %v2932
        %vm3052 = vcmp.lt.f32.partialorder %v2721, %v2933
        %vm3053 = vcmp.lt.f32.partialorder %v2723, %v2933
        %vm3054 = vcmp.lt.f32.partialorder %v2725, %v2933
        %vm3055 = vcmp.lt.f32.partialorder %v2727, %v2933
        %vm3056 = vcmp.lt.f32.partialorder %v2729, %v2934
        %vm3057 = vcmp.lt.f32.partialorder %v2731, %v2934
        %vm3058 = vcmp.lt.f32.partialorder %v2733, %v2934
        %vm3059 = vcmp.lt.f32.partialorder %v2735, %v2934
        %vm3060 = vcmp.lt.f32.partialorder %v2737, %v2935
        %vm3061 = vcmp.lt.f32.partialorder %v2739, %v2935
        %vm3062 = vcmp.lt.f32.partialorder %v2741, %v2935
        %vm3063 = vcmp.lt.f32.partialorder %v2743, %v2935
        %v3064 = vsel %vm2936, %v2489, 0.0
        %v3065 = vsel %vm2937, %v2491, 0.0
        %v3066 = vsel %vm2938, %v2493, 0.0
        %v3067 = vsel %vm2939, %v2495, 0.0
        %v3068 = vsel %vm2940, %v2497, 0.0
        %v3069 = vsel %vm2941, %v2499, 0.0
        %v3070 = vsel %vm2942, %v2501, 0.0
        %v3071 = vsel %vm2943, %v2503, 0.0
        %v3072 = vsel %vm2944, %v2505, 0.0
        %v3073 = vsel %vm2945, %v2507, 0.0
        %v3074 = vsel %vm2946, %v2509, 0.0
        %v3075 = vsel %vm2947, %v2511, 0.0
        %v3076 = vsel %vm2948, %v2513, 0.0
        %v3077 = vsel %vm2949, %v2515, 0.0
        %v3078 = vsel %vm2950, %v2517, 0.0
        %v3079 = vsel %vm2951, %v2519, 0.0
        %v3080 = vsel %vm2952, %v2521, 0.0
        %v3081 = vsel %vm2953, %v2523, 0.0
        %v3082 = vsel %vm2954, %v2525, 0.0
        %v3083 = vsel %vm2955, %v2527, 0.0
        %v3084 = vsel %vm2956, %v2529, 0.0
        %v3085 = vsel %vm2957, %v2531, 0.0
        %v3086 = vsel %vm2958, %v2533, 0.0
        %v3087 = vsel %vm2959, %v2535, 0.0
        %v3088 = vsel %vm2960, %v2537, 0.0
        %v3089 = vsel %vm2961, %v2539, 0.0
        %v3090 = vsel %vm2962, %v2541, 0.0
        %v3091 = vsel %vm2963, %v2543, 0.0
        %v3092 = vsel %vm2964, %v2545, 0.0
        %v3093 = vsel %vm2965, %v2547, 0.0
        %v3094 = vsel %vm2966, %v2549, 0.0
        %v3095 = vsel %vm2967, %v2551, 0.0
        %v3096 = vsel %vm2968, %v2553, 0.0
        %v3097 = vsel %vm2969, %v2555, 0.0
        %v3098 = vsel %vm2970, %v2557, 0.0
        %v3099 = vsel %vm2971, %v2559, 0.0
        %v3100 = vsel %vm2972, %v2561, 0.0
        %v3101 = vsel %vm2973, %v2563, 0.0
        %v3102 = vsel %vm2974, %v2565, 0.0
        %v3103 = vsel %vm2975, %v2567, 0.0
        %v3104 = vsel %vm2976, %v2569, 0.0
        %v3105 = vsel %vm2977, %v2571, 0.0
        %v3106 = vsel %vm2978, %v2573, 0.0
        %v3107 = vsel %vm2979, %v2575, 0.0
        %v3108 = vsel %vm2980, %v2577, 0.0
        %v3109 = vsel %vm2981, %v2579, 0.0
        %v3110 = vsel %vm2982, %v2581, 0.0
        %v3111 = vsel %vm2983, %v2583, 0.0
        %v3112 = vsel %vm2984, %v2585, 0.0
        %v3113 = vsel %vm2985, %v2587, 0.0
        %v3114 = vsel %vm2986, %v2589, 0.0
        %v3115 = vsel %vm2987, %v2591, 0.0
        %v3116 = vsel %vm2988, %v2593, 0.0
        %v3117 = vsel %vm2989, %v2595, 0.0
        %v3118 = vsel %vm2990, %v2597, 0.0
        %v3119 = vsel %vm2991, %v2599, 0.0
        %v3120 = vsel %vm2992, %v2601, 0.0
        %v3121 = vsel %vm2993, %v2603, 0.0
        %v3122 = vsel %vm2994, %v2605, 0.0
        %v3123 = vsel %vm2995, %v2607, 0.0
        %v3124 = vsel %vm2996, %v2609, 0.0
        %v3125 = vsel %vm2997, %v2611, 0.0
        %v3126 = vsel %vm2998, %v2613, 0.0
        %v3127 = vsel %vm2999, %v2615, 0.0
        %v3128 = vsel %vm3000, %v2617, 0.0
        %v3129 = vsel %vm3001, %v2619, 0.0
        %v3130 = vsel %vm3002, %v2621, 0.0
        %v3131 = vsel %vm3003, %v2623, 0.0
        %v3132 = vsel %vm3004, %v2625, 0.0
        %v3133 = vsel %vm3005, %v2627, 0.0
        %v3134 = vsel %vm3006, %v2629, 0.0
        %v3135 = vsel %vm3007, %v2631, 0.0
        %v3136 = vsel %vm3008, %v2633, 0.0
        %v3137 = vsel %vm3009, %v2635, 0.0
        %v3138 = vsel %vm3010, %v2637, 0.0
        %v3139 = vsel %vm3011, %v2639, 0.0
        %v3140 = vsel %vm3012, %v2641, 0.0
        %v3141 = vsel %vm3013, %v2643, 0.0
        %v3142 = vsel %vm3014, %v2645, 0.0
        %v3143 = vsel %vm3015, %v2647, 0.0
        %v3144 = vsel %vm3016, %v2649, 0.0
        %v3145 = vsel %vm3017, %v2651, 0.0
        %v3146 = vsel %vm3018, %v2653, 0.0
        %v3147 = vsel %vm3019, %v2655, 0.0
        %v3148 = vsel %vm3020, %v2657, 0.0
        %v3149 = vsel %vm3021, %v2659, 0.0
        %v3150 = vsel %vm3022, %v2661, 0.0
        %v3151 = vsel %vm3023, %v2663, 0.0
        %v3152 = vsel %vm3024, %v2665, 0.0
        %v3153 = vsel %vm3025, %v2667, 0.0
        %v3154 = vsel %vm3026, %v2669, 0.0
        %v3155 = vsel %vm3027, %v2671, 0.0
        %v3156 = vsel %vm3028, %v2673, 0.0
        %v3157 = vsel %vm3029, %v2675, 0.0
        %v3158 = vsel %vm3030, %v2677, 0.0
        %v3159 = vsel %vm3031, %v2679, 0.0
        %v3160 = vsel %vm3032, %v2681, 0.0
        %v3161 = vsel %vm3033, %v2683, 0.0
        %v3162 = vsel %vm3034, %v2685, 0.0
        %v3163 = vsel %vm3035, %v2687, 0.0
        %v3164 = vsel %vm3036, %v2689, 0.0
        %v3165 = vsel %vm3037, %v2691, 0.0
        %v3166 = vsel %vm3038, %v2693, 0.0
        %v3167 = vsel %vm3039, %v2695, 0.0
        %v3168 = vsel %vm3040, %v2697, 0.0
        %v3169 = vsel %vm3041, %v2699, 0.0
        %v3170 = vsel %vm3042, %v2701, 0.0
        %v3171 = vsel %vm3043, %v2703, 0.0
        %v3172 = vsel %vm3044, %v2705, 0.0
        %v3173 = vsel %vm3045, %v2707, 0.0
        %v3174 = vsel %vm3046, %v2709, 0.0
        %v3175 = vsel %vm3047, %v2711, 0.0
        %v3176 = vsel %vm3048, %v2713, 0.0
        %v3177 = vsel %vm3049, %v2715, 0.0
        %v3178 = vsel %vm3050, %v2717, 0.0
        %v3179 = vsel %vm3051, %v2719, 0.0
        %v3180 = vsel %vm3052, %v2721, 0.0
        %v3181 = vsel %vm3053, %v2723, 0.0
        %v3182 = vsel %vm3054, %v2725, 0.0
        %v3183 = vsel %vm3055, %v2727, 0.0
        %v3184 = vsel %vm3056, %v2729, 0.0
        %v3185 = vsel %vm3057, %v2731, 0.0
        %v3186 = vsel %vm3058, %v2733, 0.0
        %v3187 = vsel %vm3059, %v2735, 0.0
        %v3188 = vsel %vm3060, %v2737, 0.0
        %v3189 = vsel %vm3061, %v2739, 0.0
        %v3190 = vsel %vm3062, %v2741, 0.0
        %v3191 = vsel %vm3063, %v2743, 0.0
        %v3192 = vpack.c.bf16 %v3068, %v3064
        %v3193 = vpack.c.bf16 %v3069, %v3065
        %v3194 = vpack.c.bf16 %v3070, %v3066
        %v3195 = vpack.c.bf16 %v3071, %v3067
        %v3196 = vpack.c.bf16 %v3076, %v3072
        %v3197 = vpack.c.bf16 %v3077, %v3073
        %v3198 = vpack.c.bf16 %v3078, %v3074
        %v3199 = vpack.c.bf16 %v3079, %v3075
        %v3200 = vpack.c.bf16 %v3084, %v3080
        %v3201 = vpack.c.bf16 %v3085, %v3081
        %v3202 = vpack.c.bf16 %v3086, %v3082
        %v3203 = vpack.c.bf16 %v3087, %v3083
        %v3204 = vpack.c.bf16 %v3092, %v3088
        %v3205 = vpack.c.bf16 %v3093, %v3089
        %v3206 = vpack.c.bf16 %v3094, %v3090
        %v3207 = vpack.c.bf16 %v3095, %v3091
        %v3208 = vpack.c.bf16 %v3100, %v3096
        %v3209 = vpack.c.bf16 %v3101, %v3097
        %v3210 = vpack.c.bf16 %v3102, %v3098
        %v3211 = vpack.c.bf16 %v3103, %v3099
        %v3212 = vpack.c.bf16 %v3108, %v3104
        %v3213 = vpack.c.bf16 %v3109, %v3105
        %v3214 = vpack.c.bf16 %v3110, %v3106
        %v3215 = vpack.c.bf16 %v3111, %v3107
        %v3216 = vpack.c.bf16 %v3116, %v3112
        %v3217 = vpack.c.bf16 %v3117, %v3113
        %v3218 = vpack.c.bf16 %v3118, %v3114
        %v3219 = vpack.c.bf16 %v3119, %v3115
        %v3220 = vpack.c.bf16 %v3124, %v3120
        %v3221 = vpack.c.bf16 %v3125, %v3121
        %v3222 = vpack.c.bf16 %v3126, %v3122
        %v3223 = vpack.c.bf16 %v3127, %v3123
        %v3224 = vpack.c.bf16 %v3132, %v3128
        %v3225 = vpack.c.bf16 %v3133, %v3129
        %v3226 = vpack.c.bf16 %v3134, %v3130
        %v3227 = vpack.c.bf16 %v3135, %v3131
        %v3228 = vpack.c.bf16 %v3140, %v3136
        %v3229 = vpack.c.bf16 %v3141, %v3137
        %v3230 = vpack.c.bf16 %v3142, %v3138
        %v3231 = vpack.c.bf16 %v3143, %v3139
        %v3232 = vpack.c.bf16 %v3148, %v3144
        %v3233 = vpack.c.bf16 %v3149, %v3145
        %v3234 = vpack.c.bf16 %v3150, %v3146
        %v3235 = vpack.c.bf16 %v3151, %v3147
        %v3236 = vpack.c.bf16 %v3156, %v3152
        %v3237 = vpack.c.bf16 %v3157, %v3153
        %v3238 = vpack.c.bf16 %v3158, %v3154
        %v3239 = vpack.c.bf16 %v3159, %v3155
        %v3240 = vpack.c.bf16 %v3164, %v3160
        %v3241 = vpack.c.bf16 %v3165, %v3161
        %v3242 = vpack.c.bf16 %v3166, %v3162
        %v3243 = vpack.c.bf16 %v3167, %v3163
        %v3244 = vpack.c.bf16 %v3172, %v3168
        %v3245 = vpack.c.bf16 %v3173, %v3169
        %v3246 = vpack.c.bf16 %v3174, %v3170
        %v3247 = vpack.c.bf16 %v3175, %v3171
        %v3248 = vpack.c.bf16 %v3180, %v3176
        %v3249 = vpack.c.bf16 %v3181, %v3177
        %v3250 = vpack.c.bf16 %v3182, %v3178
        %v3251 = vpack.c.bf16 %v3183, %v3179
        %v3252 = vpack.c.bf16 %v3188, %v3184
        %v3253 = vpack.c.bf16 %v3189, %v3185
        %v3254 = vpack.c.bf16 %v3190, %v3186
        %v3255 = vpack.c.bf16 %v3191, %v3187
        %v3256 = vld [vmem:[#allocation3] sm:$0xff]
        %v3257 = vld [vmem:[#allocation3 + $0x8] sm:$0xff]
        %v3258 = vld [vmem:[#allocation3 + $0x10] sm:$0xff]
        %v3259 = vld [vmem:[#allocation3 + $0x18] sm:$0xff]
        %v3260 = vld [vmem:[#allocation3 + $0x20] sm:$0xff]
        %v3261 = vld [vmem:[#allocation3 + $0x28] sm:$0xff]
        %v3262 = vld [vmem:[#allocation3 + $0x30] sm:$0xff]
        %v3263 = vld [vmem:[#allocation3 + $0x38] sm:$0xff]
        %v3264 = vld [vmem:[#allocation3 + $0x40] sm:$0xff]
        %v3265 = vld [vmem:[#allocation3 + $0x48] sm:$0xff]
        %v3266 = vld [vmem:[#allocation3 + $0x50] sm:$0xff]
        %v3267 = vld [vmem:[#allocation3 + $0x58] sm:$0xff]
        %v3268 = vld [vmem:[#allocation3 + $0x60] sm:$0xff]
        %v3269 = vld [vmem:[#allocation3 + $0x68] sm:$0xff]
        %v3270 = vld [vmem:[#allocation3 + $0x70] sm:$0xff]
        %v3271 = vld [vmem:[#allocation3 + $0x78] sm:$0xff]
        %v3272 = vld [vmem:[#allocation3 + $0x80] sm:$0xff]
        %v3273 = vld [vmem:[#allocation3 + $0x88] sm:$0xff]
        %v3274 = vld [vmem:[#allocation3 + $0x90] sm:$0xff]
        %v3275 = vld [vmem:[#allocation3 + $0x98] sm:$0xff]
        %v3276 = vld [vmem:[#allocation3 + $0xa0] sm:$0xff]
        %v3277 = vld [vmem:[#allocation3 + $0xa8] sm:$0xff]
        %v3278 = vld [vmem:[#allocation3 + $0xb0] sm:$0xff]
        %v3279 = vld [vmem:[#allocation3 + $0xb8] sm:$0xff]
        %v3280 = vld [vmem:[#allocation3 + $0xc0] sm:$0xff]
        %v3281 = vld [vmem:[#allocation3 + $0xc8] sm:$0xff]
        %v3282 = vld [vmem:[#allocation3 + $0xd0] sm:$0xff]
        %v3283 = vld [vmem:[#allocation3 + $0xd8] sm:$0xff]
        %v3284 = vld [vmem:[#allocation3 + $0xe0] sm:$0xff]
        %v3285 = vld [vmem:[#allocation3 + $0xe8] sm:$0xff]
        %v3286 = vld [vmem:[#allocation3 + $0xf0] sm:$0xff]
        %v3287 = vld [vmem:[#allocation3 + $0xf8] sm:$0xff]
        %3288 = vmatprep.subr.bf16.mxu0 0
        %3289 = vmatpush1.bf16.msra.mxu0 %v3256
        %3290 = vmatprep.subr.bf16.mxu0 0
        %3291 = vmatpush1.bf16.msra.mxu0 %v3257
        %3292 = vmatprep.subr.bf16.mxu0 0
        %3293 = vmatpush1.bf16.msra.mxu0 %v3258
        %3294 = vmatprep.subr.bf16.mxu0 0
        %3295 = vmatpush1.bf16.msra.mxu0 %v3259
        %3296 = vmatprep.subr.bf16.mxu0 0
        %3297 = vmatpush1.bf16.msra.mxu0 %v3260
        %3298 = vmatprep.subr.bf16.mxu0 0
        %3299 = vmatpush1.bf16.msra.mxu0 %v3261
        %3300 = vmatprep.subr.bf16.mxu0 0
        %3301 = vmatpush1.bf16.msra.mxu0 %v3262
        %3302 = vmatprep.subr.bf16.mxu0 0
        %3303 = vmatpush1.bf16.msra.mxu0 %v3263
        %3304 = vmatprep.subr.bf16.mxu0 0
        %3305 = vmatpush1.bf16.msra.mxu0 %v3264
        %3306 = vmatprep.subr.bf16.mxu0 0
        %3307 = vmatpush1.bf16.msra.mxu0 %v3265
        %3308 = vmatprep.subr.bf16.mxu0 0
        %3309 = vmatpush1.bf16.msra.mxu0 %v3266
        %3310 = vmatprep.subr.bf16.mxu0 0
        %3311 = vmatpush1.bf16.msra.mxu0 %v3267
        %3312 = vmatprep.subr.bf16.mxu0 0
        %3313 = vmatpush1.bf16.msra.mxu0 %v3268
        %3314 = vmatprep.subr.bf16.mxu0 0
        %3315 = vmatpush1.bf16.msra.mxu0 %v3269
        %3316 = vmatprep.subr.bf16.mxu0 0
        %3317 = vmatpush1.bf16.msra.mxu0 %v3270
        %3318 = vmatprep.subr.bf16.mxu0 0
        %3319 = vmatpush1.bf16.msra.mxu0 %v3271
        %3320 = vmatprep.mubr.bf16.mxu0 %v3193
        %3321 = vmatmul.mubr.bf16.gmra.mrb[0].mxu0 %v3192
        %v3322 = vpop.f32.mrb[0].mxu0
        %v3323 = vadd.f32 0.0, %v3322
        %v3324 = vpop.f32.mrb[0].mxu0
        %v3325 = vpop.f32.mrb[0].mxu0
        %v3326 = vadd.f32 0.0, %v3325
        %v3327 = vpop.f32.mrb[0].mxu0
        %3328 = vmatprep.mubr.bf16.mxu0 %v3197
        %3329 = vmatmul.mubr.bf16.gmra.mrb[0].mxu0 %v3196
        %v3330 = vpop.f32.mrb[0].mxu0
        %v3331 = vadd.f32 0.0, %v3330
        %v3332 = vpop.f32.mrb[0].mxu0
        %v3333 = vpop.f32.mrb[0].mxu0
        %v3334 = vadd.f32 0.0, %v3333
        %v3335 = vpop.f32.mrb[0].mxu0
        %3336 = vmatprep.mubr.bf16.mxu0 %v3201
        %3337 = vmatmul.mubr.bf16.gmra.mrb[0].mxu0 %v3200
        %v3338 = vpop.f32.mrb[0].mxu0
        %v3339 = vadd.f32 0.0, %v3338
        %v3340 = vpop.f32.mrb[0].mxu0
        %v3341 = vpop.f32.mrb[0].mxu0
        %v3342 = vadd.f32 0.0, %v3341
        %v3343 = vpop.f32.mrb[0].mxu0
        %3344 = vmatprep.mubr.bf16.mxu0 %v3205
        %3345 = vmatmul.mubr.bf16.gmra.mrb[0].mxu0 %v3204
        %v3346 = vpop.f32.mrb[0].mxu0
        %v3347 = vadd.f32 0.0, %v3346
        %v3348 = vpop.f32.mrb[0].mxu0
        %v3349 = vpop.f32.mrb[0].mxu0
        %v3350 = vadd.f32 0.0, %v3349
        %v3351 = vpop.f32.mrb[0].mxu0
        %3352 = vmatprep.mubr.bf16.mxu0 %v3209
        %3353 = vmatmul.mubr.bf16.gmra.mrb[0].mxu0 %v3208
        %v3354 = vpop.f32.mrb[0].mxu0
        %v3355 = vadd.f32 0.0, %v3354
        %v3356 = vpop.f32.mrb[0].mxu0
        %v3357 = vpop.f32.mrb[0].mxu0
        %v3358 = vadd.f32 0.0, %v3357
        %v3359 = vpop.f32.mrb[0].mxu0
        %3360 = vmatprep.mubr.bf16.mxu0 %v3213
        %3361 = vmatmul.mubr.bf16.gmra.mrb[0].mxu0 %v3212
        %v3362 = vpop.f32.mrb[0].mxu0
        %v3363 = vadd.f32 0.0, %v3362
        %v3364 = vpop.f32.mrb[0].mxu0
        %v3365 = vpop.f32.mrb[0].mxu0
        %v3366 = vadd.f32 0.0, %v3365
        %v3367 = vpop.f32.mrb[0].mxu0
        %3368 = vmatprep.mubr.bf16.mxu0 %v3217
        %3369 = vmatmul.mubr.bf16.gmra.mrb[0].mxu0 %v3216
        %v3370 = vpop.f32.mrb[0].mxu0
        %v3371 = vadd.f32 0.0, %v3370
        %v3372 = vpop.f32.mrb[0].mxu0
        %v3373 = vpop.f32.mrb[0].mxu0
        %v3374 = vadd.f32 0.0, %v3373
        %v3375 = vpop.f32.mrb[0].mxu0
        %3376 = vmatprep.mubr.bf16.mxu0 %v3221
        %3377 = vmatmul.mubr.bf16.gmra.mrb[0].mxu0 %v3220
        %v3378 = vpop.f32.mrb[0].mxu0
        %v3379 = vadd.f32 0.0, %v3378
        %v3380 = vpop.f32.mrb[0].mxu0
        %v3381 = vpop.f32.mrb[0].mxu0
        %v3382 = vadd.f32 0.0, %v3381
        %v3383 = vpop.f32.mrb[0].mxu0
        %3384 = vmatprep.mubr.bf16.mxu0 %v3225
        %3385 = vmatmul.mubr.bf16.gmra.mrb[0].mxu0 %v3224
        %v3386 = vpop.f32.mrb[0].mxu0
        %v3387 = vadd.f32 0.0, %v3386
        %v3388 = vpop.f32.mrb[0].mxu0
        %v3389 = vpop.f32.mrb[0].mxu0
        %v3390 = vadd.f32 0.0, %v3389
        %v3391 = vpop.f32.mrb[0].mxu0
        %3392 = vmatprep.mubr.bf16.mxu0 %v3229
        %3393 = vmatmul.mubr.bf16.gmra.mrb[0].mxu0 %v3228
        %v3394 = vpop.f32.mrb[0].mxu0
        %v3395 = vadd.f32 0.0, %v3394
        %v3396 = vpop.f32.mrb[0].mxu0
        %v3397 = vpop.f32.mrb[0].mxu0
        %v3398 = vadd.f32 0.0, %v3397
        %v3399 = vpop.f32.mrb[0].mxu0
        %3400 = vmatprep.mubr.bf16.mxu0 %v3233
        %3401 = vmatmul.mubr.bf16.gmra.mrb[0].mxu0 %v3232
        %v3402 = vpop.f32.mrb[0].mxu0
        %v3403 = vadd.f32 0.0, %v3402
        %v3404 = vpop.f32.mrb[0].mxu0
        %v3405 = vpop.f32.mrb[0].mxu0
        %v3406 = vadd.f32 0.0, %v3405
        %v3407 = vpop.f32.mrb[0].mxu0
        %3408 = vmatprep.mubr.bf16.mxu0 %v3237
        %3409 = vmatmul.mubr.bf16.gmra.mrb[0].mxu0 %v3236
        %v3410 = vpop.f32.mrb[0].mxu0
        %v3411 = vadd.f32 0.0, %v3410
        %v3412 = vpop.f32.mrb[0].mxu0
        %v3413 = vpop.f32.mrb[0].mxu0
        %v3414 = vadd.f32 0.0, %v3413
        %v3415 = vpop.f32.mrb[0].mxu0
        %3416 = vmatprep.mubr.bf16.mxu0 %v3241
        %3417 = vmatmul.mubr.bf16.gmra.mrb[0].mxu0 %v3240
        %v3418 = vpop.f32.mrb[0].mxu0
        %v3419 = vadd.f32 0.0, %v3418
        %v3420 = vpop.f32.mrb[0].mxu0
        %v3421 = vpop.f32.mrb[0].mxu0
        %v3422 = vadd.f32 0.0, %v3421
        %v3423 = vpop.f32.mrb[0].mxu0
        %3424 = vmatprep.mubr.bf16.mxu0 %v3245
        %3425 = vmatmul.mubr.bf16.gmra.mrb[0].mxu0 %v3244
        %v3426 = vpop.f32.mrb[0].mxu0
        %v3427 = vadd.f32 0.0, %v3426
        %v3428 = vpop.f32.mrb[0].mxu0
        %v3429 = vpop.f32.mrb[0].mxu0
        %v3430 = vadd.f32 0.0, %v3429
        %v3431 = vpop.f32.mrb[0].mxu0
        %3432 = vmatprep.mubr.bf16.mxu0 %v3249
        %3433 = vmatmul.mubr.bf16.gmra.mrb[0].mxu0 %v3248
        %v3434 = vpop.f32.mrb[0].mxu0
        %v3435 = vadd.f32 0.0, %v3434
        %v3436 = vpop.f32.mrb[0].mxu0
        %v3437 = vpop.f32.mrb[0].mxu0
        %v3438 = vadd.f32 0.0, %v3437
        %v3439 = vpop.f32.mrb[0].mxu0
        %3440 = vmatprep.mubr.bf16.mxu0 %v3253
        %3441 = vmatmul.mubr.bf16.gmra.mrb[0].mxu0 %v3252
        %v3442 = vpop.f32.mrb[0].mxu0
        %v3443 = vadd.f32 0.0, %v3442
        %v3444 = vpop.f32.mrb[0].mxu0
        %v3445 = vpop.f32.mrb[0].mxu0
        %v3446 = vadd.f32 0.0, %v3445
        %v3447 = vpop.f32.mrb[0].mxu0
        %3448 = vdwg.mxu0
        %3449 = vmatprep.subr.bf16.mxu0 0
        %3450 = vmatpush1.bf16.msra.mxu0 %v3272
        %3451 = vmatprep.subr.bf16.mxu0 0
        %3452 = vmatpush1.bf16.msra.mxu0 %v3273
        %3453 = vmatprep.subr.bf16.mxu0 0
        %3454 = vmatpush1.bf16.msra.mxu0 %v3274
        %3455 = vmatprep.subr.bf16.mxu0 0
        %3456 = vmatpush1.bf16.msra.mxu0 %v3275
        %3457 = vmatprep.subr.bf16.mxu0 0
        %3458 = vmatpush1.bf16.msra.mxu0 %v3276
        %3459 = vmatprep.subr.bf16.mxu0 0
        %3460 = vmatpush1.bf16.msra.mxu0 %v3277
        %3461 = vmatprep.subr.bf16.mxu0 0
        %3462 = vmatpush1.bf16.msra.mxu0 %v3278
        %3463 = vmatprep.subr.bf16.mxu0 0
        %3464 = vmatpush1.bf16.msra.mxu0 %v3279
        %3465 = vmatprep.subr.bf16.mxu0 0
        %3466 = vmatpush1.bf16.msra.mxu0 %v3280
        %3467 = vmatprep.subr.bf16.mxu0 0
        %3468 = vmatpush1.bf16.msra.mxu0 %v3281
        %3469 = vmatprep.subr.bf16.mxu0 0
        %3470 = vmatpush1.bf16.msra.mxu0 %v3282
        %3471 = vmatprep.subr.bf16.mxu0 0
        %3472 = vmatpush1.bf16.msra.mxu0 %v3283
        %3473 = vmatprep.subr.bf16.mxu0 0
        %3474 = vmatpush1.bf16.msra.mxu0 %v3284
        %3475 = vmatprep.subr.bf16.mxu0 0
        %3476 = vmatpush1.bf16.msra.mxu0 %v3285
        %3477 = vmatprep.subr.bf16.mxu0 0
        %3478 = vmatpush1.bf16.msra.mxu0 %v3286
        %3479 = vmatprep.subr.bf16.mxu0 0
        %3480 = vmatpush1.bf16.msra.mxu0 %v3287
        %3481 = vmatprep.mubr.bf16.mxu0 %v3195
        %3482 = vmatmul.mubr.bf16.gmra.mrb[0].mxu0 %v3194
        %v3483 = vpop.f32.mrb[0].mxu0
        %v3484 = vadd.f32 %v3323, %v3483
        %v3485 = vpop.f32.mrb[0].mxu0
        %v3486 = vpop.f32.mrb[0].mxu0
        %v3487 = vadd.f32 %v3326, %v3486
        %v3488 = vpop.f32.mrb[0].mxu0
        %3489 = vmatprep.mubr.bf16.mxu0 %v3199
        %3490 = vmatmul.mubr.bf16.gmra.mrb[0].mxu0 %v3198
        %v3491 = vpop.f32.mrb[0].mxu0
        %v3492 = vadd.f32 %v3331, %v3491
        %v3493 = vpop.f32.mrb[0].mxu0
        %v3494 = vpop.f32.mrb[0].mxu0
        %v3495 = vadd.f32 %v3334, %v3494
        %v3496 = vpop.f32.mrb[0].mxu0
        %3497 = vmatprep.mubr.bf16.mxu0 %v3203
        %3498 = vmatmul.mubr.bf16.gmra.mrb[0].mxu0 %v3202
        %v3499 = vpop.f32.mrb[0].mxu0
        %v3500 = vadd.f32 %v3339, %v3499
        %v3501 = vpop.f32.mrb[0].mxu0
        %v3502 = vpop.f32.mrb[0].mxu0
        %v3503 = vadd.f32 %v3342, %v3502
        %v3504 = vpop.f32.mrb[0].mxu0
        %3505 = vmatprep.mubr.bf16.mxu0 %v3207
        %3506 = vmatmul.mubr.bf16.gmra.mrb[0].mxu0 %v3206
        %v3507 = vpop.f32.mrb[0].mxu0
        %v3508 = vadd.f32 %v3347, %v3507
        %v3509 = vpop.f32.mrb[0].mxu0
        %v3510 = vpop.f32.mrb[0].mxu0
        %v3511 = vadd.f32 %v3350, %v3510
        %v3512 = vpop.f32.mrb[0].mxu0
        %3513 = vmatprep.mubr.bf16.mxu0 %v3211
        %3514 = vmatmul.mubr.bf16.gmra.mrb[0].mxu0 %v3210
        %v3515 = vpop.f32.mrb[0].mxu0
        %v3516 = vadd.f32 %v3355, %v3515
        %v3517 = vpop.f32.mrb[0].mxu0
        %v3518 = vpop.f32.mrb[0].mxu0
        %v3519 = vadd.f32 %v3358, %v3518
        %v3520 = vpop.f32.mrb[0].mxu0
        %3521 = vmatprep.mubr.bf16.mxu0 %v3215
        %3522 = vmatmul.mubr.bf16.gmra.mrb[0].mxu0 %v3214
        %v3523 = vpop.f32.mrb[0].mxu0
        %v3524 = vadd.f32 %v3363, %v3523
        %v3525 = vpop.f32.mrb[0].mxu0
        %v3526 = vpop.f32.mrb[0].mxu0
        %v3527 = vadd.f32 %v3366, %v3526
        %v3528 = vpop.f32.mrb[0].mxu0
        %3529 = vmatprep.mubr.bf16.mxu0 %v3219
        %3530 = vmatmul.mubr.bf16.gmra.mrb[0].mxu0 %v3218
        %v3531 = vpop.f32.mrb[0].mxu0
        %v3532 = vadd.f32 %v3371, %v3531
        %v3533 = vpop.f32.mrb[0].mxu0
        %v3534 = vpop.f32.mrb[0].mxu0
        %v3535 = vadd.f32 %v3374, %v3534
        %v3536 = vpop.f32.mrb[0].mxu0
        %3537 = vmatprep.mubr.bf16.mxu0 %v3223
        %3538 = vmatmul.mubr.bf16.gmra.mrb[0].mxu0 %v3222
        %v3539 = vpop.f32.mrb[0].mxu0
        %v3540 = vadd.f32 %v3379, %v3539
        %v3541 = vpop.f32.mrb[0].mxu0
        %v3542 = vpop.f32.mrb[0].mxu0
        %v3543 = vadd.f32 %v3382, %v3542
        %v3544 = vpop.f32.mrb[0].mxu0
        %3545 = vmatprep.mubr.bf16.mxu0 %v3227
        %3546 = vmatmul.mubr.bf16.gmra.mrb[0].mxu0 %v3226
        %v3547 = vpop.f32.mrb[0].mxu0
        %v3548 = vadd.f32 %v3387, %v3547
        %v3549 = vpop.f32.mrb[0].mxu0
        %v3550 = vpop.f32.mrb[0].mxu0
        %v3551 = vadd.f32 %v3390, %v3550
        %v3552 = vpop.f32.mrb[0].mxu0
        %3553 = vmatprep.mubr.bf16.mxu0 %v3231
        %3554 = vmatmul.mubr.bf16.gmra.mrb[0].mxu0 %v3230
        %v3555 = vpop.f32.mrb[0].mxu0
        %v3556 = vadd.f32 %v3395, %v3555
        %v3557 = vpop.f32.mrb[0].mxu0
        %v3558 = vpop.f32.mrb[0].mxu0
        %v3559 = vadd.f32 %v3398, %v3558
        %v3560 = vpop.f32.mrb[0].mxu0
        %3561 = vmatprep.mubr.bf16.mxu0 %v3235
        %3562 = vmatmul.mubr.bf16.gmra.mrb[0].mxu0 %v3234
        %v3563 = vpop.f32.mrb[0].mxu0
        %v3564 = vadd.f32 %v3403, %v3563
        %v3565 = vpop.f32.mrb[0].mxu0
        %v3566 = vpop.f32.mrb[0].mxu0
        %v3567 = vadd.f32 %v3406, %v3566
        %v3568 = vpop.f32.mrb[0].mxu0
        %3569 = vmatprep.mubr.bf16.mxu0 %v3239
        %3570 = vmatmul.mubr.bf16.gmra.mrb[0].mxu0 %v3238
        %v3571 = vpop.f32.mrb[0].mxu0
        %v3572 = vadd.f32 %v3411, %v3571
        %v3573 = vpop.f32.mrb[0].mxu0
        %v3574 = vpop.f32.mrb[0].mxu0
        %v3575 = vadd.f32 %v3414, %v3574
        %v3576 = vpop.f32.mrb[0].mxu0
        %3577 = vmatprep.mubr.bf16.mxu0 %v3243
        %3578 = vmatmul.mubr.bf16.gmra.mrb[0].mxu0 %v3242
        %v3579 = vpop.f32.mrb[0].mxu0
        %v3580 = vadd.f32 %v3419, %v3579
        %v3581 = vpop.f32.mrb[0].mxu0
        %v3582 = vpop.f32.mrb[0].mxu0
        %v3583 = vadd.f32 %v3422, %v3582
        %v3584 = vpop.f32.mrb[0].mxu0
        %3585 = vmatprep.mubr.bf16.mxu0 %v3247
        %3586 = vmatmul.mubr.bf16.gmra.mrb[0].mxu0 %v3246
        %v3587 = vpop.f32.mrb[0].mxu0
        %v3588 = vadd.f32 %v3427, %v3587
        %v3589 = vpop.f32.mrb[0].mxu0
        %v3590 = vpop.f32.mrb[0].mxu0
        %v3591 = vadd.f32 %v3430, %v3590
        %v3592 = vpop.f32.mrb[0].mxu0
        %3593 = vmatprep.mubr.bf16.mxu0 %v3251
        %3594 = vmatmul.mubr.bf16.gmra.mrb[0].mxu0 %v3250
        %v3595 = vpop.f32.mrb[0].mxu0
        %v3596 = vadd.f32 %v3435, %v3595
        %v3597 = vpop.f32.mrb[0].mxu0
        %v3598 = vpop.f32.mrb[0].mxu0
        %v3599 = vadd.f32 %v3438, %v3598
        %v3600 = vpop.f32.mrb[0].mxu0
        %3601 = vmatprep.mubr.bf16.mxu0 %v3255
        %3602 = vmatmul.mubr.bf16.gmra.mrb[0].mxu0 %v3254
        %v3603 = vpop.f32.mrb[0].mxu0
        %v3604 = vadd.f32 %v3443, %v3603
        %v3605 = vpop.f32.mrb[0].mxu0
        %v3606 = vpop.f32.mrb[0].mxu0
        %v3607 = vadd.f32 %v3446, %v3606
        %v3608 = vpop.f32.mrb[0].mxu0
        %3609 = vdwg.mxu0
        %v3610 = vrcp.pop %v2748
        %v3611 = vrcp.pop %v2753
        %v3612 = vrcp.pop %v2758
        %v3613 = vrcp.pop %v2763
        %v3614 = vrcp.pop %v2768
        %v3615 = vrcp.pop %v2773
        %v3616 = vrcp.pop %v2778
        %v3617 = vrcp.pop %v2783
        %v3618 = vrcp.pop %v2788
        %v3619 = vrcp.pop %v2793
        %v3620 = vrcp.pop %v2798
        %v3621 = vrcp.pop %v2803
        %v3622 = vrcp.pop %v2808
        %v3623 = vrcp.pop %v2813
        %v3624 = vrcp.pop %v2818
        %v3625 = vrcp.pop %v2823
        %v3626 = vrcp.pop %v2828
        %v3627 = vrcp.pop %v2833
        %v3628 = vrcp.pop %v2838
        %v3629 = vrcp.pop %v2843
        %v3630 = vrcp.pop %v2848
        %v3631 = vrcp.pop %v2853
        %v3632 = vrcp.pop %v2858
        %v3633 = vrcp.pop %v2863
        %v3634 = vrcp.pop %v2868
        %v3635 = vrcp.pop %v2873
        %v3636 = vrcp.pop %v2878
        %v3637 = vrcp.pop %v2883
        %v3638 = vrcp.pop %v2888
        %v3639 = vrcp.pop %v2893
        %v3640 = vrcp.pop %v2898
        %v3641 = vrcp.pop %v2903
        %s3642 = sld [smem:[#allocation4]]
        %v3643 = vmul.f32 %v3484, %v3610
        %v3644 = vmul.f32 %v3487, %v3611
        %v3645 = vmul.f32 %v3492, %v3612
        %v3646 = vmul.f32 %v3495, %v3613
        %v3647 = vmul.f32 %v3500, %v3614
        %v3648 = vmul.f32 %v3503, %v3615
        %v3649 = vmul.f32 %v3508, %v3616
        %v3650 = vmul.f32 %v3511, %v3617
        %v3651 = vmul.f32 %v3516, %v3618
        %v3652 = vmul.f32 %v3519, %v3619
        %v3653 = vmul.f32 %v3524, %v3620
        %v3654 = vmul.f32 %v3527, %v3621
        %v3655 = vmul.f32 %v3532, %v3622
        %v3656 = vmul.f32 %v3535, %v3623
        %v3657 = vmul.f32 %v3540, %v3624
        %v3658 = vmul.f32 %v3543, %v3625
        %v3659 = vmul.f32 %v3548, %v3626
        %v3660 = vmul.f32 %v3551, %v3627
        %v3661 = vmul.f32 %v3556, %v3628
        %v3662 = vmul.f32 %v3559, %v3629
        %v3663 = vmul.f32 %v3564, %v3630
        %v3664 = vmul.f32 %v3567, %v3631
        %v3665 = vmul.f32 %v3572, %v3632
        %v3666 = vmul.f32 %v3575, %v3633
        %v3667 = vmul.f32 %v3580, %v3634
        %v3668 = vmul.f32 %v3583, %v3635
        %v3669 = vmul.f32 %v3588, %v3636
        %v3670 = vmul.f32 %v3591, %v3637
        %v3671 = vmul.f32 %v3596, %v3638
        %v3672 = vmul.f32 %v3599, %v3639
        %v3673 = vmul.f32 %v3604, %v3640
        %v3674 = vmul.f32 %v3607, %v3641
        %v3675 = vstv %s3642
        %v3676 = vmul.f32 %v3675, %v3643
        %v3677 = vmul.f32 %v3675, %v3644
        %v3678 = vmul.f32 %v3675, %v3645
        %v3679 = vmul.f32 %v3675, %v3646
        %v3680 = vmul.f32 %v3675, %v3647
        %v3681 = vmul.f32 %v3675, %v3648
        %v3682 = vmul.f32 %v3675, %v3649
        %v3683 = vmul.f32 %v3675, %v3650
        %v3684 = vmul.f32 %v3675, %v3651
        %v3685 = vmul.f32 %v3675, %v3652
        %v3686 = vmul.f32 %v3675, %v3653
        %v3687 = vmul.f32 %v3675, %v3654
        %v3688 = vmul.f32 %v3675, %v3655
        %v3689 = vmul.f32 %v3675, %v3656
        %v3690 = vmul.f32 %v3675, %v3657
        %v3691 = vmul.f32 %v3675, %v3658
        %v3692 = vmul.f32 %v3675, %v3659
        %v3693 = vmul.f32 %v3675, %v3660
        %v3694 = vmul.f32 %v3675, %v3661
        %v3695 = vmul.f32 %v3675, %v3662
        %v3696 = vmul.f32 %v3675, %v3663
        %v3697 = vmul.f32 %v3675, %v3664
        %v3698 = vmul.f32 %v3675, %v3665
        %v3699 = vmul.f32 %v3675, %v3666
        %v3700 = vmul.f32 %v3675, %v3667
        %v3701 = vmul.f32 %v3675, %v3668
        %v3702 = vmul.f32 %v3675, %v3669
        %v3703 = vmul.f32 %v3675, %v3670
        %v3704 = vmul.f32 %v3675, %v3671
        %v3705 = vmul.f32 %v3675, %v3672
        %v3706 = vmul.f32 %v3675, %v3673
        %v3707 = vmul.f32 %v3675, %v3674
        %v3708 = vadd.f32 %v3676, %v1319
        %v3709 = vadd.f32 %v3677, %v1320
        %v3710 = vadd.f32 %v3678, %v1321
        %v3711 = vadd.f32 %v3679, %v1322
        %v3712 = vadd.f32 %v3680, %v1323
        %v3713 = vadd.f32 %v3681, %v1324
        %v3714 = vadd.f32 %v3682, %v1325
        %v3715 = vadd.f32 %v3683, %v1326
        %v3716 = vadd.f32 %v3684, %v1327
        %v3717 = vadd.f32 %v3685, %v1328
        %v3718 = vadd.f32 %v3686, %v1329
        %v3719 = vadd.f32 %v3687, %v1330
        %v3720 = vadd.f32 %v3688, %v1331
        %v3721 = vadd.f32 %v3689, %v1332
        %v3722 = vadd.f32 %v3690, %v1333
        %v3723 = vadd.f32 %v3691, %v1334
        %v3724 = vadd.f32 %v3692, %v1335
        %v3725 = vadd.f32 %v3693, %v1336
        %v3726 = vadd.f32 %v3694, %v1337
        %v3727 = vadd.f32 %v3695, %v1338
        %v3728 = vadd.f32 %v3696, %v1339
        %v3729 = vadd.f32 %v3697, %v1340
        %v3730 = vadd.f32 %v3698, %v1341
        %v3731 = vadd.f32 %v3699, %v1342
        %v3732 = vadd.f32 %v3700, %v1343
        %v3733 = vadd.f32 %v3701, %v1344
        %v3734 = vadd.f32 %v3702, %v1345
        %v3735 = vadd.f32 %v3703, %v1346
        %v3736 = vadd.f32 %v3704, %v1347
        %v3737 = vadd.f32 %v3705, %v1348
        %v3738 = vadd.f32 %v3706, %v1349
        %v3739 = vadd.f32 %v3707, %v1350
        %3740 = vxpose.xlu0.b32.start [1/16] %v3708, 128
        %3741 = vxpose.xlu0.b32.cont [2/16] %v3709, 128
        %3742 = vxpose.xlu0.b32.cont [3/16] %v3710, 128
        %3743 = vxpose.xlu0.b32.cont [4/16] %v3711, 128
        %3744 = vxpose.xlu0.b32.cont [5/16] %v3712, 128
        %3745 = vxpose.xlu0.b32.cont [6/16] %v3713, 128
        %3746 = vxpose.xlu0.b32.cont [7/16] %v3714, 128
        %3747 = vxpose.xlu0.b32.cont [8/16] %v3715, 128
        %3748 = vxpose.xlu0.b32.cont [9/16] %v3716, 128
        %3749 = vxpose.xlu0.b32.cont [10/16] %v3717, 128
        %3750 = vxpose.xlu0.b32.cont [11/16] %v3718, 128
        %3751 = vxpose.xlu0.b32.cont [12/16] %v3719, 128
        %3752 = vxpose.xlu0.b32.cont [13/16] %v3720, 128
        %3753 = vxpose.xlu0.b32.cont [14/16] %v3721, 128
        %3754 = vxpose.xlu0.b32.cont [15/16] %v3722, 128
        %3755 = vxpose.xlu0.b32.end [16/16] %v3723, 128
        %v3756 = vpop.trf.xlu0
        %v3757 = vpop.trf.xlu0
        %v3758 = vpop.trf.xlu0
        %v3759 = vpop.trf.xlu0
        %v3760 = vpop.trf.xlu0
        %v3761 = vpop.trf.xlu0
        %v3762 = vpop.trf.xlu0
        %v3763 = vpop.trf.xlu0
        %v3764 = vpop.trf.xlu0
        %v3765 = vpop.trf.xlu0
        %v3766 = vpop.trf.xlu0
        %v3767 = vpop.trf.xlu0
        %v3768 = vpop.trf.xlu0
        %v3769 = vpop.trf.xlu0
        %v3770 = vpop.trf.xlu0
        %v3771 = vpop.trf.xlu0
        %3772 = vxpose.xlu0.b32.start [1/16] %v3724, 128
        %3773 = vxpose.xlu0.b32.cont [2/16] %v3725, 128
        %3774 = vxpose.xlu0.b32.cont [3/16] %v3726, 128
        %3775 = vxpose.xlu0.b32.cont [4/16] %v3727, 128
        %3776 = vxpose.xlu0.b32.cont [5/16] %v3728, 128
        %3777 = vxpose.xlu0.b32.cont [6/16] %v3729, 128
        %3778 = vxpose.xlu0.b32.cont [7/16] %v3730, 128
        %3779 = vxpose.xlu0.b32.cont [8/16] %v3731, 128
        %3780 = vxpose.xlu0.b32.cont [9/16] %v3732, 128
        %3781 = vxpose.xlu0.b32.cont [10/16] %v3733, 128
        %3782 = vxpose.xlu0.b32.cont [11/16] %v3734, 128
        %3783 = vxpose.xlu0.b32.cont [12/16] %v3735, 128
        %3784 = vxpose.xlu0.b32.cont [13/16] %v3736, 128
        %3785 = vxpose.xlu0.b32.cont [14/16] %v3737, 128
        %3786 = vxpose.xlu0.b32.cont [15/16] %v3738, 128
        %3787 = vxpose.xlu0.b32.end [16/16] %v3739, 128
        %v3788 = vpop.trf.xlu0
        %v3789 = vpop.trf.xlu0
        %v3790 = vpop.trf.xlu0
        %v3791 = vpop.trf.xlu0
        %v3792 = vpop.trf.xlu0
        %v3793 = vpop.trf.xlu0
        %v3794 = vpop.trf.xlu0
        %v3795 = vpop.trf.xlu0
        %v3796 = vpop.trf.xlu0
        %v3797 = vpop.trf.xlu0
        %v3798 = vpop.trf.xlu0
        %v3799 = vpop.trf.xlu0
        %v3800 = vpop.trf.xlu0
        %v3801 = vpop.trf.xlu0
        %v3802 = vpop.trf.xlu0
        %v3803 = vpop.trf.xlu0
        %3804 = vst [vmem:[%s365] sm:$0xff] %v3756
        %3805 = vst [vmem:[%s365 + $0x8] sm:$0xff] %v3788
        %3806 = vst [vmem:[%s365 + $0x10] sm:$0xff] %v3757
        %3807 = vst [vmem:[%s365 + $0x18] sm:$0xff] %v3789
        %3808 = vst [vmem:[%s365 + $0x20] sm:$0xff] %v3758
        %3809 = vst [vmem:[%s365 + $0x28] sm:$0xff] %v3790
        %3810 = vst [vmem:[%s365 + $0x30] sm:$0xff] %v3759
        %3811 = vst [vmem:[%s365 + $0x38] sm:$0xff] %v3791
        %3812 = vst [vmem:[%s365 + $0x40] sm:$0xff] %v3760
        %3813 = vst [vmem:[%s365 + $0x48] sm:$0xff] %v3792
        %3814 = vst [vmem:[%s365 + $0x50] sm:$0xff] %v3761
        %3815 = vst [vmem:[%s365 + $0x58] sm:$0xff] %v3793
        %3816 = vst [vmem:[%s365 + $0x60] sm:$0xff] %v3762
        %3817 = vst [vmem:[%s365 + $0x68] sm:$0xff] %v3794
        %3818 = vst [vmem:[%s365 + $0x70] sm:$0xff] %v3763
        %3819 = vst [vmem:[%s365 + $0x78] sm:$0xff] %v3795
        %3820 = vst [vmem:[%s365 + $0x80] sm:$0xff] %v3764
        %3821 = vst [vmem:[%s365 + $0x88] sm:$0xff] %v3796
        %3822 = vst [vmem:[%s365 + $0x90] sm:$0xff] %v3765
        %3823 = vst [vmem:[%s365 + $0x98] sm:$0xff] %v3797
        %3824 = vst [vmem:[%s365 + $0xa0] sm:$0xff] %v3766
        %3825 = vst [vmem:[%s365 + $0xa8] sm:$0xff] %v3798
        %3826 = vst [vmem:[%s365 + $0xb0] sm:$0xff] %v3767
        %3827 = vst [vmem:[%s365 + $0xb8] sm:$0xff] %v3799
        %3828 = vst [vmem:[%s365 + $0xc0] sm:$0xff] %v3768
        %3829 = vst [vmem:[%s365 + $0xc8] sm:$0xff] %v3800
        %3830 = vst [vmem:[%s365 + $0xd0] sm:$0xff] %v3769
        %3831 = vst [vmem:[%s365 + $0xd8] sm:$0xff] %v3801
        %3832 = vst [vmem:[%s365 + $0xe0] sm:$0xff] %v3770
        %3833 = vst [vmem:[%s365 + $0xe8] sm:$0xff] %v3802
        %3834 = vst [vmem:[%s365 + $0xf0] sm:$0xff] %v3771
        %3835 = vst [vmem:[%s365 + $0xf8] sm:$0xff] %v3803
        %s3836 = sand.u32 %s243, 1
        %s3837 = scalar_lea.sflag [#allocation7], %s3836
        %s3838 = sand.u32 %s243, 1
        %s3839 = smul.addr %s3838, 256
        %s3840 = scalar_lea.vmem [#allocation8], %s3839
        // Predicated region
        $region65: #{tpu_custom_call.1} parent=55 // pred_check
          %p3841 = pneg %p253
        $region66: #{tpu_custom_call.1} parent=55 // pred_check_branch
          %3843 = sbr.rel (%p3841) target = $region68
        $region67: #{tpu_custom_call.1} parent=55 // pred_region
          %s3844 = smul.u32 2, %s32
          %s3846 = ssub.s32 4096, 4096
          %3847 = vsyncadd %s3837, %s3846
          %s3848 = smul.addr %s31, 64
          %s3849 = sadd.s32 %s3844, %s3848
          %s3850 = smul.addr %s3849, 128
          %s3851 = scalar_lea.hbm %s9, %s3850
          %s3852 = sshll.u32 %s3840, 4
          %s3853 = int_to_ptr.vmem [resolvable:$true] %s3852
          %3858 = dma.vmem_to_hbm [thread:$0]  %s3853, 4096, %s3851, %s3837, 256, 512, 16
        $region68: #{tpu_custom_call.1} parent=55 // pred_fallthru
          _
      $region56: #{tpu_custom_call.1} parent=5 // pred_fallthru
        _
      %p3859 = scmp.le.s32.totalorder 2, %s22
      // Predicated region
      $region69: #{tpu_custom_call.1} parent=5 // pred_check
        %p3860 = pneg %p3859
      $region70: #{tpu_custom_call.1} parent=5 // pred_check_branch
        %3862 = sbr.rel (%p3860) target = $region72
      $region71: #{tpu_custom_call.1} parent=5 // pred_region
        %s3863 = ssub.s32 %s22, 2
        // Predicated region
        $region73: #{tpu_custom_call.1} parent=71 // pred_check
          %p3864 = pneg %p259
        $region74: #{tpu_custom_call.1} parent=71 // pred_check_branch
          %3866 = sbr.rel (%p3864) target = $region76
        $region75: #{tpu_custom_call.1} parent=71 // pred_region
          %s3867 = sand.u32 %s244, 1
          %s3868 = scalar_lea.sflag [#allocation7], %s3867
          %s3869 = sand.u32 %s244, 1
          %s3870 = smul.addr %s3869, 256
          %s3871 = scalar_lea.vmem [#allocation8], %s3870
          %3872 = dma.done %s3868, 4096
        $region76: #{tpu_custom_call.1} parent=71 // pred_fallthru
          _
      $region72: #{tpu_custom_call.1} parent=5 // pred_fallthru
        _
    $region6: #{tpu_custom_call.1} parent=1 // loop_footer
      %s26 = sadd.s32 1, %s22
    $region7: #{tpu_custom_call.1} parent=1 // loop_footer_branch
      %21 = sbr.rel target = $region3
    $region8: #{tpu_custom_call.1} parent=1 // loop_exit
      _
    %3873 = vsyncpa [#allocation6], 1
    %s3874 = scalar_lea.sflag [#allocation6], 1
    %3875 = vsyncpa %s3874, 1
    %3876 = vsyncpa [#allocation7], 1
    %s3877 = scalar_lea.sflag [#allocation7], 1
    %3878 = vsyncpa %s3877, 1

</llo_original>
